<compile_context>
chip_gen: v6e
topology: v6e:2x2x1
jax: 0.10.0
libtpu: 0.0.40
codegen_flags: <defaults>
</compile_context>

<pallas_src>
import functools

import jax
import jax.numpy as jnp
from jax.experimental import pallas as pl
from jax.experimental.pallas import tpu as pltpu

LEAKY_SLOPE = 0.1
BN_EPS = 1e-5
LANE = 128
# MXU operand dtype (accumulation is always f32).  Set to jnp.float32 for
# bit-closer-to-PyTorch numerics; bf16 for v5e/v6e/v7x MXU throughput.
MATMUL_DTYPE = jnp.bfloat16
VMEM_LIMIT = 32 * 1024 * 1024


def _round_up(x, m):
    return ((x + m - 1) // m) * m


def _leaky_relu(x):
    return jnp.where(x >= 0, x, LEAKY_SLOPE * x)


# ----------------------------------------------------------------------------
# Kernel 1: fused [prev-layer BN scale/shift + LeakyReLU] -> Conv3x3(pad=1)
#           + per-channel sum / sum-of-squares accumulation for this layer's BN.
# grid = (N,), "arbitrary" (the stats accumulator reduces over the batch axis).
# ----------------------------------------------------------------------------
def _conv_bn_stats_kernel(x_ref, ss_ref, w_ref, y_ref, stats_ref, xp_ref,
                          *, pre_act):
    # x_ref     : (1, H, W, Cact)     input tile (raw input or padded prev y), f32
    # ss_ref    : (2, Cact) f32       prev layer's fused BN [scale; shift]
    # w_ref     : (9*Cp_in, Cp_out)   bf16, (dy, dx, cin)-major flattened HWIO
    # y_ref     : (1, H, W, Cp_out)   f32 pre-BN conv output (channel padded)
    # stats_ref : (2, Cp_out) f32     [sum; sum_sq], grid-resident accumulator
    # xp_ref    : (H+2, W+2, Cp_in)   f32 VMEM scratch (spatial halo + channel pad)
    _, H, W, cact = x_ref.shape
    cp_in = xp_ref.shape[-1]
    cp_out = y_ref.shape[-1]

    # Zero the halo / channel padding and the stats accumulator ONCE.  Only the
    # interior [1:H+1, 1:W+1, :cact] is rewritten per step, so the border (and any
    # padded input channels) stay zero for the whole grid.
    @pl.when(pl.program_id(0) == 0)
    def _():
        xp_ref[...] = jnp.zeros_like(xp_ref)
        stats_ref[...] = jnp.zeros_like(stats_ref)

    t = x_ref[0]
    if pre_act:  # previous layer's BatchNorm + LeakyReLU, fused (never hits HBM)
        t = _leaky_relu(t * ss_ref[0] + ss_ref[1])
    xp_ref[1:H + 1, 1:W + 1, 0:cact] = t

    # im2col in VMEM: 9 shifted taps concatenated on the lane (channel) axis,
    # then ONE long-M matmul (M = H*W, K = 9*Cp_in) on the MXU.
    taps = [xp_ref[dy:dy + H, dx:dx + W, :]
            for dy in range(3) for dx in range(3)]
    patches = jnp.concatenate(taps, axis=-1).reshape(H * W, 9 * cp_in)
    y = jnp.dot(patches.astype(MATMUL_DTYPE), w_ref[...],
                preferred_element_type=jnp.float32)          # (H*W, Cp_out) f32
    # Conv bias intentionally omitted: it cancels exactly under train-mode BN.

    y_ref[0] = y.reshape(H, W, cp_out)

    # BN batch statistics: per-channel sum and sum-of-squares, accumulated in f32
    # across the sequential ("arbitrary") batch grid axis.
    srow = jnp.sum(y, axis=0, keepdims=True)
    qrow = jnp.sum(y * y, axis=0, keepdims=True)
    stats_ref[...] += jnp.concatenate([srow, qrow], axis=0)


def _conv_bn_stats(x_nhwc, ss, w_flat, cp_out, pre_act):
    N, H, W, cact = x_nhwc.shape
    cp_in = w_flat.shape[0] // 9
    kernel = functools.partial(_conv_bn_stats_kernel, pre_act=pre_act)
    return pl.pallas_call(
        kernel,
        grid=(N,),
        in_specs=[
            pl.BlockSpec((1, H, W, cact), lambda n: (n, 0, 0, 0)),
            pl.BlockSpec((2, cact), lambda n: (0, 0)),
            pl.BlockSpec(w_flat.shape, lambda n: (0, 0)),
        ],
        out_specs=(
            pl.BlockSpec((1, H, W, cp_out), lambda n: (n, 0, 0, 0)),
            pl.BlockSpec((2, cp_out), lambda n: (0, 0)),   # resident accumulator
        ),
        out_shape=(
            jax.ShapeDtypeStruct((N, H, W, cp_out), jnp.float32),
            jax.ShapeDtypeStruct((2, cp_out), jnp.float32),
        ),
        scratch_shapes=[pltpu.VMEM((H + 2, W + 2, cp_in), jnp.float32)],
        compiler_params=pltpu.CompilerParams(
            # batch axis doubles as the BN-stats reduction axis -> must be sequential
            dimension_semantics=("arbitrary",),
            vmem_limit_bytes=VMEM_LIMIT,
        ),
    )(x_nhwc, ss, w_flat)


# ----------------------------------------------------------------------------
# Kernel 2: apply the LAST layer's BatchNorm (fused scale/shift) + LeakyReLU.
# Output stays channel-padded so every store is lane-dense (unmasked vst); the
# cheap channel slice + layout transpose happen in the XLA wrapper.
# ----------------------------------------------------------------------------
def _bn_act_kernel(y_ref, ss_ref, o_ref):
    z = y_ref[0] * ss_ref[0] + ss_ref[1]
    o_ref[0] = _leaky_relu(z).astype(o_ref.dtype)


def _bn_act_apply(y, ss):
    N, H, W, cp = y.shape
    return pl.pallas_call(
        _bn_act_kernel,
        grid=(N,),
        in_specs=[
            pl.BlockSpec((1, H, W, cp), lambda n: (n, 0, 0, 0)),
            pl.BlockSpec((2, cp), lambda n: (0, 0)),
        ],
        out_specs=pl.BlockSpec((1, H, W, cp), lambda n: (n, 0, 0, 0)),
        out_shape=jax.ShapeDtypeStruct((N, H, W, cp), jnp.float32),
        compiler_params=pltpu.CompilerParams(
            dimension_semantics=("parallel",),   # independent per image
            vmem_limit_bytes=VMEM_LIMIT,
        ),
    )(y, ss)


# ----------------------------------------------------------------------------
# _MultiConvBlock forward (skip=False, dropout=False defaults)
# ----------------------------------------------------------------------------
def multiconvblock_forward(x_nchw, params, out_chan):
    x = jnp.transpose(x_nchw, (0, 2, 3, 1))                 # NCHW -> NHWC
    N, H, W, cin = x.shape
    count = float(N * H * W)                                 # BN reduces over N,H,W

    cur = x
    # Identity pre-activation for layer 1 (raw input, no previous BN).
    ss = jnp.concatenate([jnp.ones((1, cin), jnp.float32),
                          jnp.zeros((1, cin), jnp.float32)], axis=0)
    for li, (w_flat, gamma_pad, beta_pad) in enumerate(params):
        cp_out = w_flat.shape[1]
        y, stats = _conv_bn_stats(cur, ss, w_flat, cp_out, pre_act=(li > 0))
        # Finalize BN batch stats (biased variance, eps=1e-5) -> fused scale/shift.
        # Sums/sumsq are f32; clamp var >= 0 against cancellation.
        mean = stats[0] / count
        var = jnp.maximum(stats[1] / count - mean * mean, 0.0)
        s = gamma_pad * jax.lax.rsqrt(var + BN_EPS)
        ss = jnp.stack([s, beta_pad - mean * s], axis=0)     # (2, cp_out)
        cur = y

    out = _bn_act_apply(cur, ss)                             # last BN + LeakyReLU
    out = out[..., :out_chan]                                # drop channel padding
    return jnp.transpose(out, (0, 3, 1, 2))                  # NHWC -> NCHW


def init_multiconvblock_params(key, in_chan, out_chan, n=2):
    """PyTorch-default-style init: Conv2d weight ~ U(-1/sqrt(fan_in), 1/sqrt(fan_in));
    BN gamma=1, beta=0.  Conv bias is omitted (cancels exactly under train-mode BN).
    Weights are channel-padded to the lane width and pre-flattened to
    (9*Cp_in, Cp_out) in (dy, dx, cin)-major order for the im2col matmul."""
    params = []
    chans = [in_chan] + [out_chan] * n
    cp_out = _round_up(out_chan, LANE)
    for i in range(n):
        cin, cout = chans[i], chans[i + 1]
        cp_in = _round_up(cin, LANE) if i == 0 else cp_out
        key, kw = jax.random.split(key)
        bound = 1.0 / float((cin * 9) ** 0.5)
        w = jax.random.uniform(kw, (3, 3, cin, cout), jnp.float32, -bound, bound)
        w_pad = jnp.zeros((3, 3, cp_in, cp_out), jnp.float32)
        w_pad = w_pad.at[:, :, :cin, :cout].set(w)
        w_flat = w_pad.reshape(9 * cp_in, cp_out).astype(MATMUL_DTYPE)
        gamma_pad = jnp.zeros((cp_out,), jnp.float32).at[:cout].set(1.0)
        beta_pad = jnp.zeros((cp_out,), jnp.float32)
        params.append((w_flat, gamma_pad, beta_pad))
    return params


# TODO(synk): skip=True (_MultiConvSkip: 1x1 conv skip + add + LeakyReLU) and
# dropout=True (nn.Dropout2d, stochastic) branches are off by default and not
# implemented here.


if __name__ == "__main__":
    key = jax.random.PRNGKey(0)
    kx, kp = jax.random.split(key)

    N, Cin, H, W = 2, 4, 16, 16
    Cout = 8

    x = jax.random.normal(kx, (N, Cin, H, W), dtype=jnp.float32)
    params = init_multiconvblock_params(kp, Cin, Cout, n=2)

    fwd = jax.jit(functools.partial(multiconvblock_forward, out_chan=Cout))
    y = fwd(x, params)
    jax.block_until_ready(y)

    # _MultiConvBlock preserves spatial dims (3x3 conv, padding=1, no pooling).
    assert y.shape == (N, Cout, H, W), y.shape
    assert y.dtype == jnp.float32
    print("KERNEL_OK")
</pallas_src>

<mosaic_0001>
module attributes {stable_mosaic.version = 11 : i64} {
  func.func @_conv_bn_stats_kernel(%arg0: i32, %arg1: memref<1x16x16x4xf32, #tpu.memory_space<vmem>>, %arg2: memref<2x4xf32, #tpu.memory_space<vmem>>, %arg3: memref<1152x128xbf16, #tpu.memory_space<vmem>>, %arg4: memref<1x16x16x128xf32, #tpu.memory_space<vmem>>, %arg5: memref<2x128xf32, #tpu.memory_space<vmem>>, %arg6: memref<18x18x128xf32, #tpu.memory_space<vmem>>) attributes {dimension_semantics = [#tpu.dimension_semantics<arbitrary>], iteration_bounds = array<i64: 2>, scalar_prefetch = 0 : i64, scratch_operands = 1 : i64, tpu.core_type = #tpu.core_type<tc>, window_params = [{transform_indices = @transform_0, window_bounds = array<i64: 1, 16, 16, 4>}, {pipeline_mode = #tpu.pipeline_mode<synchronous>, transform_indices = @transform_1, window_bounds = array<i64: 2, 4>}, {pipeline_mode = #tpu.pipeline_mode<synchronous>, transform_indices = @transform_2, window_bounds = array<i64: 1152, 128>}, {transform_indices = @transform_3, window_bounds = array<i64: 1, 16, 16, 128>}, {pipeline_mode = #tpu.pipeline_mode<synchronous>, transform_indices = @transform_4, window_bounds = array<i64: 2, 128>}]} {
    %c0_i32 = arith.constant 0 : i32
    %0 = arith.cmpi eq, %arg0, %c0_i32 : i32
    %1 = arith.extui %0 : i1 to i32
    %c0_i32_0 = arith.constant 0 : i32
    %2 = arith.cmpi ne, %1, %c0_i32_0 : i32
    scf.if %2 {
      %cst_44 = arith.constant 0.000000e+00 : f32
      %33 = vector.broadcast %cst_44 : f32 to vector<18x18x128xf32>
      %c0_45 = arith.constant 0 : index
      %c0_46 = arith.constant 0 : index
      %c0_47 = arith.constant 0 : index
      %34 = vector.load %arg6[%c0_45, %c0_46, %c0_47] : memref<18x18x128xf32, #tpu.memory_space<vmem>>, vector<18x18x128xf32>
      tpu.vector_store %arg6[%c0_45, %c0_46, %c0_47], %33 {strides = array<i32>} : memref<18x18x128xf32, #tpu.memory_space<vmem>>, vector<18x18x128xf32>,
      %cst_48 = arith.constant 0.000000e+00 : f32
      %35 = vector.broadcast %cst_48 : f32 to vector<2x128xf32>
      %c0_49 = arith.constant 0 : index
      %c0_50 = arith.constant 0 : index
      %36 = vector.load %arg5[%c0_49, %c0_50] : memref<2x128xf32, #tpu.memory_space<vmem>>, vector<2x128xf32>
      tpu.vector_store %arg5[%c0_49, %c0_50], %35 {strides = array<i32>} : memref<2x128xf32, #tpu.memory_space<vmem>>, vector<2x128xf32>,
    } else {
    }
    %c0 = arith.constant 0 : index
    %c0_1 = arith.constant 0 : index
    %c0_2 = arith.constant 0 : index
    %c0_3 = arith.constant 0 : index
    %3 = vector.load %arg1[%c0, %c0_1, %c0_2, %c0_3] : memref<1x16x16x4xf32, #tpu.memory_space<vmem>>, vector<1x16x16x4xf32>
    %4 = vector.shape_cast %3 : vector<1x16x16x4xf32> to vector<16x16x4xf32>
    %c1 = arith.constant 1 : index
    %c1_4 = arith.constant 1 : index
    %c0_5 = arith.constant 0 : index
    %5 = vector.load %arg6[%c1, %c1_4, %c0_5] : memref<18x18x128xf32, #tpu.memory_space<vmem>>, vector<16x16x4xf32>
    tpu.vector_store %arg6[%c1, %c1_4, %c0_5], %4 {strides = array<i32>} : memref<18x18x128xf32, #tpu.memory_space<vmem>>, vector<16x16x4xf32>,
    %c0_6 = arith.constant 0 : index
    %c0_7 = arith.constant 0 : index
    %c0_8 = arith.constant 0 : index
    %6 = vector.load %arg6[%c0_6, %c0_7, %c0_8] : memref<18x18x128xf32, #tpu.memory_space<vmem>>, vector<16x16x128xf32>
    %c0_9 = arith.constant 0 : index
    %c1_10 = arith.constant 1 : index
    %c0_11 = arith.constant 0 : index
    %7 = vector.load %arg6[%c0_9, %c1_10, %c0_11] : memref<18x18x128xf32, #tpu.memory_space<vmem>>, vector<16x16x128xf32>
    %c0_12 = arith.constant 0 : index
    %c2 = arith.constant 2 : index
    %c0_13 = arith.constant 0 : index
    %8 = vector.load %arg6[%c0_12, %c2, %c0_13] : memref<18x18x128xf32, #tpu.memory_space<vmem>>, vector<16x16x128xf32>
    %c1_14 = arith.constant 1 : index
    %c0_15 = arith.constant 0 : index
    %c0_16 = arith.constant 0 : index
    %9 = vector.load %arg6[%c1_14, %c0_15, %c0_16] : memref<18x18x128xf32, #tpu.memory_space<vmem>>, vector<16x16x128xf32>
    %c1_17 = arith.constant 1 : index
    %c1_18 = arith.constant 1 : index
    %c0_19 = arith.constant 0 : index
    %10 = vector.load %arg6[%c1_17, %c1_18, %c0_19] : memref<18x18x128xf32, #tpu.memory_space<vmem>>, vector<16x16x128xf32>
    %c1_20 = arith.constant 1 : index
    %c2_21 = arith.constant 2 : index
    %c0_22 = arith.constant 0 : index
    %11 = vector.load %arg6[%c1_20, %c2_21, %c0_22] : memref<18x18x128xf32, #tpu.memory_space<vmem>>, vector<16x16x128xf32>
    %c2_23 = arith.constant 2 : index
    %c0_24 = arith.constant 0 : index
    %c0_25 = arith.constant 0 : index
    %12 = vector.load %arg6[%c2_23, %c0_24, %c0_25] : memref<18x18x128xf32, #tpu.memory_space<vmem>>, vector<16x16x128xf32>
    %c2_26 = arith.constant 2 : index
    %c1_27 = arith.constant 1 : index
    %c0_28 = arith.constant 0 : index
    %13 = vector.load %arg6[%c2_26, %c1_27, %c0_28] : memref<18x18x128xf32, #tpu.memory_space<vmem>>, vector<16x16x128xf32>
    %c2_29 = arith.constant 2 : index
    %c2_30 = arith.constant 2 : index
    %c0_31 = arith.constant 0 : index
    %14 = vector.load %arg6[%c2_29, %c2_30, %c0_31] : memref<18x18x128xf32, #tpu.memory_space<vmem>>, vector<16x16x128xf32>
    %15 = tpu.concatenate %6, %7, %8, %9, %10, %11, %12, %13, %14 in 2 : vector<16x16x128xf32>, vector<16x16x128xf32>, vector<16x16x128xf32>, vector<16x16x128xf32>, vector<16x16x128xf32>, vector<16x16x128xf32>, vector<16x16x128xf32>, vector<16x16x128xf32>, vector<16x16x128xf32> -> vector<16x16x1152xf32>
    %16 = vector.shape_cast %15 : vector<16x16x1152xf32> to vector<256x1152xf32>
    %17 = arith.truncf %16 : vector<256x1152xf32> to vector<256x1152xbf16>
    %c0_32 = arith.constant 0 : index
    %c0_33 = arith.constant 0 : index
    %18 = vector.load %arg3[%c0_32, %c0_33] : memref<1152x128xbf16, #tpu.memory_space<vmem>>, vector<1152x128xbf16>
    %cst = arith.constant dense<0.000000e+00> : vector<256x128xf32>
    %19 = tpu.matmul %17, %18, %cst {dimension_numbers = #tpu.dot_dimension_numbers<[1], [0], [0], [1], [0, 0, 1, 1], [], []>} : vector<256x1152xbf16>, vector<1152x128xbf16>, vector<256x128xf32> -> vector<256x128xf32>
    %20 = vector.shape_cast %19 : vector<256x128xf32> to vector<16x16x128xf32>
    %c0_34 = arith.constant 0 : index
    %c0_35 = arith.constant 0 : index
    %c0_36 = arith.constant 0 : index
    %c0_37 = arith.constant 0 : index
    %21 = vector.load %arg4[%c0_34, %c0_35, %c0_36, %c0_37] : memref<1x16x16x128xf32, #tpu.memory_space<vmem>>, vector<1x16x16x128xf32>
    %22 = vector.shape_cast %21 : vector<1x16x16x128xf32> to vector<16x16x128xf32>
    %23 = vector.shape_cast %20 : vector<16x16x128xf32> to vector<1x16x16x128xf32>
    tpu.vector_store %arg4[%c0_34, %c0_35, %c0_36, %c0_37], %23 {strides = array<i32>} : memref<1x16x16x128xf32, #tpu.memory_space<vmem>>, vector<1x16x16x128xf32>,
    %cst_38 = arith.constant dense<0.000000e+00> : vector<128xf32>
    %24 = vector.multi_reduction <add>, %19, %cst_38 [0] : vector<256x128xf32> to vector<128xf32>
    %25 = vector.shape_cast %24 : vector<128xf32> to vector<1x128xf32>
    %26 = arith.mulf %19, %19 : vector<256x128xf32>
    %cst_39 = arith.constant dense<0.000000e+00> : vector<128xf32>
    %27 = vector.multi_reduction <add>, %26, %cst_39 [0] : vector<256x128xf32> to vector<128xf32>
    %28 = vector.shape_cast %27 : vector<128xf32> to vector<1x128xf32>
    %c0_40 = arith.constant 0 : index
    %c0_41 = arith.constant 0 : index
    %29 = vector.load %arg5[%c0_40, %c0_41] : memref<2x128xf32, #tpu.memory_space<vmem>>, vector<2x128xf32>
    %30 = tpu.concatenate %25, %28 in 0 : vector<1x128xf32>, vector<1x128xf32> -> vector<2x128xf32>
    %31 = arith.addf %29, %30 : vector<2x128xf32>
    %c0_42 = arith.constant 0 : index
    %c0_43 = arith.constant 0 : index
    %32 = vector.load %arg5[%c0_42, %c0_43] : memref<2x128xf32, #tpu.memory_space<vmem>>, vector<2x128xf32>
    tpu.vector_store %arg5[%c0_42, %c0_43], %31 {strides = array<i32>} : memref<2x128xf32, #tpu.memory_space<vmem>>, vector<2x128xf32>,
    return
  }
  func.func @transform_0(%arg0: i32) -> (i32, i32, i32, i32) {
    %c0_i32 = arith.constant 0 : i32
    %c0_i32_0 = arith.constant 0 : i32
    %c0_i32_1 = arith.constant 0 : i32
    %c0_i32_2 = arith.constant 0 : i32
    return %arg0, %c0_i32, %c0_i32_0, %c0_i32_1 : i32, i32, i32, i32
  }
  func.func @transform_1(%arg0: i32) -> (i32, i32) {
    %c0_i32 = arith.constant 0 : i32
    %c0_i32_0 = arith.constant 0 : i32
    %c0_i32_1 = arith.constant 0 : i32
    return %c0_i32, %c0_i32_0 : i32, i32
  }
  func.func @transform_2(%arg0: i32) -> (i32, i32) {
    %c0_i32 = arith.constant 0 : i32
    %c0_i32_0 = arith.constant 0 : i32
    %c0_i32_1 = arith.constant 0 : i32
    return %c0_i32, %c0_i32_0 : i32, i32
  }
  func.func @transform_3(%arg0: i32) -> (i32, i32, i32, i32) {
    %c0_i32 = arith.constant 0 : i32
    %c0_i32_0 = arith.constant 0 : i32
    %c0_i32_1 = arith.constant 0 : i32
    %c0_i32_2 = arith.constant 0 : i32
    return %arg0, %c0_i32, %c0_i32_0, %c0_i32_1 : i32, i32, i32, i32
  }
  func.func @transform_4(%arg0: i32) -> (i32, i32) {
    %c0_i32 = arith.constant 0 : i32
    %c0_i32_0 = arith.constant 0 : i32
    %c0_i32_1 = arith.constant 0 : i32
    return %c0_i32, %c0_i32_0 : i32, i32
  }
}

module attributes {stable_mosaic.version = 11 : i64} {
  func.func @_bn_act_kernel(%arg0: i32, %arg1: memref<1x16x16x128xf32, #tpu.memory_space<vmem>>, %arg2: memref<2x128xf32, #tpu.memory_space<vmem>>, %arg3: memref<1x16x16x128xf32, #tpu.memory_space<vmem>>) attributes {dimension_semantics = [#tpu.dimension_semantics<parallel>], iteration_bounds = array<i64: 2>, scalar_prefetch = 0 : i64, scratch_operands = 0 : i64, tpu.core_type = #tpu.core_type<tc>, window_params = [{transform_indices = @transform_0, window_bounds = array<i64: 1, 16, 16, 128>}, {pipeline_mode = #tpu.pipeline_mode<synchronous>, transform_indices = @transform_1, window_bounds = array<i64: 2, 128>}, {transform_indices = @transform_2, window_bounds = array<i64: 1, 16, 16, 128>}]} {
    %c0 = arith.constant 0 : index
    %c0_0 = arith.constant 0 : index
    %c0_1 = arith.constant 0 : index
    %c0_2 = arith.constant 0 : index
    %0 = vector.load %arg1[%c0, %c0_0, %c0_1, %c0_2] : memref<1x16x16x128xf32, #tpu.memory_space<vmem>>, vector<1x16x16x128xf32>
    %1 = vector.shape_cast %0 : vector<1x16x16x128xf32> to vector<16x16x128xf32>
    %c0_3 = arith.constant 0 : index
    %c0_4 = arith.constant 0 : index
    %2 = vector.load %arg2[%c0_3, %c0_4] : memref<2x128xf32, #tpu.memory_space<vmem>>, vector<1x128xf32>
    %3 = vector.shape_cast %2 : vector<1x128xf32> to vector<128xf32>
    %4 = vector.shape_cast %3 : vector<128xf32> to vector<1x1x128xf32>
    %5 = vector.broadcast %4 : vector<1x1x128xf32> to vector<16x16x128xf32>
    %6 = arith.mulf %1, %5 : vector<16x16x128xf32>
    %c1 = arith.constant 1 : index
    %c0_5 = arith.constant 0 : index
    %7 = vector.load %arg2[%c1, %c0_5] : memref<2x128xf32, #tpu.memory_space<vmem>>, vector<1x128xf32>
    %8 = vector.shape_cast %7 : vector<1x128xf32> to vector<128xf32>
    %9 = vector.shape_cast %8 : vector<128xf32> to vector<1x1x128xf32>
    %10 = vector.broadcast %9 : vector<1x1x128xf32> to vector<16x16x128xf32>
    %11 = arith.addf %6, %10 : vector<16x16x128xf32>
    %cst = arith.constant 0.000000e+00 : f32
    %12 = vector.broadcast %cst : f32 to vector<16x16x128xf32>
    %13 = arith.cmpf oge, %11, %12 : vector<16x16x128xf32>
    %cst_6 = arith.constant 1.000000e-01 : f32
    %14 = vector.broadcast %cst_6 : f32 to vector<16x16x128xf32>
    %15 = arith.mulf %14, %11 : vector<16x16x128xf32>
    %16 = arith.select %13, %11, %15 : vector<16x16x128xi1>, vector<16x16x128xf32>
    %c0_7 = arith.constant 0 : index
    %c0_8 = arith.constant 0 : index
    %c0_9 = arith.constant 0 : index
    %c0_10 = arith.constant 0 : index
    %17 = vector.load %arg3[%c0_7, %c0_8, %c0_9, %c0_10] : memref<1x16x16x128xf32, #tpu.memory_space<vmem>>, vector<1x16x16x128xf32>
    %18 = vector.shape_cast %17 : vector<1x16x16x128xf32> to vector<16x16x128xf32>
    %19 = vector.shape_cast %16 : vector<16x16x128xf32> to vector<1x16x16x128xf32>
    tpu.vector_store %arg3[%c0_7, %c0_8, %c0_9, %c0_10], %19 {strides = array<i32>} : memref<1x16x16x128xf32, #tpu.memory_space<vmem>>, vector<1x16x16x128xf32>,
    return
  }
  func.func @transform_0(%arg0: i32) -> (i32, i32, i32, i32) {
    %c0_i32 = arith.constant 0 : i32
    %c0_i32_0 = arith.constant 0 : i32
    %c0_i32_1 = arith.constant 0 : i32
    %c0_i32_2 = arith.constant 0 : i32
    return %arg0, %c0_i32, %c0_i32_0, %c0_i32_1 : i32, i32, i32, i32
  }
  func.func @transform_1(%arg0: i32) -> (i32, i32) {
    %c0_i32 = arith.constant 0 : i32
    %c0_i32_0 = arith.constant 0 : i32
    %c0_i32_1 = arith.constant 0 : i32
    return %c0_i32, %c0_i32_0 : i32, i32
  }
  func.func @transform_2(%arg0: i32) -> (i32, i32, i32, i32) {
    %c0_i32 = arith.constant 0 : i32
    %c0_i32_0 = arith.constant 0 : i32
    %c0_i32_1 = arith.constant 0 : i32
    %c0_i32_2 = arith.constant 0 : i32
    return %arg0, %c0_i32, %c0_i32_0, %c0_i32_1 : i32, i32, i32, i32
  }
}

module attributes {stable_mosaic.version = 11 : i64} {
  func.func @_conv_bn_stats_kernel(%arg0: i32, %arg1: memref<1x16x16x128xf32, #tpu.memory_space<vmem>>, %arg2: memref<2x128xf32, #tpu.memory_space<vmem>>, %arg3: memref<1152x128xbf16, #tpu.memory_space<vmem>>, %arg4: memref<1x16x16x128xf32, #tpu.memory_space<vmem>>, %arg5: memref<2x128xf32, #tpu.memory_space<vmem>>, %arg6: memref<18x18x128xf32, #tpu.memory_space<vmem>>) attributes {dimension_semantics = [#tpu.dimension_semantics<arbitrary>], iteration_bounds = array<i64: 2>, scalar_prefetch = 0 : i64, scratch_operands = 1 : i64, tpu.core_type = #tpu.core_type<tc>, window_params = [{transform_indices = @transform_0, window_bounds = array<i64: 1, 16, 16, 128>}, {pipeline_mode = #tpu.pipeline_mode<synchronous>, transform_indices = @transform_1, window_bounds = array<i64: 2, 128>}, {pipeline_mode = #tpu.pipeline_mode<synchronous>, transform_indices = @transform_2, window_bounds = array<i64: 1152, 128>}, {transform_indices = @transform_3, window_bounds = array<i64: 1, 16, 16, 128>}, {pipeline_mode = #tpu.pipeline_mode<synchronous>, transform_indices = @transform_4, window_bounds = array<i64: 2, 128>}]} {
    %c0_i32 = arith.constant 0 : i32
    %0 = arith.cmpi eq, %arg0, %c0_i32 : i32
    %1 = arith.extui %0 : i1 to i32
    %c0_i32_0 = arith.constant 0 : i32
    %2 = arith.cmpi ne, %1, %c0_i32_0 : i32
    scf.if %2 {
      %cst_50 = arith.constant 0.000000e+00 : f32
      %48 = vector.broadcast %cst_50 : f32 to vector<18x18x128xf32>
      %c0_51 = arith.constant 0 : index
      %c0_52 = arith.constant 0 : index
      %c0_53 = arith.constant 0 : index
      %49 = vector.load %arg6[%c0_51, %c0_52, %c0_53] : memref<18x18x128xf32, #tpu.memory_space<vmem>>, vector<18x18x128xf32>
      tpu.vector_store %arg6[%c0_51, %c0_52, %c0_53], %48 {strides = array<i32>} : memref<18x18x128xf32, #tpu.memory_space<vmem>>, vector<18x18x128xf32>,
      %cst_54 = arith.constant 0.000000e+00 : f32
      %50 = vector.broadcast %cst_54 : f32 to vector<2x128xf32>
      %c0_55 = arith.constant 0 : index
      %c0_56 = arith.constant 0 : index
      %51 = vector.load %arg5[%c0_55, %c0_56] : memref<2x128xf32, #tpu.memory_space<vmem>>, vector<2x128xf32>
      tpu.vector_store %arg5[%c0_55, %c0_56], %50 {strides = array<i32>} : memref<2x128xf32, #tpu.memory_space<vmem>>, vector<2x128xf32>,
    } else {
    }
    %c0 = arith.constant 0 : index
    %c0_1 = arith.constant 0 : index
    %c0_2 = arith.constant 0 : index
    %c0_3 = arith.constant 0 : index
    %3 = vector.load %arg1[%c0, %c0_1, %c0_2, %c0_3] : memref<1x16x16x128xf32, #tpu.memory_space<vmem>>, vector<1x16x16x128xf32>
    %4 = vector.shape_cast %3 : vector<1x16x16x128xf32> to vector<16x16x128xf32>
    %c0_4 = arith.constant 0 : index
    %c0_5 = arith.constant 0 : index
    %5 = vector.load %arg2[%c0_4, %c0_5] : memref<2x128xf32, #tpu.memory_space<vmem>>, vector<1x128xf32>
    %6 = vector.shape_cast %5 : vector<1x128xf32> to vector<128xf32>
    %7 = vector.shape_cast %6 : vector<128xf32> to vector<1x1x128xf32>
    %8 = vector.broadcast %7 : vector<1x1x128xf32> to vector<16x16x128xf32>
    %9 = arith.mulf %4, %8 : vector<16x16x128xf32>
    %c1 = arith.constant 1 : index
    %c0_6 = arith.constant 0 : index
    %10 = vector.load %arg2[%c1, %c0_6] : memref<2x128xf32, #tpu.memory_space<vmem>>, vector<1x128xf32>
    %11 = vector.shape_cast %10 : vector<1x128xf32> to vector<128xf32>
    %12 = vector.shape_cast %11 : vector<128xf32> to vector<1x1x128xf32>
    %13 = vector.broadcast %12 : vector<1x1x128xf32> to vector<16x16x128xf32>
    %14 = arith.addf %9, %13 : vector<16x16x128xf32>
    %cst = arith.constant 0.000000e+00 : f32
    %15 = vector.broadcast %cst : f32 to vector<16x16x128xf32>
    %16 = arith.cmpf oge, %14, %15 : vector<16x16x128xf32>
    %cst_7 = arith.constant 1.000000e-01 : f32
    %17 = vector.broadcast %cst_7 : f32 to vector<16x16x128xf32>
    %18 = arith.mulf %17, %14 : vector<16x16x128xf32>
    %19 = arith.select %16, %14, %18 : vector<16x16x128xi1>, vector<16x16x128xf32>
    %c1_8 = arith.constant 1 : index
    %c1_9 = arith.constant 1 : index
    %c0_10 = arith.constant 0 : index
    %20 = vector.load %arg6[%c1_8, %c1_9, %c0_10] : memref<18x18x128xf32, #tpu.memory_space<vmem>>, vector<16x16x128xf32>
    tpu.vector_store %arg6[%c1_8, %c1_9, %c0_10], %19 {strides = array<i32>} : memref<18x18x128xf32, #tpu.memory_space<vmem>>, vector<16x16x128xf32>,
    %c0_11 = arith.constant 0 : index
    %c0_12 = arith.constant 0 : index
    %c0_13 = arith.constant 0 : index
    %21 = vector.load %arg6[%c0_11, %c0_12, %c0_13] : memref<18x18x128xf32, #tpu.memory_space<vmem>>, vector<16x16x128xf32>
    %c0_14 = arith.constant 0 : index
    %c1_15 = arith.constant 1 : index
    %c0_16 = arith.constant 0 : index
    %22 = vector.load %arg6[%c0_14, %c1_15, %c0_16] : memref<18x18x128xf32, #tpu.memory_space<vmem>>, vector<16x16x128xf32>
    %c0_17 = arith.constant 0 : index
    %c2 = arith.constant 2 : index
    %c0_18 = arith.constant 0 : index
    %23 = vector.load %arg6[%c0_17, %c2, %c0_18] : memref<18x18x128xf32, #tpu.memory_space<vmem>>, vector<16x16x128xf32>
    %c1_19 = arith.constant 1 : index
    %c0_20 = arith.constant 0 : index
    %c0_21 = arith.constant 0 : index
    %24 = vector.load %arg6[%c1_19, %c0_20, %c0_21] : memref<18x18x128xf32, #tpu.memory_space<vmem>>, vector<16x16x128xf32>
    %c1_22 = arith.constant 1 : index
    %c1_23 = arith.constant 1 : index
    %c0_24 = arith.constant 0 : index
    %25 = vector.load %arg6[%c1_22, %c1_23, %c0_24] : memref<18x18x128xf32, #tpu.memory_space<vmem>>, vector<16x16x128xf32>
    %c1_25 = arith.constant 1 : index
    %c2_26 = arith.constant 2 : index
    %c0_27 = arith.constant 0 : index
    %26 = vector.load %arg6[%c1_25, %c2_26, %c0_27] : memref<18x18x128xf32, #tpu.memory_space<vmem>>, vector<16x16x128xf32>
    %c2_28 = arith.constant 2 : index
    %c0_29 = arith.constant 0 : index
    %c0_30 = arith.constant 0 : index
    %27 = vector.load %arg6[%c2_28, %c0_29, %c0_30] : memref<18x18x128xf32, #tpu.memory_space<vmem>>, vector<16x16x128xf32>
    %c2_31 = arith.constant 2 : index
    %c1_32 = arith.constant 1 : index
    %c0_33 = arith.constant 0 : index
    %28 = vector.load %arg6[%c2_31, %c1_32, %c0_33] : memref<18x18x128xf32, #tpu.memory_space<vmem>>, vector<16x16x128xf32>
    %c2_34 = arith.constant 2 : index
    %c2_35 = arith.constant 2 : index
    %c0_36 = arith.constant 0 : index
    %29 = vector.load %arg6[%c2_34, %c2_35, %c0_36] : memref<18x18x128xf32, #tpu.memory_space<vmem>>, vector<16x16x128xf32>
    %30 = tpu.concatenate %21, %22, %23, %24, %25, %26, %27, %28, %29 in 2 : vector<16x16x128xf32>, vector<16x16x128xf32>, vector<16x16x128xf32>, vector<16x16x128xf32>, vector<16x16x128xf32>, vector<16x16x128xf32>, vector<16x16x128xf32>, vector<16x16x128xf32>, vector<16x16x128xf32> -> vector<16x16x1152xf32>
    %31 = vector.shape_cast %30 : vector<16x16x1152xf32> to vector<256x1152xf32>
    %32 = arith.truncf %31 : vector<256x1152xf32> to vector<256x1152xbf16>
    %c0_37 = arith.constant 0 : index
    %c0_38 = arith.constant 0 : index
    %33 = vector.load %arg3[%c0_37, %c0_38] : memref<1152x128xbf16, #tpu.memory_space<vmem>>, vector<1152x128xbf16>
    %cst_39 = arith.constant dense<0.000000e+00> : vector<256x128xf32>
    %34 = tpu.matmul %32, %33, %cst_39 {dimension_numbers = #tpu.dot_dimension_numbers<[1], [0], [0], [1], [0, 0, 1, 1], [], []>} : vector<256x1152xbf16>, vector<1152x128xbf16>, vector<256x128xf32> -> vector<256x128xf32>
    %35 = vector.shape_cast %34 : vector<256x128xf32> to vector<16x16x128xf32>
    %c0_40 = arith.constant 0 : index
    %c0_41 = arith.constant 0 : index
    %c0_42 = arith.constant 0 : index
    %c0_43 = arith.constant 0 : index
    %36 = vector.load %arg4[%c0_40, %c0_41, %c0_42, %c0_43] : memref<1x16x16x128xf32, #tpu.memory_space<vmem>>, vector<1x16x16x128xf32>
    %37 = vector.shape_cast %36 : vector<1x16x16x128xf32> to vector<16x16x128xf32>
    %38 = vector.shape_cast %35 : vector<16x16x128xf32> to vector<1x16x16x128xf32>
    tpu.vector_store %arg4[%c0_40, %c0_41, %c0_42, %c0_43], %38 {strides = array<i32>} : memref<1x16x16x128xf32, #tpu.memory_space<vmem>>, vector<1x16x16x128xf32>,
    %cst_44 = arith.constant dense<0.000000e+00> : vector<128xf32>
    %39 = vector.multi_reduction <add>, %34, %cst_44 [0] : vector<256x128xf32> to vector<128xf32>
    %40 = vector.shape_cast %39 : vector<128xf32> to vector<1x128xf32>
    %41 = arith.mulf %34, %34 : vector<256x128xf32>
    %cst_45 = arith.constant dense<0.000000e+00> : vector<128xf32>
    %42 = vector.multi_reduction <add>, %41, %cst_45 [0] : vector<256x128xf32> to vector<128xf32>
    %43 = vector.shape_cast %42 : vector<128xf32> to vector<1x128xf32>
    %c0_46 = arith.constant 0 : index
    %c0_47 = arith.constant 0 : index
    %44 = vector.load %arg5[%c0_46, %c0_47] : memref<2x128xf32, #tpu.memory_space<vmem>>, vector<2x128xf32>
    %45 = tpu.concatenate %40, %43 in 0 : vector<1x128xf32>, vector<1x128xf32> -> vector<2x128xf32>
    %46 = arith.addf %44, %45 : vector<2x128xf32>
    %c0_48 = arith.constant 0 : index
    %c0_49 = arith.constant 0 : index
    %47 = vector.load %arg5[%c0_48, %c0_49] : memref<2x128xf32, #tpu.memory_space<vmem>>, vector<2x128xf32>
    tpu.vector_store %arg5[%c0_48, %c0_49], %46 {strides = array<i32>} : memref<2x128xf32, #tpu.memory_space<vmem>>, vector<2x128xf32>,
    return
  }
  func.func @transform_0(%arg0: i32) -> (i32, i32, i32, i32) {
    %c0_i32 = arith.constant 0 : i32
    %c0_i32_0 = arith.constant 0 : i32
    %c0_i32_1 = arith.constant 0 : i32
    %c0_i32_2 = arith.constant 0 : i32
    return %arg0, %c0_i32, %c0_i32_0, %c0_i32_1 : i32, i32, i32, i32
  }
  func.func @transform_1(%arg0: i32) -> (i32, i32) {
    %c0_i32 = arith.constant 0 : i32
    %c0_i32_0 = arith.constant 0 : i32
    %c0_i32_1 = arith.constant 0 : i32
    return %c0_i32, %c0_i32_0 : i32, i32
  }
  func.func @transform_2(%arg0: i32) -> (i32, i32) {
    %c0_i32 = arith.constant 0 : i32
    %c0_i32_0 = arith.constant 0 : i32
    %c0_i32_1 = arith.constant 0 : i32
    return %c0_i32, %c0_i32_0 : i32, i32
  }
  func.func @transform_3(%arg0: i32) -> (i32, i32, i32, i32) {
    %c0_i32 = arith.constant 0 : i32
    %c0_i32_0 = arith.constant 0 : i32
    %c0_i32_1 = arith.constant 0 : i32
    %c0_i32_2 = arith.constant 0 : i32
    return %arg0, %c0_i32, %c0_i32_0, %c0_i32_1 : i32, i32, i32, i32
  }
  func.func @transform_4(%arg0: i32) -> (i32, i32) {
    %c0_i32 = arith.constant 0 : i32
    %c0_i32_0 = arith.constant 0 : i32
    %c0_i32_1 = arith.constant 0 : i32
    return %c0_i32, %c0_i32_0 : i32, i32
  }
}

</mosaic_0001>

<llo_original>
// kernel: multiconvblock_forward.5
$region0: #{multiconvblock_forward.5}
  #allocation0 [shape = 'u32[]', space=smem, size = 0x4, offset = 0x4, fixed_abs, tag = 'smem constant byte address 0x4 - core index']
  #allocation1 [shape = 'u32[144,128]{1,0:T(1,128)}', space=vmem, size = 0x12000, scoped, tag = 'internal scratch']
  %s0 = inlined_call_operand.vmem [shape: f32[2,16,16,128], index: 0, kind: input, shape index: {}]
  %s1 = inlined_call_operand.vmem [shape: f32[2,128], index: 1, kind: input, shape index: {}]
  %s2 = inlined_call_operand.vmem [shape: f32[2,16,16,128], index: 2, kind: output, shape index: {}]
  %s3 = sld [smem:[#allocation0]]
  $region41: #{multiconvblock_forward.5} parent=0
    _
  %s5 = ssub.s32 1, %s3
  %s6 = scalar_select 0, %s5, %s3
  loop: start=0, step=1, limit=4
  $region2: #{multiconvblock_forward.5} parent=0 // loop_pre_header
    _
  $region3: #{multiconvblock_forward.5} parent=0 // loop_header
    %s8 = sphi 0, %s12
    %p9 = scmp.ge.s32.totalorder %s8, 4
    %s18 = sphi 0, %s20
    %s21 = sphi 0, %s18
    %s22 = sphi 0, %s21
    %s38 = sphi 0, %s22
    %s42 = sphi 0, %s42
    %s44 = sphi 0, %s42
    %s45 = sphi 0, %s44
    %s59 = sphi 0, %s45
    %s65 = sphi 0, %s67
    %s68 = sphi 0, %s65
    %s69 = sphi 0, %s68
    %s85 = sphi 0, %s69
  $region4: #{multiconvblock_forward.5} parent=0 // loop_header_branch
    %11 = sbr.rel (%p9) target = $region8
  $region5: #{multiconvblock_forward.5} parent=0 // loop_body
    %s13 = ssub.s32 %s8, 1
    %s14 = ssub.s32 %s8, 2
    %s15 = sadd.s32 %s8, 1
    %s16 = ssub.s32 %s8, %s15
    %p17 = scmp.eq.s32.totalorder %s16, 0
    %s19 = sadd.s32 %s18, 1
    %s20 = scalar_select %p17, %s18, %s19
    %p23 = pneg %p17
    %p24 = scmp.eq.s32.totalorder %s8, 1
    %p25 = por %p23, %p24
    %p26 = scmp.ne.s32.totalorder %s18, %s21
    %p27 = scmp.eq.s32.totalorder %s8, 0
    %p28 = por %p26, %p27
    %p29 = scmp.ne.s32.totalorder %s18, %s21
    %p30 = scmp.eq.s32.totalorder %s13, 1
    %p31 = por %p29, %p30
    %p32 = scmp.ne.s32.totalorder %s21, %s22
    %p33 = scmp.eq.s32.totalorder %s13, 0
    %p34 = por %p32, %p33
    %p35 = scmp.ne.s32.totalorder %s21, %s22
    %p36 = scmp.eq.s32.totalorder %s14, 1
    %p37 = por %p35, %p36
    %p39 = scmp.ne.s32.totalorder %s22, %s38
    %p40 = scmp.eq.s32.totalorder %s14, 0
    %p41 = por %p39, %p40
    %s43 = sadd.s32 %s42, 1
    %p46 = scmp.eq.s32.totalorder %s8, 1
    %p47 = scmp.ne.s32.totalorder %s42, %s44
    %p48 = scmp.eq.s32.totalorder %s8, 0
    %p49 = por %p47, %p48
    %p50 = scmp.ne.s32.totalorder %s42, %s44
    %p51 = scmp.eq.s32.totalorder %s13, 1
    %p52 = por %p50, %p51
    %p53 = scmp.ne.s32.totalorder %s44, %s45
    %p54 = scmp.eq.s32.totalorder %s13, 0
    %p55 = por %p53, %p54
    %p56 = scmp.ne.s32.totalorder %s44, %s45
    %p57 = scmp.eq.s32.totalorder %s14, 1
    %p58 = por %p56, %p57
    %p60 = scmp.ne.s32.totalorder %s45, %s59
    %p61 = scmp.eq.s32.totalorder %s14, 0
    %p62 = por %p60, %p61
    %s63 = ssub.s32 %s8, %s15
    %p64 = scmp.eq.s32.totalorder %s63, 0
    %s66 = sadd.s32 %s65, 1
    %s67 = scalar_select %p64, %s65, %s66
    %p70 = pneg %p64
    %p71 = scmp.eq.s32.totalorder %s8, 1
    %p72 = por %p70, %p71
    %p73 = scmp.ne.s32.totalorder %s65, %s68
    %p74 = scmp.eq.s32.totalorder %s8, 0
    %p75 = por %p73, %p74
    %p76 = scmp.ne.s32.totalorder %s65, %s68
    %p77 = scmp.eq.s32.totalorder %s13, 1
    %p78 = por %p76, %p77
    %p79 = scmp.ne.s32.totalorder %s68, %s69
    %p80 = scmp.eq.s32.totalorder %s13, 0
    %p81 = por %p79, %p80
    %p82 = scmp.ne.s32.totalorder %s68, %s69
    %p83 = scmp.eq.s32.totalorder %s14, 1
    %p84 = por %p82, %p83
    %p86 = scmp.ne.s32.totalorder %s69, %s85
    %p87 = scmp.eq.s32.totalorder %s14, 0
    %p88 = por %p86, %p87
    %p89 = scmp.le.s32.totalorder 1, %s8
    %p90 = scmp.lt.s32.totalorder %s8, 3
    %p91 = pnand %p89, %p90
    %p92 = pneg %p91
    // Predicated region
    $region9: #{multiconvblock_forward.5} parent=5 // pred_check
      _
    $region10: #{multiconvblock_forward.5} parent=5 // pred_check_branch
      %94 = sbr.rel (%p91) target = $region12
    $region11: #{multiconvblock_forward.5} parent=5 // pred_region
      %s95 = ssub.s32 %s8, 1
      // Predicated region
      $region13: #{multiconvblock_forward.5} parent=11 // pred_check
        %p96 = pneg %p55
      $region14: #{multiconvblock_forward.5} parent=11 // pred_check_branch
        %98 = sbr.rel (%p96) target = $region16
      $region15: #{multiconvblock_forward.5} parent=11 // pred_region
        _
      $region16: #{multiconvblock_forward.5} parent=11 // pred_fallthru
        _
    $region12: #{multiconvblock_forward.5} parent=5 // pred_fallthru
      _
    %p99 = scmp.lt.s32.totalorder %s8, 2
    // Predicated region
    $region17: #{multiconvblock_forward.5} parent=5 // pred_check
      %p100 = pneg %p99
    $region18: #{multiconvblock_forward.5} parent=5 // pred_check_branch
      %102 = sbr.rel (%p100) target = $region20
    $region19: #{multiconvblock_forward.5} parent=5 // pred_region
      // Predicated region
      $region21: #{multiconvblock_forward.5} parent=19 // pred_check
        %p103 = pneg %p28
      $region22: #{multiconvblock_forward.5} parent=19 // pred_check_branch
        %105 = sbr.rel (%p103) target = $region24
      $region23: #{multiconvblock_forward.5} parent=19 // pred_region
        %p106 = scmp.lt.s32.totalorder %s8, 1
        %s107 = scalar_select %p106, %s8, 1
        %s108 = smul.addr %s107, 32
        %s109 = smul.addr %s108, 8
        %s110 = scalar_lea.vmem %s0, %s109
      $region24: #{multiconvblock_forward.5} parent=19 // pred_fallthru
        _
    $region20: #{multiconvblock_forward.5} parent=5 // pred_fallthru
      _
    %p111 = scmp.le.s32.totalorder 1, %s8
    %p112 = scmp.lt.s32.totalorder %s8, 3
    %p113 = pnand %p111, %p112
    %p114 = pneg %p113
    // Predicated region
    $region25: #{multiconvblock_forward.5} parent=5 // pred_check
      _
    $region26: #{multiconvblock_forward.5} parent=5 // pred_check_branch
      %116 = sbr.rel (%p113) target = $region28
    $region27: #{multiconvblock_forward.5} parent=5 // pred_region
      %s117 = ssub.s32 %s8, 1
      %p118 = scmp.lt.s32.totalorder %s13, 1
      %s119 = scalar_select %p118, %s13, 1
      %s120 = smul.addr %s119, 32
      %s121 = smul.addr %s120, 8
      %s122 = scalar_lea.vmem %s0, %s121
      %p123 = pneg %p34
      %p124 = pneg %p31
      %p125 = pneg %p55
      %p126 = pneg %p52
      %p127 = pneg %p81
      %p128 = pneg %p78
      %p129 = scmp.lt.s32.totalorder %s13, 1
      %s130 = scalar_select %p129, %s13, 1
      %s131 = smul.addr %s130, 32
      %s132 = smul.addr %s131, 8
      %s133 = scalar_lea.vmem %s2, %s132
      %p134 = scmp.lt.s32.totalorder %s13, 1
      %s135 = scalar_select %p134, %s13, 1
      %s136 = smul.addr %s135, 32
      %s137 = smul.addr %s136, 8
      %s138 = scalar_lea.vmem %s0, %s137
      %p139 = scmp.lt.s32.totalorder %s13, 1
      %s140 = scalar_select %p139, %s13, 1
      %s141 = smul.addr %s140, 32
      %s142 = smul.addr %s141, 8
      %s143 = scalar_lea.vmem %s2, %s142
      %v144 = vld [vmem:[%s138] sm:$0xff]
      %v145 = vld [vmem:[%s138 + $0x8] sm:$0xff]
      %v146 = vld [vmem:[%s138 + $0x10] sm:$0xff]
      %v147 = vld [vmem:[%s138 + $0x18] sm:$0xff]
      %v148 = vld [vmem:[%s138 + $0x20] sm:$0xff]
      %v149 = vld [vmem:[%s138 + $0x28] sm:$0xff]
      %v150 = vld [vmem:[%s138 + $0x30] sm:$0xff]
      %v151 = vld [vmem:[%s138 + $0x38] sm:$0xff]
      %v152 = vld [vmem:[%s138 + $0x40] sm:$0xff]
      %v153 = vld [vmem:[%s138 + $0x48] sm:$0xff]
      %v154 = vld [vmem:[%s138 + $0x50] sm:$0xff]
      %v155 = vld [vmem:[%s138 + $0x58] sm:$0xff]
      %v156 = vld [vmem:[%s138 + $0x60] sm:$0xff]
      %v157 = vld [vmem:[%s138 + $0x68] sm:$0xff]
      %v158 = vld [vmem:[%s138 + $0x70] sm:$0xff]
      %v159 = vld [vmem:[%s138 + $0x78] sm:$0xff]
      %v160 = vld [vmem:[%s138 + $0x80] sm:$0xff]
      %v161 = vld [vmem:[%s138 + $0x88] sm:$0xff]
      %v162 = vld [vmem:[%s138 + $0x90] sm:$0xff]
      %v163 = vld [vmem:[%s138 + $0x98] sm:$0xff]
      %v164 = vld [vmem:[%s138 + $0xa0] sm:$0xff]
      %v165 = vld [vmem:[%s138 + $0xa8] sm:$0xff]
      %v166 = vld [vmem:[%s138 + $0xb0] sm:$0xff]
      %v167 = vld [vmem:[%s138 + $0xb8] sm:$0xff]
      %v168 = vld [vmem:[%s138 + $0xc0] sm:$0xff]
      %v169 = vld [vmem:[%s138 + $0xc8] sm:$0xff]
      %v170 = vld [vmem:[%s138 + $0xd0] sm:$0xff]
      %v171 = vld [vmem:[%s138 + $0xd8] sm:$0xff]
      %v172 = vld [vmem:[%s138 + $0xe0] sm:$0xff]
      %v173 = vld [vmem:[%s138 + $0xe8] sm:$0xff]
      %v174 = vld [vmem:[%s138 + $0xf0] sm:$0xff]
      %v175 = vld [vmem:[%s138 + $0xf8] sm:$0xff]
      %v176 = vld [vmem:[%s1] sm:$0x1]
      %v177 = vlaneseq
      %v178 = vshrl.u32 %v177, 7
      %v179 = vsub.s32 0, %v178
      %v180 = vrot.slane %v176, %v179
      %v181 = vmul.f32 %v144, %v180
      %v182 = vmul.f32 %v145, %v180
      %v183 = vmul.f32 %v146, %v180
      %v184 = vmul.f32 %v147, %v180
      %v185 = vmul.f32 %v148, %v180
      %v186 = vmul.f32 %v149, %v180
      %v187 = vmul.f32 %v150, %v180
      %v188 = vmul.f32 %v151, %v180
      %v189 = vmul.f32 %v152, %v180
      %v190 = vmul.f32 %v153, %v180
      %v191 = vmul.f32 %v154, %v180
      %v192 = vmul.f32 %v155, %v180
      %v193 = vmul.f32 %v156, %v180
      %v194 = vmul.f32 %v157, %v180
      %v195 = vmul.f32 %v158, %v180
      %v196 = vmul.f32 %v159, %v180
      %v197 = vmul.f32 %v160, %v180
      %v198 = vmul.f32 %v161, %v180
      %v199 = vmul.f32 %v162, %v180
      %v200 = vmul.f32 %v163, %v180
      %v201 = vmul.f32 %v164, %v180
      %v202 = vmul.f32 %v165, %v180
      %v203 = vmul.f32 %v166, %v180
      %v204 = vmul.f32 %v167, %v180
      %v205 = vmul.f32 %v168, %v180
      %v206 = vmul.f32 %v169, %v180
      %v207 = vmul.f32 %v170, %v180
      %v208 = vmul.f32 %v171, %v180
      %v209 = vmul.f32 %v172, %v180
      %v210 = vmul.f32 %v173, %v180
      %v211 = vmul.f32 %v174, %v180
      %v212 = vmul.f32 %v175, %v180
      %v213 = vld [vmem:[%s1 + $0x1] sm:$0x1]
      %v214 = vlaneseq
      %v215 = vshrl.u32 %v214, 7
      %v216 = vsub.s32 0, %v215
      %v217 = vrot.slane %v213, %v216
      %v218 = vadd.f32 %v181, %v217
      %v219 = vadd.f32 %v182, %v217
      %v220 = vadd.f32 %v183, %v217
      %v221 = vadd.f32 %v184, %v217
      %v222 = vadd.f32 %v185, %v217
      %v223 = vadd.f32 %v186, %v217
      %v224 = vadd.f32 %v187, %v217
      %v225 = vadd.f32 %v188, %v217
      %v226 = vadd.f32 %v189, %v217
      %v227 = vadd.f32 %v190, %v217
      %v228 = vadd.f32 %v191, %v217
      %v229 = vadd.f32 %v192, %v217
      %v230 = vadd.f32 %v193, %v217
      %v231 = vadd.f32 %v194, %v217
      %v232 = vadd.f32 %v195, %v217
      %v233 = vadd.f32 %v196, %v217
      %v234 = vadd.f32 %v197, %v217
      %v235 = vadd.f32 %v198, %v217
      %v236 = vadd.f32 %v199, %v217
      %v237 = vadd.f32 %v200, %v217
      %v238 = vadd.f32 %v201, %v217
      %v239 = vadd.f32 %v202, %v217
      %v240 = vadd.f32 %v203, %v217
      %v241 = vadd.f32 %v204, %v217
      %v242 = vadd.f32 %v205, %v217
      %v243 = vadd.f32 %v206, %v217
      %v244 = vadd.f32 %v207, %v217
      %v245 = vadd.f32 %v208, %v217
      %v246 = vadd.f32 %v209, %v217
      %v247 = vadd.f32 %v210, %v217
      %v248 = vadd.f32 %v211, %v217
      %v249 = vadd.f32 %v212, %v217
      %vm250 = vcmp.ge.f32.partialorder %v218, 0.0
      %vm251 = vcmp.ge.f32.partialorder %v219, 0.0
      %vm252 = vcmp.ge.f32.partialorder %v220, 0.0
      %vm253 = vcmp.ge.f32.partialorder %v221, 0.0
      %vm254 = vcmp.ge.f32.partialorder %v222, 0.0
      %vm255 = vcmp.ge.f32.partialorder %v223, 0.0
      %vm256 = vcmp.ge.f32.partialorder %v224, 0.0
      %vm257 = vcmp.ge.f32.partialorder %v225, 0.0
      %vm258 = vcmp.ge.f32.partialorder %v226, 0.0
      %vm259 = vcmp.ge.f32.partialorder %v227, 0.0
      %vm260 = vcmp.ge.f32.partialorder %v228, 0.0
      %vm261 = vcmp.ge.f32.partialorder %v229, 0.0
      %vm262 = vcmp.ge.f32.partialorder %v230, 0.0
      %vm263 = vcmp.ge.f32.partialorder %v231, 0.0
      %vm264 = vcmp.ge.f32.partialorder %v232, 0.0
      %vm265 = vcmp.ge.f32.partialorder %v233, 0.0
      %vm266 = vcmp.ge.f32.partialorder %v234, 0.0
      %vm267 = vcmp.ge.f32.partialorder %v235, 0.0
      %vm268 = vcmp.ge.f32.partialorder %v236, 0.0
      %vm269 = vcmp.ge.f32.partialorder %v237, 0.0
      %vm270 = vcmp.ge.f32.partialorder %v238, 0.0
      %vm271 = vcmp.ge.f32.partialorder %v239, 0.0
      %vm272 = vcmp.ge.f32.partialorder %v240, 0.0
      %vm273 = vcmp.ge.f32.partialorder %v241, 0.0
      %vm274 = vcmp.ge.f32.partialorder %v242, 0.0
      %vm275 = vcmp.ge.f32.partialorder %v243, 0.0
      %vm276 = vcmp.ge.f32.partialorder %v244, 0.0
      %vm277 = vcmp.ge.f32.partialorder %v245, 0.0
      %vm278 = vcmp.ge.f32.partialorder %v246, 0.0
      %vm279 = vcmp.ge.f32.partialorder %v247, 0.0
      %vm280 = vcmp.ge.f32.partialorder %v248, 0.0
      %vm281 = vcmp.ge.f32.partialorder %v249, 0.0
      %v282 = vmul.f32 %v218, 0.1
      %v283 = vmul.f32 %v219, 0.1
      %v284 = vmul.f32 %v220, 0.1
      %v285 = vmul.f32 %v221, 0.1
      %v286 = vmul.f32 %v222, 0.1
      %v287 = vmul.f32 %v223, 0.1
      %v288 = vmul.f32 %v224, 0.1
      %v289 = vmul.f32 %v225, 0.1
      %v290 = vmul.f32 %v226, 0.1
      %v291 = vmul.f32 %v227, 0.1
      %v292 = vmul.f32 %v228, 0.1
      %v293 = vmul.f32 %v229, 0.1
      %v294 = vmul.f32 %v230, 0.1
      %v295 = vmul.f32 %v231, 0.1
      %v296 = vmul.f32 %v232, 0.1
      %v297 = vmul.f32 %v233, 0.1
      %v298 = vmul.f32 %v234, 0.1
      %v299 = vmul.f32 %v235, 0.1
      %v300 = vmul.f32 %v236, 0.1
      %v301 = vmul.f32 %v237, 0.1
      %v302 = vmul.f32 %v238, 0.1
      %v303 = vmul.f32 %v239, 0.1
      %v304 = vmul.f32 %v240, 0.1
      %v305 = vmul.f32 %v241, 0.1
      %v306 = vmul.f32 %v242, 0.1
      %v307 = vmul.f32 %v243, 0.1
      %v308 = vmul.f32 %v244, 0.1
      %v309 = vmul.f32 %v245, 0.1
      %v310 = vmul.f32 %v246, 0.1
      %v311 = vmul.f32 %v247, 0.1
      %v312 = vmul.f32 %v248, 0.1
      %v313 = vmul.f32 %v249, 0.1
      %v314 = vsel %vm250, %v218, %v282
      %v315 = vsel %vm251, %v219, %v283
      %v316 = vsel %vm252, %v220, %v284
      %v317 = vsel %vm253, %v221, %v285
      %v318 = vsel %vm254, %v222, %v286
      %v319 = vsel %vm255, %v223, %v287
      %v320 = vsel %vm256, %v224, %v288
      %v321 = vsel %vm257, %v225, %v289
      %v322 = vsel %vm258, %v226, %v290
      %v323 = vsel %vm259, %v227, %v291
      %v324 = vsel %vm260, %v228, %v292
      %v325 = vsel %vm261, %v229, %v293
      %v326 = vsel %vm262, %v230, %v294
      %v327 = vsel %vm263, %v231, %v295
      %v328 = vsel %vm264, %v232, %v296
      %v329 = vsel %vm265, %v233, %v297
      %v330 = vsel %vm266, %v234, %v298
      %v331 = vsel %vm267, %v235, %v299
      %v332 = vsel %vm268, %v236, %v300
      %v333 = vsel %vm269, %v237, %v301
      %v334 = vsel %vm270, %v238, %v302
      %v335 = vsel %vm271, %v239, %v303
      %v336 = vsel %vm272, %v240, %v304
      %v337 = vsel %vm273, %v241, %v305
      %v338 = vsel %vm274, %v242, %v306
      %v339 = vsel %vm275, %v243, %v307
      %v340 = vsel %vm276, %v244, %v308
      %v341 = vsel %vm277, %v245, %v309
      %v342 = vsel %vm278, %v246, %v310
      %v343 = vsel %vm279, %v247, %v311
      %v344 = vsel %vm280, %v248, %v312
      %v345 = vsel %vm281, %v249, %v313
      %346 = vst [vmem:[%s143] sm:$0xff] %v314
      %347 = vst [vmem:[%s143 + $0x8] sm:$0xff] %v315
      %348 = vst [vmem:[%s143 + $0x10] sm:$0xff] %v316
      %349 = vst [vmem:[%s143 + $0x18] sm:$0xff] %v317
      %350 = vst [vmem:[%s143 + $0x20] sm:$0xff] %v318
      %351 = vst [vmem:[%s143 + $0x28] sm:$0xff] %v319
      %352 = vst [vmem:[%s143 + $0x30] sm:$0xff] %v320
      %353 = vst [vmem:[%s143 + $0x38] sm:$0xff] %v321
      %354 = vst [vmem:[%s143 + $0x40] sm:$0xff] %v322
      %355 = vst [vmem:[%s143 + $0x48] sm:$0xff] %v323
      %356 = vst [vmem:[%s143 + $0x50] sm:$0xff] %v324
      %357 = vst [vmem:[%s143 + $0x58] sm:$0xff] %v325
      %358 = vst [vmem:[%s143 + $0x60] sm:$0xff] %v326
      %359 = vst [vmem:[%s143 + $0x68] sm:$0xff] %v327
      %360 = vst [vmem:[%s143 + $0x70] sm:$0xff] %v328
      %361 = vst [vmem:[%s143 + $0x78] sm:$0xff] %v329
      %362 = vst [vmem:[%s143 + $0x80] sm:$0xff] %v330
      %363 = vst [vmem:[%s143 + $0x88] sm:$0xff] %v331
      %364 = vst [vmem:[%s143 + $0x90] sm:$0xff] %v332
      %365 = vst [vmem:[%s143 + $0x98] sm:$0xff] %v333
      %366 = vst [vmem:[%s143 + $0xa0] sm:$0xff] %v334
      %367 = vst [vmem:[%s143 + $0xa8] sm:$0xff] %v335
      %368 = vst [vmem:[%s143 + $0xb0] sm:$0xff] %v336
      %369 = vst [vmem:[%s143 + $0xb8] sm:$0xff] %v337
      %370 = vst [vmem:[%s143 + $0xc0] sm:$0xff] %v338
      %371 = vst [vmem:[%s143 + $0xc8] sm:$0xff] %v339
      %372 = vst [vmem:[%s143 + $0xd0] sm:$0xff] %v340
      %373 = vst [vmem:[%s143 + $0xd8] sm:$0xff] %v341
      %374 = vst [vmem:[%s143 + $0xe0] sm:$0xff] %v342
      %375 = vst [vmem:[%s143 + $0xe8] sm:$0xff] %v343
      %376 = vst [vmem:[%s143 + $0xf0] sm:$0xff] %v344
      %377 = vst [vmem:[%s143 + $0xf8] sm:$0xff] %v345
      %p378 = scmp.lt.s32.totalorder %s13, 1
      %s379 = scalar_select %p378, %s13, 1
      %s380 = smul.addr %s379, 32
      %s381 = smul.addr %s380, 8
      %s382 = scalar_lea.vmem %s2, %s381
      // Predicated region
      $region29: #{multiconvblock_forward.5} parent=27 // pred_check
        %p383 = pneg %p78
      $region30: #{multiconvblock_forward.5} parent=27 // pred_check_branch
        %385 = sbr.rel (%p383) target = $region32
      $region31: #{multiconvblock_forward.5} parent=27 // pred_region
        _
      $region32: #{multiconvblock_forward.5} parent=27 // pred_fallthru
        _
    $region28: #{multiconvblock_forward.5} parent=5 // pred_fallthru
      _
    %p386 = scmp.le.s32.totalorder 2, %s8
    // Predicated region
    $region33: #{multiconvblock_forward.5} parent=5 // pred_check
      %p387 = pneg %p386
    $region34: #{multiconvblock_forward.5} parent=5 // pred_check_branch
      %389 = sbr.rel (%p387) target = $region36
    $region35: #{multiconvblock_forward.5} parent=5 // pred_region
      %s390 = ssub.s32 %s8, 2
      // Predicated region
      $region37: #{multiconvblock_forward.5} parent=35 // pred_check
        %p391 = pneg %p84
      $region38: #{multiconvblock_forward.5} parent=35 // pred_check_branch
        %393 = sbr.rel (%p391) target = $region40
      $region39: #{multiconvblock_forward.5} parent=35 // pred_region
        %p394 = scmp.lt.s32.totalorder %s14, 1
        %s395 = scalar_select %p394, %s14, 1
        %s396 = smul.addr %s395, 32
        %s397 = smul.addr %s396, 8
        %s398 = scalar_lea.vmem %s2, %s397
      $region40: #{multiconvblock_forward.5} parent=35 // pred_fallthru
        _
    $region36: #{multiconvblock_forward.5} parent=5 // pred_fallthru
      _
  $region6: #{multiconvblock_forward.5} parent=0 // loop_footer
    %s12 = sadd.s32 1, %s8
  $region7: #{multiconvblock_forward.5} parent=0 // loop_footer_branch
    %7 = sbr.rel target = $region3
  $region8: #{multiconvblock_forward.5} parent=0 // loop_exit
    _

// kernel: multiconvblock_forward.3
$region0: #{multiconvblock_forward.3}
  #allocation0 [shape = 'u32[]', space=smem, size = 0x4, offset = 0x4, fixed_abs, tag = 'smem constant byte address 0x4 - core index']
  #allocation1 [shape = 'u32[144,128]{1,0:T(1,128)}', space=vmem, size = 0x12000, scoped, tag = 'internal scratch']
  #allocation2 [shape = 'f32[18,18,128]{2,1,0:T(8,128)}', space=vmem, size = 0x36000, scoped, tag = 'scratch operand']
  %s0 = inlined_call_operand.vmem [shape: f32[2,16,16,4], index: 0, kind: input, shape index: {}]
  %s1 = inlined_call_operand.vmem [shape: f32[2,4], index: 1, kind: input, shape index: {}]
  %s2 = inlined_call_operand.vmem [shape: bf16[1152,128], index: 2, kind: input, shape index: {}]
  %s3 = inlined_call_operand.vmem [shape: f32[2,16,16,128], index: 3, kind: output, shape index: {0}]
  %s4 = inlined_call_operand.vmem [shape: f32[2,128], index: 4, kind: output, shape index: {1}]
  %5 = xla_tuple %s3, %s4
  %s6 = sld [smem:[#allocation0]]
  $region57: #{multiconvblock_forward.3} parent=0
    _
  %s8 = ssub.s32 1, %s6
  %s9 = scalar_select 0, %s8, %s6
  loop: start=0, step=1, limit=4
  $region2: #{multiconvblock_forward.3} parent=0 // loop_pre_header
    _
  $region3: #{multiconvblock_forward.3} parent=0 // loop_header
    %s11 = sphi 0, %s15
    %p12 = scmp.ge.s32.totalorder %s11, 4
    %s21 = sphi 0, %s23
    %s24 = sphi 0, %s21
    %s25 = sphi 0, %s24
    %s41 = sphi 0, %s25
    %s45 = sphi 0, %s45
    %s47 = sphi 0, %s45
    %s48 = sphi 0, %s47
    %s62 = sphi 0, %s48
    %s66 = sphi 0, %s66
    %s68 = sphi 0, %s66
    %s69 = sphi 0, %s68
    %s83 = sphi 0, %s69
    %s89 = sphi 0, %s91
    %s92 = sphi 0, %s89
    %s93 = sphi 0, %s92
    %s109 = sphi 0, %s93
    %s113 = sphi 0, %s113
    %s115 = sphi 0, %s113
    %s116 = sphi 0, %s115
    %s130 = sphi 0, %s116
  $region4: #{multiconvblock_forward.3} parent=0 // loop_header_branch
    %14 = sbr.rel (%p12) target = $region8
  $region5: #{multiconvblock_forward.3} parent=0 // loop_body
    %s16 = ssub.s32 %s11, 1
    %s17 = ssub.s32 %s11, 2
    %s18 = sadd.s32 %s11, 1
    %s19 = ssub.s32 %s11, %s18
    %p20 = scmp.eq.s32.totalorder %s19, 0
    %s22 = sadd.s32 %s21, 1
    %s23 = scalar_select %p20, %s21, %s22
    %p26 = pneg %p20
    %p27 = scmp.eq.s32.totalorder %s11, 1
    %p28 = por %p26, %p27
    %p29 = scmp.ne.s32.totalorder %s21, %s24
    %p30 = scmp.eq.s32.totalorder %s11, 0
    %p31 = por %p29, %p30
    %p32 = scmp.ne.s32.totalorder %s21, %s24
    %p33 = scmp.eq.s32.totalorder %s16, 1
    %p34 = por %p32, %p33
    %p35 = scmp.ne.s32.totalorder %s24, %s25
    %p36 = scmp.eq.s32.totalorder %s16, 0
    %p37 = por %p35, %p36
    %p38 = scmp.ne.s32.totalorder %s24, %s25
    %p39 = scmp.eq.s32.totalorder %s17, 1
    %p40 = por %p38, %p39
    %p42 = scmp.ne.s32.totalorder %s25, %s41
    %p43 = scmp.eq.s32.totalorder %s17, 0
    %p44 = por %p42, %p43
    %s46 = sadd.s32 %s45, 1
    %p49 = scmp.eq.s32.totalorder %s11, 1
    %p50 = scmp.ne.s32.totalorder %s45, %s47
    %p51 = scmp.eq.s32.totalorder %s11, 0
    %p52 = por %p50, %p51
    %p53 = scmp.ne.s32.totalorder %s45, %s47
    %p54 = scmp.eq.s32.totalorder %s16, 1
    %p55 = por %p53, %p54
    %p56 = scmp.ne.s32.totalorder %s47, %s48
    %p57 = scmp.eq.s32.totalorder %s16, 0
    %p58 = por %p56, %p57
    %p59 = scmp.ne.s32.totalorder %s47, %s48
    %p60 = scmp.eq.s32.totalorder %s17, 1
    %p61 = por %p59, %p60
    %p63 = scmp.ne.s32.totalorder %s48, %s62
    %p64 = scmp.eq.s32.totalorder %s17, 0
    %p65 = por %p63, %p64
    %s67 = sadd.s32 %s66, 1
    %p70 = scmp.eq.s32.totalorder %s11, 1
    %p71 = scmp.ne.s32.totalorder %s66, %s68
    %p72 = scmp.eq.s32.totalorder %s11, 0
    %p73 = por %p71, %p72
    %p74 = scmp.ne.s32.totalorder %s66, %s68
    %p75 = scmp.eq.s32.totalorder %s16, 1
    %p76 = por %p74, %p75
    %p77 = scmp.ne.s32.totalorder %s68, %s69
    %p78 = scmp.eq.s32.totalorder %s16, 0
    %p79 = por %p77, %p78
    %p80 = scmp.ne.s32.totalorder %s68, %s69
    %p81 = scmp.eq.s32.totalorder %s17, 1
    %p82 = por %p80, %p81
    %p84 = scmp.ne.s32.totalorder %s69, %s83
    %p85 = scmp.eq.s32.totalorder %s17, 0
    %p86 = por %p84, %p85
    %s87 = ssub.s32 %s11, %s18
    %p88 = scmp.eq.s32.totalorder %s87, 0
    %s90 = sadd.s32 %s89, 1
    %s91 = scalar_select %p88, %s89, %s90
    %p94 = pneg %p88
    %p95 = scmp.eq.s32.totalorder %s11, 1
    %p96 = por %p94, %p95
    %p97 = scmp.ne.s32.totalorder %s89, %s92
    %p98 = scmp.eq.s32.totalorder %s11, 0
    %p99 = por %p97, %p98
    %p100 = scmp.ne.s32.totalorder %s89, %s92
    %p101 = scmp.eq.s32.totalorder %s16, 1
    %p102 = por %p100, %p101
    %p103 = scmp.ne.s32.totalorder %s92, %s93
    %p104 = scmp.eq.s32.totalorder %s16, 0
    %p105 = por %p103, %p104
    %p106 = scmp.ne.s32.totalorder %s92, %s93
    %p107 = scmp.eq.s32.totalorder %s17, 1
    %p108 = por %p106, %p107
    %p110 = scmp.ne.s32.totalorder %s93, %s109
    %p111 = scmp.eq.s32.totalorder %s17, 0
    %p112 = por %p110, %p111
    %s114 = sadd.s32 %s113, 1
    %p117 = scmp.eq.s32.totalorder %s11, 1
    %p118 = scmp.ne.s32.totalorder %s113, %s115
    %p119 = scmp.eq.s32.totalorder %s11, 0
    %p120 = por %p118, %p119
    %p121 = scmp.ne.s32.totalorder %s113, %s115
    %p122 = scmp.eq.s32.totalorder %s16, 1
    %p123 = por %p121, %p122
    %p124 = scmp.ne.s32.totalorder %s115, %s116
    %p125 = scmp.eq.s32.totalorder %s16, 0
    %p126 = por %p124, %p125
    %p127 = scmp.ne.s32.totalorder %s115, %s116
    %p128 = scmp.eq.s32.totalorder %s17, 1
    %p129 = por %p127, %p128
    %p131 = scmp.ne.s32.totalorder %s116, %s130
    %p132 = scmp.eq.s32.totalorder %s17, 0
    %p133 = por %p131, %p132
    %p134 = scmp.le.s32.totalorder 1, %s11
    %p135 = scmp.lt.s32.totalorder %s11, 3
    %p136 = pnand %p134, %p135
    %p137 = pneg %p136
    // Predicated region
    $region9: #{multiconvblock_forward.3} parent=5 // pred_check
      _
    $region10: #{multiconvblock_forward.3} parent=5 // pred_check_branch
      %139 = sbr.rel (%p136) target = $region12
    $region11: #{multiconvblock_forward.3} parent=5 // pred_region
      %s140 = ssub.s32 %s11, 1
      // Predicated region
      $region13: #{multiconvblock_forward.3} parent=11 // pred_check
        %p141 = pneg %p58
      $region14: #{multiconvblock_forward.3} parent=11 // pred_check_branch
        %143 = sbr.rel (%p141) target = $region16
      $region15: #{multiconvblock_forward.3} parent=11 // pred_region
        _
      $region16: #{multiconvblock_forward.3} parent=11 // pred_fallthru
        _
      // Predicated region
      $region17: #{multiconvblock_forward.3} parent=11 // pred_check
        %p144 = pneg %p79
      $region18: #{multiconvblock_forward.3} parent=11 // pred_check_branch
        %146 = sbr.rel (%p144) target = $region20
      $region19: #{multiconvblock_forward.3} parent=11 // pred_region
        _
      $region20: #{multiconvblock_forward.3} parent=11 // pred_fallthru
        _
    $region12: #{multiconvblock_forward.3} parent=5 // pred_fallthru
      _
    %p147 = scmp.lt.s32.totalorder %s11, 2
    // Predicated region
    $region21: #{multiconvblock_forward.3} parent=5 // pred_check
      %p148 = pneg %p147
    $region22: #{multiconvblock_forward.3} parent=5 // pred_check_branch
      %150 = sbr.rel (%p148) target = $region24
    $region23: #{multiconvblock_forward.3} parent=5 // pred_region
      // Predicated region
      $region25: #{multiconvblock_forward.3} parent=23 // pred_check
        %p151 = pneg %p31
      $region26: #{multiconvblock_forward.3} parent=23 // pred_check_branch
        %153 = sbr.rel (%p151) target = $region28
      $region27: #{multiconvblock_forward.3} parent=23 // pred_region
        %p154 = scmp.lt.s32.totalorder %s11, 1
        %s155 = scalar_select %p154, %s11, 1
        %s156 = smul.addr %s155, 32
        %s157 = smul.addr %s156, 8
        %s158 = scalar_lea.vmem %s0, %s157
      $region28: #{multiconvblock_forward.3} parent=23 // pred_fallthru
        _
    $region24: #{multiconvblock_forward.3} parent=5 // pred_fallthru
      _
    %p159 = scmp.le.s32.totalorder 1, %s11
    %p160 = scmp.lt.s32.totalorder %s11, 3
    %p161 = pnand %p159, %p160
    %p162 = pneg %p161
    // Predicated region
    $region29: #{multiconvblock_forward.3} parent=5 // pred_check
      _
    $region30: #{multiconvblock_forward.3} parent=5 // pred_check_branch
      %164 = sbr.rel (%p161) target = $region32
    $region31: #{multiconvblock_forward.3} parent=5 // pred_region
      %s165 = ssub.s32 %s11, 1
      %p166 = scmp.lt.s32.totalorder %s16, 1
      %s167 = scalar_select %p166, %s16, 1
      %s168 = smul.addr %s167, 32
      %s169 = smul.addr %s168, 8
      %s170 = scalar_lea.vmem %s0, %s169
      %p171 = pneg %p37
      %p172 = pneg %p34
      %p173 = pneg %p58
      %p174 = pneg %p55
      %p175 = pneg %p79
      %p176 = pneg %p76
      %p177 = pneg %p105
      %p178 = pneg %p102
      %p179 = scmp.lt.s32.totalorder %s16, 1
      %s180 = scalar_select %p179, %s16, 1
      %s181 = smul.addr %s180, 32
      %s182 = smul.addr %s181, 8
      %s183 = scalar_lea.vmem %s3, %s182
      %p184 = pneg %p126
      %p185 = pneg %p123
      %p186 = scmp.lt.s32.totalorder %s16, 1
      %s187 = scalar_select %p186, %s16, 1
      %s188 = smul.addr %s187, 32
      %s189 = smul.addr %s188, 8
      %s190 = scalar_lea.vmem %s0, %s189
      %p191 = scmp.lt.s32.totalorder %s16, 1
      %s192 = scalar_select %p191, %s16, 1
      %s193 = smul.addr %s192, 32
      %s194 = smul.addr %s193, 8
      %s195 = scalar_lea.vmem %s3, %s194
      %p197 = scmp.eq.s32.totalorder %s16, 0
      // Predicated region
      $region33: #{multiconvblock_forward.3} parent=31 // pred_check
        %p198 = pneg %p197
      $region34: #{multiconvblock_forward.3} parent=31 // pred_check_branch
        %200 = sbr.rel (%p198) target = $region36
      $region35: #{multiconvblock_forward.3} parent=31 // pred_region
        %201 = vst [vmem:[#allocation2] sm:$0xff] 0.0
        %202 = vst [vmem:[#allocation2 + $0x8] sm:$0xff] 0.0
        %203 = vst [vmem:[#allocation2 + $0x10] sm:$0x3] 0.0
        %204 = vst [vmem:[#allocation2 + $0x18] sm:$0xff] 0.0
        %205 = vst [vmem:[#allocation2 + $0x20] sm:$0xff] 0.0
        %206 = vst [vmem:[#allocation2 + $0x28] sm:$0x3] 0.0
        %207 = vst [vmem:[#allocation2 + $0x30] sm:$0xff] 0.0
        %208 = vst [vmem:[#allocation2 + $0x38] sm:$0xff] 0.0
        %209 = vst [vmem:[#allocation2 + $0x40] sm:$0x3] 0.0
        %210 = vst [vmem:[#allocation2 + $0x48] sm:$0xff] 0.0
        %211 = vst [vmem:[#allocation2 + $0x50] sm:$0xff] 0.0
        %212 = vst [vmem:[#allocation2 + $0x58] sm:$0x3] 0.0
        %213 = vst [vmem:[#allocation2 + $0x60] sm:$0xff] 0.0
        %214 = vst [vmem:[#allocation2 + $0x68] sm:$0xff] 0.0
        %215 = vst [vmem:[#allocation2 + $0x70] sm:$0x3] 0.0
        %216 = vst [vmem:[#allocation2 + $0x78] sm:$0xff] 0.0
        %217 = vst [vmem:[#allocation2 + $0x80] sm:$0xff] 0.0
        %218 = vst [vmem:[#allocation2 + $0x88] sm:$0x3] 0.0
        %219 = vst [vmem:[#allocation2 + $0x90] sm:$0xff] 0.0
        %220 = vst [vmem:[#allocation2 + $0x98] sm:$0xff] 0.0
        %221 = vst [vmem:[#allocation2 + $0xa0] sm:$0x3] 0.0
        %222 = vst [vmem:[#allocation2 + $0xa8] sm:$0xff] 0.0
        %223 = vst [vmem:[#allocation2 + $0xb0] sm:$0xff] 0.0
        %224 = vst [vmem:[#allocation2 + $0xb8] sm:$0x3] 0.0
        %225 = vst [vmem:[#allocation2 + $0xc0] sm:$0xff] 0.0
        %226 = vst [vmem:[#allocation2 + $0xc8] sm:$0xff] 0.0
        %227 = vst [vmem:[#allocation2 + $0xd0] sm:$0x3] 0.0
        %228 = vst [vmem:[#allocation2 + $0xd8] sm:$0xff] 0.0
        %229 = vst [vmem:[#allocation2 + $0xe0] sm:$0xff] 0.0
        %230 = vst [vmem:[#allocation2 + $0xe8] sm:$0x3] 0.0
        %231 = vst [vmem:[#allocation2 + $0xf0] sm:$0xff] 0.0
        %232 = vst [vmem:[#allocation2 + $0xf8] sm:$0xff] 0.0
        %233 = vst [vmem:[#allocation2 + $0x100] sm:$0x3] 0.0
        %234 = vst [vmem:[#allocation2 + $0x108] sm:$0xff] 0.0
        %235 = vst [vmem:[#allocation2 + $0x110] sm:$0xff] 0.0
        %236 = vst [vmem:[#allocation2 + $0x118] sm:$0x3] 0.0
        %237 = vst [vmem:[#allocation2 + $0x120] sm:$0xff] 0.0
        %238 = vst [vmem:[#allocation2 + $0x128] sm:$0xff] 0.0
        %239 = vst [vmem:[#allocation2 + $0x130] sm:$0x3] 0.0
        %240 = vst [vmem:[#allocation2 + $0x138] sm:$0xff] 0.0
        %241 = vst [vmem:[#allocation2 + $0x140] sm:$0xff] 0.0
        %242 = vst [vmem:[#allocation2 + $0x148] sm:$0x3] 0.0
        %243 = vst [vmem:[#allocation2 + $0x150] sm:$0xff] 0.0
        %244 = vst [vmem:[#allocation2 + $0x158] sm:$0xff] 0.0
        %245 = vst [vmem:[#allocation2 + $0x160] sm:$0x3] 0.0
        %246 = vst [vmem:[#allocation2 + $0x168] sm:$0xff] 0.0
        %247 = vst [vmem:[#allocation2 + $0x170] sm:$0xff] 0.0
        %248 = vst [vmem:[#allocation2 + $0x178] sm:$0x3] 0.0
        %249 = vst [vmem:[#allocation2 + $0x180] sm:$0xff] 0.0
        %250 = vst [vmem:[#allocation2 + $0x188] sm:$0xff] 0.0
        %251 = vst [vmem:[#allocation2 + $0x190] sm:$0x3] 0.0
        %252 = vst [vmem:[#allocation2 + $0x198] sm:$0xff] 0.0
        %253 = vst [vmem:[#allocation2 + $0x1a0] sm:$0xff] 0.0
        %254 = vst [vmem:[#allocation2 + $0x1a8] sm:$0x3] 0.0
        %255 = vst [vmem:[%s4] sm:$0x3] 0.0
      $region36: #{multiconvblock_forward.3} parent=31 // pred_fallthru
        _
      %v256 = vld [vmem:[%s190] sm:$0xff]
      %v257 = vld [vmem:[%s190 + $0x8] sm:$0xff]
      %v258 = vld [vmem:[%s190 + $0x10] sm:$0xff]
      %v259 = vld [vmem:[%s190 + $0x18] sm:$0xff]
      %v260 = vld [vmem:[%s190 + $0x20] sm:$0xff]
      %v261 = vld [vmem:[%s190 + $0x28] sm:$0xff]
      %v262 = vld [vmem:[%s190 + $0x30] sm:$0xff]
      %v263 = vld [vmem:[%s190 + $0x38] sm:$0xff]
      %v264 = vld [vmem:[%s190 + $0x40] sm:$0xff]
      %v265 = vld [vmem:[%s190 + $0x48] sm:$0xff]
      %v266 = vld [vmem:[%s190 + $0x50] sm:$0xff]
      %v267 = vld [vmem:[%s190 + $0x58] sm:$0xff]
      %v268 = vld [vmem:[%s190 + $0x60] sm:$0xff]
      %v269 = vld [vmem:[%s190 + $0x68] sm:$0xff]
      %v270 = vld [vmem:[%s190 + $0x70] sm:$0xff]
      %v271 = vld [vmem:[%s190 + $0x78] sm:$0xff]
      %v272 = vld [vmem:[%s190 + $0x80] sm:$0xff]
      %v273 = vld [vmem:[%s190 + $0x88] sm:$0xff]
      %v274 = vld [vmem:[%s190 + $0x90] sm:$0xff]
      %v275 = vld [vmem:[%s190 + $0x98] sm:$0xff]
      %v276 = vld [vmem:[%s190 + $0xa0] sm:$0xff]
      %v277 = vld [vmem:[%s190 + $0xa8] sm:$0xff]
      %v278 = vld [vmem:[%s190 + $0xb0] sm:$0xff]
      %v279 = vld [vmem:[%s190 + $0xb8] sm:$0xff]
      %v280 = vld [vmem:[%s190 + $0xc0] sm:$0xff]
      %v281 = vld [vmem:[%s190 + $0xc8] sm:$0xff]
      %v282 = vld [vmem:[%s190 + $0xd0] sm:$0xff]
      %v283 = vld [vmem:[%s190 + $0xd8] sm:$0xff]
      %v284 = vld [vmem:[%s190 + $0xe0] sm:$0xff]
      %v285 = vld [vmem:[%s190 + $0xe8] sm:$0xff]
      %v286 = vld [vmem:[%s190 + $0xf0] sm:$0xff]
      %v287 = vld [vmem:[%s190 + $0xf8] sm:$0xff]
      %s288 = scalar_lea.vmem [#allocation2], 24
      %vm289 = vcmask 31744
      %290 = vst.msk [vmem:[%s288 + $0x1] sm:$0xff] %vm289, %v256
      %291 = vst.msk [vmem:[%s288 + $0x9] sm:$0xff] %vm289, %v257
      %292 = vst.msk [vmem:[%s288 + $0x19] sm:$0xff] %vm289, %v258
      %293 = vst.msk [vmem:[%s288 + $0x21] sm:$0xff] %vm289, %v259
      %294 = vst.msk [vmem:[%s288 + $0x31] sm:$0xff] %vm289, %v260
      %295 = vst.msk [vmem:[%s288 + $0x39] sm:$0xff] %vm289, %v261
      %296 = vst.msk [vmem:[%s288 + $0x49] sm:$0xff] %vm289, %v262
      %297 = vst.msk [vmem:[%s288 + $0x51] sm:$0xff] %vm289, %v263
      %298 = vst.msk [vmem:[%s288 + $0x61] sm:$0xff] %vm289, %v264
      %299 = vst.msk [vmem:[%s288 + $0x69] sm:$0xff] %vm289, %v265
      %300 = vst.msk [vmem:[%s288 + $0x79] sm:$0xff] %vm289, %v266
      %301 = vst.msk [vmem:[%s288 + $0x81] sm:$0xff] %vm289, %v267
      %302 = vst.msk [vmem:[%s288 + $0x91] sm:$0xff] %vm289, %v268
      %303 = vst.msk [vmem:[%s288 + $0x99] sm:$0xff] %vm289, %v269
      %304 = vst.msk [vmem:[%s288 + $0xa9] sm:$0xff] %vm289, %v270
      %305 = vst.msk [vmem:[%s288 + $0xb1] sm:$0xff] %vm289, %v271
      %306 = vst.msk [vmem:[%s288 + $0xc1] sm:$0xff] %vm289, %v272
      %307 = vst.msk [vmem:[%s288 + $0xc9] sm:$0xff] %vm289, %v273
      %308 = vst.msk [vmem:[%s288 + $0xd9] sm:$0xff] %vm289, %v274
      %309 = vst.msk [vmem:[%s288 + $0xe1] sm:$0xff] %vm289, %v275
      %310 = vst.msk [vmem:[%s288 + $0xf1] sm:$0xff] %vm289, %v276
      %311 = vst.msk [vmem:[%s288 + $0xf9] sm:$0xff] %vm289, %v277
      %312 = vst.msk [vmem:[%s288 + $0x109] sm:$0xff] %vm289, %v278
      %313 = vst.msk [vmem:[%s288 + $0x111] sm:$0xff] %vm289, %v279
      %314 = vst.msk [vmem:[%s288 + $0x121] sm:$0xff] %vm289, %v280
      %315 = vst.msk [vmem:[%s288 + $0x129] sm:$0xff] %vm289, %v281
      %316 = vst.msk [vmem:[%s288 + $0x139] sm:$0xff] %vm289, %v282
      %317 = vst.msk [vmem:[%s288 + $0x141] sm:$0xff] %vm289, %v283
      %318 = vst.msk [vmem:[%s288 + $0x151] sm:$0xff] %vm289, %v284
      %319 = vst.msk [vmem:[%s288 + $0x159] sm:$0xff] %vm289, %v285
      %320 = vst.msk [vmem:[%s288 + $0x169] sm:$0xff] %vm289, %v286
      %321 = vst.msk [vmem:[%s288 + $0x171] sm:$0xff] %vm289, %v287
      %v322 = vld [vmem:[#allocation2] sm:$0xff]
      %v323 = vld [vmem:[#allocation2 + $0x8] sm:$0xff]
      %v324 = vld [vmem:[#allocation2 + $0x18] sm:$0xff]
      %v325 = vld [vmem:[#allocation2 + $0x20] sm:$0xff]
      %v326 = vld [vmem:[#allocation2 + $0x30] sm:$0xff]
      %v327 = vld [vmem:[#allocation2 + $0x38] sm:$0xff]
      %v328 = vld [vmem:[#allocation2 + $0x48] sm:$0xff]
      %v329 = vld [vmem:[#allocation2 + $0x50] sm:$0xff]
      %v330 = vld [vmem:[#allocation2 + $0x60] sm:$0xff]
      %v331 = vld [vmem:[#allocation2 + $0x68] sm:$0xff]
      %v332 = vld [vmem:[#allocation2 + $0x78] sm:$0xff]
      %v333 = vld [vmem:[#allocation2 + $0x80] sm:$0xff]
      %v334 = vld [vmem:[#allocation2 + $0x90] sm:$0xff]
      %v335 = vld [vmem:[#allocation2 + $0x98] sm:$0xff]
      %v336 = vld [vmem:[#allocation2 + $0xa8] sm:$0xff]
      %v337 = vld [vmem:[#allocation2 + $0xb0] sm:$0xff]
      %v338 = vld [vmem:[#allocation2 + $0xc0] sm:$0xff]
      %v339 = vld [vmem:[#allocation2 + $0xc8] sm:$0xff]
      %v340 = vld [vmem:[#allocation2 + $0xd8] sm:$0xff]
      %v341 = vld [vmem:[#allocation2 + $0xe0] sm:$0xff]
      %v342 = vld [vmem:[#allocation2 + $0xf0] sm:$0xff]
      %v343 = vld [vmem:[#allocation2 + $0xf8] sm:$0xff]
      %v344 = vld [vmem:[#allocation2 + $0x108] sm:$0xff]
      %v345 = vld [vmem:[#allocation2 + $0x110] sm:$0xff]
      %v346 = vld [vmem:[#allocation2 + $0x120] sm:$0xff]
      %v347 = vld [vmem:[#allocation2 + $0x128] sm:$0xff]
      %v348 = vld [vmem:[#allocation2 + $0x138] sm:$0xff]
      %v349 = vld [vmem:[#allocation2 + $0x140] sm:$0xff]
      %v350 = vld [vmem:[#allocation2 + $0x150] sm:$0xff]
      %v351 = vld [vmem:[#allocation2 + $0x158] sm:$0xff]
      %v352 = vld [vmem:[#allocation2 + $0x168] sm:$0xff]
      %v353 = vld [vmem:[#allocation2 + $0x170] sm:$0xff]
      %v354 = vld [vmem:[#allocation2 + $0x1] sm:$0xff]
      %v355 = vld [vmem:[#allocation2 + $0x9] sm:$0xff]
      %v356 = vld [vmem:[#allocation2 + $0x19] sm:$0xff]
      %v357 = vld [vmem:[#allocation2 + $0x21] sm:$0xff]
      %v358 = vld [vmem:[#allocation2 + $0x31] sm:$0xff]
      %v359 = vld [vmem:[#allocation2 + $0x39] sm:$0xff]
      %v360 = vld [vmem:[#allocation2 + $0x49] sm:$0xff]
      %v361 = vld [vmem:[#allocation2 + $0x51] sm:$0xff]
      %v362 = vld [vmem:[#allocation2 + $0x61] sm:$0xff]
      %v363 = vld [vmem:[#allocation2 + $0x69] sm:$0xff]
      %v364 = vld [vmem:[#allocation2 + $0x79] sm:$0xff]
      %v365 = vld [vmem:[#allocation2 + $0x81] sm:$0xff]
      %v366 = vld [vmem:[#allocation2 + $0x91] sm:$0xff]
      %v367 = vld [vmem:[#allocation2 + $0x99] sm:$0xff]
      %v368 = vld [vmem:[#allocation2 + $0xa9] sm:$0xff]
      %v369 = vld [vmem:[#allocation2 + $0xb1] sm:$0xff]
      %v370 = vld [vmem:[#allocation2 + $0xc1] sm:$0xff]
      %v371 = vld [vmem:[#allocation2 + $0xc9] sm:$0xff]
      %v372 = vld [vmem:[#allocation2 + $0xd9] sm:$0xff]
      %v373 = vld [vmem:[#allocation2 + $0xe1] sm:$0xff]
      %v374 = vld [vmem:[#allocation2 + $0xf1] sm:$0xff]
      %v375 = vld [vmem:[#allocation2 + $0xf9] sm:$0xff]
      %v376 = vld [vmem:[#allocation2 + $0x109] sm:$0xff]
      %v377 = vld [vmem:[#allocation2 + $0x111] sm:$0xff]
      %v378 = vld [vmem:[#allocation2 + $0x121] sm:$0xff]
      %v379 = vld [vmem:[#allocation2 + $0x129] sm:$0xff]
      %v380 = vld [vmem:[#allocation2 + $0x139] sm:$0xff]
      %v381 = vld [vmem:[#allocation2 + $0x141] sm:$0xff]
      %v382 = vld [vmem:[#allocation2 + $0x151] sm:$0xff]
      %v383 = vld [vmem:[#allocation2 + $0x159] sm:$0xff]
      %v384 = vld [vmem:[#allocation2 + $0x169] sm:$0xff]
      %v385 = vld [vmem:[#allocation2 + $0x171] sm:$0xff]
      %v386 = vld [vmem:[#allocation2 + $0x2] sm:$0xff]
      %v387 = vld [vmem:[#allocation2 + $0xa] sm:$0xff]
      %v388 = vld [vmem:[#allocation2 + $0x1a] sm:$0xff]
      %v389 = vld [vmem:[#allocation2 + $0x22] sm:$0xff]
      %v390 = vld [vmem:[#allocation2 + $0x32] sm:$0xff]
      %v391 = vld [vmem:[#allocation2 + $0x3a] sm:$0xff]
      %v392 = vld [vmem:[#allocation2 + $0x4a] sm:$0xff]
      %v393 = vld [vmem:[#allocation2 + $0x52] sm:$0xff]
      %v394 = vld [vmem:[#allocation2 + $0x62] sm:$0xff]
      %v395 = vld [vmem:[#allocation2 + $0x6a] sm:$0xff]
      %v396 = vld [vmem:[#allocation2 + $0x7a] sm:$0xff]
      %v397 = vld [vmem:[#allocation2 + $0x82] sm:$0xff]
      %v398 = vld [vmem:[#allocation2 + $0x92] sm:$0xff]
      %v399 = vld [vmem:[#allocation2 + $0x9a] sm:$0xff]
      %v400 = vld [vmem:[#allocation2 + $0xaa] sm:$0xff]
      %v401 = vld [vmem:[#allocation2 + $0xb2] sm:$0xff]
      %v402 = vld [vmem:[#allocation2 + $0xc2] sm:$0xff]
      %v403 = vld [vmem:[#allocation2 + $0xca] sm:$0xff]
      %v404 = vld [vmem:[#allocation2 + $0xda] sm:$0xff]
      %v405 = vld [vmem:[#allocation2 + $0xe2] sm:$0xff]
      %v406 = vld [vmem:[#allocation2 + $0xf2] sm:$0xff]
      %v407 = vld [vmem:[#allocation2 + $0xfa] sm:$0xff]
      %v408 = vld [vmem:[#allocation2 + $0x10a] sm:$0xff]
      %v409 = vld [vmem:[#allocation2 + $0x112] sm:$0xff]
      %v410 = vld [vmem:[#allocation2 + $0x122] sm:$0xff]
      %v411 = vld [vmem:[#allocation2 + $0x12a] sm:$0xff]
      %v412 = vld [vmem:[#allocation2 + $0x13a] sm:$0xff]
      %v413 = vld [vmem:[#allocation2 + $0x142] sm:$0xff]
      %v414 = vld [vmem:[#allocation2 + $0x152] sm:$0xff]
      %v415 = vld [vmem:[#allocation2 + $0x15a] sm:$0xff]
      %v416 = vld [vmem:[#allocation2 + $0x16a] sm:$0xff]
      %v417 = vld [vmem:[#allocation2 + $0x172] sm:$0xff]
      %v418 = vld [vmem:[%s288] sm:$0xff]
      %v419 = vld [vmem:[%s288 + $0x8] sm:$0xff]
      %v420 = vld [vmem:[%s288 + $0x18] sm:$0xff]
      %v421 = vld [vmem:[%s288 + $0x20] sm:$0xff]
      %v422 = vld [vmem:[%s288 + $0x30] sm:$0xff]
      %v423 = vld [vmem:[%s288 + $0x38] sm:$0xff]
      %v424 = vld [vmem:[%s288 + $0x48] sm:$0xff]
      %v425 = vld [vmem:[%s288 + $0x50] sm:$0xff]
      %v426 = vld [vmem:[%s288 + $0x60] sm:$0xff]
      %v427 = vld [vmem:[%s288 + $0x68] sm:$0xff]
      %v428 = vld [vmem:[%s288 + $0x78] sm:$0xff]
      %v429 = vld [vmem:[%s288 + $0x80] sm:$0xff]
      %v430 = vld [vmem:[%s288 + $0x90] sm:$0xff]
      %v431 = vld [vmem:[%s288 + $0x98] sm:$0xff]
      %v432 = vld [vmem:[%s288 + $0xa8] sm:$0xff]
      %v433 = vld [vmem:[%s288 + $0xb0] sm:$0xff]
      %v434 = vld [vmem:[%s288 + $0xc0] sm:$0xff]
      %v435 = vld [vmem:[%s288 + $0xc8] sm:$0xff]
      %v436 = vld [vmem:[%s288 + $0xd8] sm:$0xff]
      %v437 = vld [vmem:[%s288 + $0xe0] sm:$0xff]
      %v438 = vld [vmem:[%s288 + $0xf0] sm:$0xff]
      %v439 = vld [vmem:[%s288 + $0xf8] sm:$0xff]
      %v440 = vld [vmem:[%s288 + $0x108] sm:$0xff]
      %v441 = vld [vmem:[%s288 + $0x110] sm:$0xff]
      %v442 = vld [vmem:[%s288 + $0x120] sm:$0xff]
      %v443 = vld [vmem:[%s288 + $0x128] sm:$0xff]
      %v444 = vld [vmem:[%s288 + $0x138] sm:$0xff]
      %v445 = vld [vmem:[%s288 + $0x140] sm:$0xff]
      %v446 = vld [vmem:[%s288 + $0x150] sm:$0xff]
      %v447 = vld [vmem:[%s288 + $0x158] sm:$0xff]
      %v448 = vld [vmem:[%s288 + $0x168] sm:$0xff]
      %v449 = vld [vmem:[%s288 + $0x170] sm:$0xff]
      %v450 = vld [vmem:[%s288 + $0x1] sm:$0xff]
      %v451 = vld [vmem:[%s288 + $0x9] sm:$0xff]
      %v452 = vld [vmem:[%s288 + $0x19] sm:$0xff]
      %v453 = vld [vmem:[%s288 + $0x21] sm:$0xff]
      %v454 = vld [vmem:[%s288 + $0x31] sm:$0xff]
      %v455 = vld [vmem:[%s288 + $0x39] sm:$0xff]
      %v456 = vld [vmem:[%s288 + $0x49] sm:$0xff]
      %v457 = vld [vmem:[%s288 + $0x51] sm:$0xff]
      %v458 = vld [vmem:[%s288 + $0x61] sm:$0xff]
      %v459 = vld [vmem:[%s288 + $0x69] sm:$0xff]
      %v460 = vld [vmem:[%s288 + $0x79] sm:$0xff]
      %v461 = vld [vmem:[%s288 + $0x81] sm:$0xff]
      %v462 = vld [vmem:[%s288 + $0x91] sm:$0xff]
      %v463 = vld [vmem:[%s288 + $0x99] sm:$0xff]
      %v464 = vld [vmem:[%s288 + $0xa9] sm:$0xff]
      %v465 = vld [vmem:[%s288 + $0xb1] sm:$0xff]
      %v466 = vld [vmem:[%s288 + $0xc1] sm:$0xff]
      %v467 = vld [vmem:[%s288 + $0xc9] sm:$0xff]
      %v468 = vld [vmem:[%s288 + $0xd9] sm:$0xff]
      %v469 = vld [vmem:[%s288 + $0xe1] sm:$0xff]
      %v470 = vld [vmem:[%s288 + $0xf1] sm:$0xff]
      %v471 = vld [vmem:[%s288 + $0xf9] sm:$0xff]
      %v472 = vld [vmem:[%s288 + $0x109] sm:$0xff]
      %v473 = vld [vmem:[%s288 + $0x111] sm:$0xff]
      %v474 = vld [vmem:[%s288 + $0x121] sm:$0xff]
      %v475 = vld [vmem:[%s288 + $0x129] sm:$0xff]
      %v476 = vld [vmem:[%s288 + $0x139] sm:$0xff]
      %v477 = vld [vmem:[%s288 + $0x141] sm:$0xff]
      %v478 = vld [vmem:[%s288 + $0x151] sm:$0xff]
      %v479 = vld [vmem:[%s288 + $0x159] sm:$0xff]
      %v480 = vld [vmem:[%s288 + $0x169] sm:$0xff]
      %v481 = vld [vmem:[%s288 + $0x171] sm:$0xff]
      %v482 = vld [vmem:[%s288 + $0x2] sm:$0xff]
      %v483 = vld [vmem:[%s288 + $0xa] sm:$0xff]
      %v484 = vld [vmem:[%s288 + $0x1a] sm:$0xff]
      %v485 = vld [vmem:[%s288 + $0x22] sm:$0xff]
      %v486 = vld [vmem:[%s288 + $0x32] sm:$0xff]
      %v487 = vld [vmem:[%s288 + $0x3a] sm:$0xff]
      %v488 = vld [vmem:[%s288 + $0x4a] sm:$0xff]
      %v489 = vld [vmem:[%s288 + $0x52] sm:$0xff]
      %v490 = vld [vmem:[%s288 + $0x62] sm:$0xff]
      %v491 = vld [vmem:[%s288 + $0x6a] sm:$0xff]
      %v492 = vld [vmem:[%s288 + $0x7a] sm:$0xff]
      %v493 = vld [vmem:[%s288 + $0x82] sm:$0xff]
      %v494 = vld [vmem:[%s288 + $0x92] sm:$0xff]
      %v495 = vld [vmem:[%s288 + $0x9a] sm:$0xff]
      %v496 = vld [vmem:[%s288 + $0xaa] sm:$0xff]
      %v497 = vld [vmem:[%s288 + $0xb2] sm:$0xff]
      %v498 = vld [vmem:[%s288 + $0xc2] sm:$0xff]
      %v499 = vld [vmem:[%s288 + $0xca] sm:$0xff]
      %v500 = vld [vmem:[%s288 + $0xda] sm:$0xff]
      %v501 = vld [vmem:[%s288 + $0xe2] sm:$0xff]
      %v502 = vld [vmem:[%s288 + $0xf2] sm:$0xff]
      %v503 = vld [vmem:[%s288 + $0xfa] sm:$0xff]
      %v504 = vld [vmem:[%s288 + $0x10a] sm:$0xff]
      %v505 = vld [vmem:[%s288 + $0x112] sm:$0xff]
      %v506 = vld [vmem:[%s288 + $0x122] sm:$0xff]
      %v507 = vld [vmem:[%s288 + $0x12a] sm:$0xff]
      %v508 = vld [vmem:[%s288 + $0x13a] sm:$0xff]
      %v509 = vld [vmem:[%s288 + $0x142] sm:$0xff]
      %v510 = vld [vmem:[%s288 + $0x152] sm:$0xff]
      %v511 = vld [vmem:[%s288 + $0x15a] sm:$0xff]
      %v512 = vld [vmem:[%s288 + $0x16a] sm:$0xff]
      %v513 = vld [vmem:[%s288 + $0x172] sm:$0xff]
      %s514 = scalar_lea.vmem [#allocation2], 48
      %v515 = vld [vmem:[%s514] sm:$0xff]
      %v516 = vld [vmem:[%s514 + $0x8] sm:$0xff]
      %v517 = vld [vmem:[%s514 + $0x18] sm:$0xff]
      %v518 = vld [vmem:[%s514 + $0x20] sm:$0xff]
      %v519 = vld [vmem:[%s514 + $0x30] sm:$0xff]
      %v520 = vld [vmem:[%s514 + $0x38] sm:$0xff]
      %v521 = vld [vmem:[%s514 + $0x48] sm:$0xff]
      %v522 = vld [vmem:[%s514 + $0x50] sm:$0xff]
      %v523 = vld [vmem:[%s514 + $0x60] sm:$0xff]
      %v524 = vld [vmem:[%s514 + $0x68] sm:$0xff]
      %v525 = vld [vmem:[%s514 + $0x78] sm:$0xff]
      %v526 = vld [vmem:[%s514 + $0x80] sm:$0xff]
      %v527 = vld [vmem:[%s514 + $0x90] sm:$0xff]
      %v528 = vld [vmem:[%s514 + $0x98] sm:$0xff]
      %v529 = vld [vmem:[%s514 + $0xa8] sm:$0xff]
      %v530 = vld [vmem:[%s514 + $0xb0] sm:$0xff]
      %v531 = vld [vmem:[%s514 + $0xc0] sm:$0xff]
      %v532 = vld [vmem:[%s514 + $0xc8] sm:$0xff]
      %v533 = vld [vmem:[%s514 + $0xd8] sm:$0xff]
      %v534 = vld [vmem:[%s514 + $0xe0] sm:$0xff]
      %v535 = vld [vmem:[%s514 + $0xf0] sm:$0xff]
      %v536 = vld [vmem:[%s514 + $0xf8] sm:$0xff]
      %v537 = vld [vmem:[%s514 + $0x108] sm:$0xff]
      %v538 = vld [vmem:[%s514 + $0x110] sm:$0xff]
      %v539 = vld [vmem:[%s514 + $0x120] sm:$0xff]
      %v540 = vld [vmem:[%s514 + $0x128] sm:$0xff]
      %v541 = vld [vmem:[%s514 + $0x138] sm:$0xff]
      %v542 = vld [vmem:[%s514 + $0x140] sm:$0xff]
      %v543 = vld [vmem:[%s514 + $0x150] sm:$0xff]
      %v544 = vld [vmem:[%s514 + $0x158] sm:$0xff]
      %v545 = vld [vmem:[%s514 + $0x168] sm:$0xff]
      %v546 = vld [vmem:[%s514 + $0x170] sm:$0xff]
      %v547 = vld [vmem:[%s514 + $0x1] sm:$0xff]
      %v548 = vld [vmem:[%s514 + $0x9] sm:$0xff]
      %v549 = vld [vmem:[%s514 + $0x19] sm:$0xff]
      %v550 = vld [vmem:[%s514 + $0x21] sm:$0xff]
      %v551 = vld [vmem:[%s514 + $0x31] sm:$0xff]
      %v552 = vld [vmem:[%s514 + $0x39] sm:$0xff]
      %v553 = vld [vmem:[%s514 + $0x49] sm:$0xff]
      %v554 = vld [vmem:[%s514 + $0x51] sm:$0xff]
      %v555 = vld [vmem:[%s514 + $0x61] sm:$0xff]
      %v556 = vld [vmem:[%s514 + $0x69] sm:$0xff]
      %v557 = vld [vmem:[%s514 + $0x79] sm:$0xff]
      %v558 = vld [vmem:[%s514 + $0x81] sm:$0xff]
      %v559 = vld [vmem:[%s514 + $0x91] sm:$0xff]
      %v560 = vld [vmem:[%s514 + $0x99] sm:$0xff]
      %v561 = vld [vmem:[%s514 + $0xa9] sm:$0xff]
      %v562 = vld [vmem:[%s514 + $0xb1] sm:$0xff]
      %v563 = vld [vmem:[%s514 + $0xc1] sm:$0xff]
      %v564 = vld [vmem:[%s514 + $0xc9] sm:$0xff]
      %v565 = vld [vmem:[%s514 + $0xd9] sm:$0xff]
      %v566 = vld [vmem:[%s514 + $0xe1] sm:$0xff]
      %v567 = vld [vmem:[%s514 + $0xf1] sm:$0xff]
      %v568 = vld [vmem:[%s514 + $0xf9] sm:$0xff]
      %v569 = vld [vmem:[%s514 + $0x109] sm:$0xff]
      %v570 = vld [vmem:[%s514 + $0x111] sm:$0xff]
      %v571 = vld [vmem:[%s514 + $0x121] sm:$0xff]
      %v572 = vld [vmem:[%s514 + $0x129] sm:$0xff]
      %v573 = vld [vmem:[%s514 + $0x139] sm:$0xff]
      %v574 = vld [vmem:[%s514 + $0x141] sm:$0xff]
      %v575 = vld [vmem:[%s514 + $0x151] sm:$0xff]
      %v576 = vld [vmem:[%s514 + $0x159] sm:$0xff]
      %v577 = vld [vmem:[%s514 + $0x169] sm:$0xff]
      %v578 = vld [vmem:[%s514 + $0x171] sm:$0xff]
      %v579 = vld [vmem:[%s514 + $0x2] sm:$0xff]
      %v580 = vld [vmem:[%s514 + $0xa] sm:$0xff]
      %v581 = vld [vmem:[%s514 + $0x1a] sm:$0xff]
      %v582 = vld [vmem:[%s514 + $0x22] sm:$0xff]
      %v583 = vld [vmem:[%s514 + $0x32] sm:$0xff]
      %v584 = vld [vmem:[%s514 + $0x3a] sm:$0xff]
      %v585 = vld [vmem:[%s514 + $0x4a] sm:$0xff]
      %v586 = vld [vmem:[%s514 + $0x52] sm:$0xff]
      %v587 = vld [vmem:[%s514 + $0x62] sm:$0xff]
      %v588 = vld [vmem:[%s514 + $0x6a] sm:$0xff]
      %v589 = vld [vmem:[%s514 + $0x7a] sm:$0xff]
      %v590 = vld [vmem:[%s514 + $0x82] sm:$0xff]
      %v591 = vld [vmem:[%s514 + $0x92] sm:$0xff]
      %v592 = vld [vmem:[%s514 + $0x9a] sm:$0xff]
      %v593 = vld [vmem:[%s514 + $0xaa] sm:$0xff]
      %v594 = vld [vmem:[%s514 + $0xb2] sm:$0xff]
      %v595 = vld [vmem:[%s514 + $0xc2] sm:$0xff]
      %v596 = vld [vmem:[%s514 + $0xca] sm:$0xff]
      %v597 = vld [vmem:[%s514 + $0xda] sm:$0xff]
      %v598 = vld [vmem:[%s514 + $0xe2] sm:$0xff]
      %v599 = vld [vmem:[%s514 + $0xf2] sm:$0xff]
      %v600 = vld [vmem:[%s514 + $0xfa] sm:$0xff]
      %v601 = vld [vmem:[%s514 + $0x10a] sm:$0xff]
      %v602 = vld [vmem:[%s514 + $0x112] sm:$0xff]
      %v603 = vld [vmem:[%s514 + $0x122] sm:$0xff]
      %v604 = vld [vmem:[%s514 + $0x12a] sm:$0xff]
      %v605 = vld [vmem:[%s514 + $0x13a] sm:$0xff]
      %v606 = vld [vmem:[%s514 + $0x142] sm:$0xff]
      %v607 = vld [vmem:[%s514 + $0x152] sm:$0xff]
      %v608 = vld [vmem:[%s514 + $0x15a] sm:$0xff]
      %v609 = vld [vmem:[%s514 + $0x16a] sm:$0xff]
      %v610 = vld [vmem:[%s514 + $0x172] sm:$0xff]
      %v611 = vpack.c.bf16 %v323, %v322
      %v612 = vpack.c.bf16 %v355, %v354
      %v613 = vpack.c.bf16 %v387, %v386
      %v614 = vpack.c.bf16 %v419, %v418
      %v615 = vpack.c.bf16 %v451, %v450
      %v616 = vpack.c.bf16 %v483, %v482
      %v617 = vpack.c.bf16 %v516, %v515
      %v618 = vpack.c.bf16 %v548, %v547
      %v619 = vpack.c.bf16 %v580, %v579
      %v620 = vpack.c.bf16 %v325, %v324
      %v621 = vpack.c.bf16 %v357, %v356
      %v622 = vpack.c.bf16 %v389, %v388
      %v623 = vpack.c.bf16 %v421, %v420
      %v624 = vpack.c.bf16 %v453, %v452
      %v625 = vpack.c.bf16 %v485, %v484
      %v626 = vpack.c.bf16 %v518, %v517
      %v627 = vpack.c.bf16 %v550, %v549
      %v628 = vpack.c.bf16 %v582, %v581
      %v629 = vpack.c.bf16 %v327, %v326
      %v630 = vpack.c.bf16 %v359, %v358
      %v631 = vpack.c.bf16 %v391, %v390
      %v632 = vpack.c.bf16 %v423, %v422
      %v633 = vpack.c.bf16 %v455, %v454
      %v634 = vpack.c.bf16 %v487, %v486
      %v635 = vpack.c.bf16 %v520, %v519
      %v636 = vpack.c.bf16 %v552, %v551
      %v637 = vpack.c.bf16 %v584, %v583
      %v638 = vpack.c.bf16 %v329, %v328
      %v639 = vpack.c.bf16 %v361, %v360
      %v640 = vpack.c.bf16 %v393, %v392
      %v641 = vpack.c.bf16 %v425, %v424
      %v642 = vpack.c.bf16 %v457, %v456
      %v643 = vpack.c.bf16 %v489, %v488
      %v644 = vpack.c.bf16 %v522, %v521
      %v645 = vpack.c.bf16 %v554, %v553
      %v646 = vpack.c.bf16 %v586, %v585
      %v647 = vpack.c.bf16 %v331, %v330
      %v648 = vpack.c.bf16 %v363, %v362
      %v649 = vpack.c.bf16 %v395, %v394
      %v650 = vpack.c.bf16 %v427, %v426
      %v651 = vpack.c.bf16 %v459, %v458
      %v652 = vpack.c.bf16 %v491, %v490
      %v653 = vpack.c.bf16 %v524, %v523
      %v654 = vpack.c.bf16 %v556, %v555
      %v655 = vpack.c.bf16 %v588, %v587
      %v656 = vpack.c.bf16 %v333, %v332
      %v657 = vpack.c.bf16 %v365, %v364
      %v658 = vpack.c.bf16 %v397, %v396
      %v659 = vpack.c.bf16 %v429, %v428
      %v660 = vpack.c.bf16 %v461, %v460
      %v661 = vpack.c.bf16 %v493, %v492
      %v662 = vpack.c.bf16 %v526, %v525
      %v663 = vpack.c.bf16 %v558, %v557
      %v664 = vpack.c.bf16 %v590, %v589
      %v665 = vpack.c.bf16 %v335, %v334
      %v666 = vpack.c.bf16 %v367, %v366
      %v667 = vpack.c.bf16 %v399, %v398
      %v668 = vpack.c.bf16 %v431, %v430
      %v669 = vpack.c.bf16 %v463, %v462
      %v670 = vpack.c.bf16 %v495, %v494
      %v671 = vpack.c.bf16 %v528, %v527
      %v672 = vpack.c.bf16 %v560, %v559
      %v673 = vpack.c.bf16 %v592, %v591
      %v674 = vpack.c.bf16 %v337, %v336
      %v675 = vpack.c.bf16 %v369, %v368
      %v676 = vpack.c.bf16 %v401, %v400
      %v677 = vpack.c.bf16 %v433, %v432
      %v678 = vpack.c.bf16 %v465, %v464
      %v679 = vpack.c.bf16 %v497, %v496
      %v680 = vpack.c.bf16 %v530, %v529
      %v681 = vpack.c.bf16 %v562, %v561
      %v682 = vpack.c.bf16 %v594, %v593
      %v683 = vpack.c.bf16 %v339, %v338
      %v684 = vpack.c.bf16 %v371, %v370
      %v685 = vpack.c.bf16 %v403, %v402
      %v686 = vpack.c.bf16 %v435, %v434
      %v687 = vpack.c.bf16 %v467, %v466
      %v688 = vpack.c.bf16 %v499, %v498
      %v689 = vpack.c.bf16 %v532, %v531
      %v690 = vpack.c.bf16 %v564, %v563
      %v691 = vpack.c.bf16 %v596, %v595
      %v692 = vpack.c.bf16 %v341, %v340
      %v693 = vpack.c.bf16 %v373, %v372
      %v694 = vpack.c.bf16 %v405, %v404
      %v695 = vpack.c.bf16 %v437, %v436
      %v696 = vpack.c.bf16 %v469, %v468
      %v697 = vpack.c.bf16 %v501, %v500
      %v698 = vpack.c.bf16 %v534, %v533
      %v699 = vpack.c.bf16 %v566, %v565
      %v700 = vpack.c.bf16 %v598, %v597
      %v701 = vpack.c.bf16 %v343, %v342
      %v702 = vpack.c.bf16 %v375, %v374
      %v703 = vpack.c.bf16 %v407, %v406
      %v704 = vpack.c.bf16 %v439, %v438
      %v705 = vpack.c.bf16 %v471, %v470
      %v706 = vpack.c.bf16 %v503, %v502
      %v707 = vpack.c.bf16 %v536, %v535
      %v708 = vpack.c.bf16 %v568, %v567
      %v709 = vpack.c.bf16 %v600, %v599
      %v710 = vpack.c.bf16 %v345, %v344
      %v711 = vpack.c.bf16 %v377, %v376
      %v712 = vpack.c.bf16 %v409, %v408
      %v713 = vpack.c.bf16 %v441, %v440
      %v714 = vpack.c.bf16 %v473, %v472
      %v715 = vpack.c.bf16 %v505, %v504
      %v716 = vpack.c.bf16 %v538, %v537
      %v717 = vpack.c.bf16 %v570, %v569
      %v718 = vpack.c.bf16 %v602, %v601
      %v719 = vpack.c.bf16 %v347, %v346
      %v720 = vpack.c.bf16 %v379, %v378
      %v721 = vpack.c.bf16 %v411, %v410
      %v722 = vpack.c.bf16 %v443, %v442
      %v723 = vpack.c.bf16 %v475, %v474
      %v724 = vpack.c.bf16 %v507, %v506
      %v725 = vpack.c.bf16 %v540, %v539
      %v726 = vpack.c.bf16 %v572, %v571
      %v727 = vpack.c.bf16 %v604, %v603
      %v728 = vpack.c.bf16 %v349, %v348
      %v729 = vpack.c.bf16 %v381, %v380
      %v730 = vpack.c.bf16 %v413, %v412
      %v731 = vpack.c.bf16 %v445, %v444
      %v732 = vpack.c.bf16 %v477, %v476
      %v733 = vpack.c.bf16 %v509, %v508
      %v734 = vpack.c.bf16 %v542, %v541
      %v735 = vpack.c.bf16 %v574, %v573
      %v736 = vpack.c.bf16 %v606, %v605
      %v737 = vpack.c.bf16 %v351, %v350
      %v738 = vpack.c.bf16 %v383, %v382
      %v739 = vpack.c.bf16 %v415, %v414
      %v740 = vpack.c.bf16 %v447, %v446
      %v741 = vpack.c.bf16 %v479, %v478
      %v742 = vpack.c.bf16 %v511, %v510
      %v743 = vpack.c.bf16 %v544, %v543
      %v744 = vpack.c.bf16 %v576, %v575
      %v745 = vpack.c.bf16 %v608, %v607
      %v746 = vpack.c.bf16 %v353, %v352
      %v747 = vpack.c.bf16 %v385, %v384
      %v748 = vpack.c.bf16 %v417, %v416
      %v749 = vpack.c.bf16 %v449, %v448
      %v750 = vpack.c.bf16 %v481, %v480
      %v751 = vpack.c.bf16 %v513, %v512
      %v752 = vpack.c.bf16 %v546, %v545
      %v753 = vpack.c.bf16 %v578, %v577
      %v754 = vpack.c.bf16 %v610, %v609
      %v755 = vld [vmem:[%s2] sm:$0xf]
      %v756 = vld [vmem:[%s2 + $0x4] sm:$0xf]
      %v757 = vld [vmem:[%s2 + $0x8] sm:$0xf]
      %v758 = vld [vmem:[%s2 + $0xc] sm:$0xf]
      %v759 = vld [vmem:[%s2 + $0x10] sm:$0xf]
      %v760 = vld [vmem:[%s2 + $0x14] sm:$0xf]
      %v761 = vld [vmem:[%s2 + $0x18] sm:$0xf]
      %v762 = vld [vmem:[%s2 + $0x1c] sm:$0xf]
      %v763 = vld [vmem:[%s2 + $0x20] sm:$0xf]
      %v764 = vld [vmem:[%s2 + $0x24] sm:$0xf]
      %v765 = vld [vmem:[%s2 + $0x28] sm:$0xf]
      %v766 = vld [vmem:[%s2 + $0x2c] sm:$0xf]
      %v767 = vld [vmem:[%s2 + $0x30] sm:$0xf]
      %v768 = vld [vmem:[%s2 + $0x34] sm:$0xf]
      %v769 = vld [vmem:[%s2 + $0x38] sm:$0xf]
      %v770 = vld [vmem:[%s2 + $0x3c] sm:$0xf]
      %v771 = vld [vmem:[%s2 + $0x40] sm:$0xf]
      %v772 = vld [vmem:[%s2 + $0x44] sm:$0xf]
      %v773 = vld [vmem:[%s2 + $0x48] sm:$0xf]
      %v774 = vld [vmem:[%s2 + $0x4c] sm:$0xf]
      %v775 = vld [vmem:[%s2 + $0x50] sm:$0xf]
      %v776 = vld [vmem:[%s2 + $0x54] sm:$0xf]
      %v777 = vld [vmem:[%s2 + $0x58] sm:$0xf]
      %v778 = vld [vmem:[%s2 + $0x5c] sm:$0xf]
      %v779 = vld [vmem:[%s2 + $0x60] sm:$0xf]
      %v780 = vld [vmem:[%s2 + $0x64] sm:$0xf]
      %v781 = vld [vmem:[%s2 + $0x68] sm:$0xf]
      %v782 = vld [vmem:[%s2 + $0x6c] sm:$0xf]
      %v783 = vld [vmem:[%s2 + $0x70] sm:$0xf]
      %v784 = vld [vmem:[%s2 + $0x74] sm:$0xf]
      %v785 = vld [vmem:[%s2 + $0x78] sm:$0xf]
      %v786 = vld [vmem:[%s2 + $0x7c] sm:$0xf]
      %v787 = vld [vmem:[%s2 + $0x80] sm:$0xf]
      %v788 = vld [vmem:[%s2 + $0x84] sm:$0xf]
      %v789 = vld [vmem:[%s2 + $0x88] sm:$0xf]
      %v790 = vld [vmem:[%s2 + $0x8c] sm:$0xf]
      %v791 = vld [vmem:[%s2 + $0x90] sm:$0xf]
      %v792 = vld [vmem:[%s2 + $0x94] sm:$0xf]
      %v793 = vld [vmem:[%s2 + $0x98] sm:$0xf]
      %v794 = vld [vmem:[%s2 + $0x9c] sm:$0xf]
      %v795 = vld [vmem:[%s2 + $0xa0] sm:$0xf]
      %v796 = vld [vmem:[%s2 + $0xa4] sm:$0xf]
      %v797 = vld [vmem:[%s2 + $0xa8] sm:$0xf]
      %v798 = vld [vmem:[%s2 + $0xac] sm:$0xf]
      %v799 = vld [vmem:[%s2 + $0xb0] sm:$0xf]
      %v800 = vld [vmem:[%s2 + $0xb4] sm:$0xf]
      %v801 = vld [vmem:[%s2 + $0xb8] sm:$0xf]
      %v802 = vld [vmem:[%s2 + $0xbc] sm:$0xf]
      %v803 = vld [vmem:[%s2 + $0xc0] sm:$0xf]
      %v804 = vld [vmem:[%s2 + $0xc4] sm:$0xf]
      %v805 = vld [vmem:[%s2 + $0xc8] sm:$0xf]
      %v806 = vld [vmem:[%s2 + $0xcc] sm:$0xf]
      %v807 = vld [vmem:[%s2 + $0xd0] sm:$0xf]
      %v808 = vld [vmem:[%s2 + $0xd4] sm:$0xf]
      %v809 = vld [vmem:[%s2 + $0xd8] sm:$0xf]
      %v810 = vld [vmem:[%s2 + $0xdc] sm:$0xf]
      %v811 = vld [vmem:[%s2 + $0xe0] sm:$0xf]
      %v812 = vld [vmem:[%s2 + $0xe4] sm:$0xf]
      %v813 = vld [vmem:[%s2 + $0xe8] sm:$0xf]
      %v814 = vld [vmem:[%s2 + $0xec] sm:$0xf]
      %v815 = vld [vmem:[%s2 + $0xf0] sm:$0xf]
      %v816 = vld [vmem:[%s2 + $0xf4] sm:$0xf]
      %v817 = vld [vmem:[%s2 + $0xf8] sm:$0xf]
      %v818 = vld [vmem:[%s2 + $0xfc] sm:$0xf]
      %v819 = vld [vmem:[%s2 + $0x100] sm:$0xf]
      %v820 = vld [vmem:[%s2 + $0x104] sm:$0xf]
      %v821 = vld [vmem:[%s2 + $0x108] sm:$0xf]
      %v822 = vld [vmem:[%s2 + $0x10c] sm:$0xf]
      %v823 = vld [vmem:[%s2 + $0x110] sm:$0xf]
      %v824 = vld [vmem:[%s2 + $0x114] sm:$0xf]
      %v825 = vld [vmem:[%s2 + $0x118] sm:$0xf]
      %v826 = vld [vmem:[%s2 + $0x11c] sm:$0xf]
      %v827 = vld [vmem:[%s2 + $0x120] sm:$0xf]
      %v828 = vld [vmem:[%s2 + $0x124] sm:$0xf]
      %v829 = vld [vmem:[%s2 + $0x128] sm:$0xf]
      %v830 = vld [vmem:[%s2 + $0x12c] sm:$0xf]
      %v831 = vld [vmem:[%s2 + $0x130] sm:$0xf]
      %v832 = vld [vmem:[%s2 + $0x134] sm:$0xf]
      %v833 = vld [vmem:[%s2 + $0x138] sm:$0xf]
      %v834 = vld [vmem:[%s2 + $0x13c] sm:$0xf]
      %v835 = vld [vmem:[%s2 + $0x140] sm:$0xf]
      %v836 = vld [vmem:[%s2 + $0x144] sm:$0xf]
      %v837 = vld [vmem:[%s2 + $0x148] sm:$0xf]
      %v838 = vld [vmem:[%s2 + $0x14c] sm:$0xf]
      %v839 = vld [vmem:[%s2 + $0x150] sm:$0xf]
      %v840 = vld [vmem:[%s2 + $0x154] sm:$0xf]
      %v841 = vld [vmem:[%s2 + $0x158] sm:$0xf]
      %v842 = vld [vmem:[%s2 + $0x15c] sm:$0xf]
      %v843 = vld [vmem:[%s2 + $0x160] sm:$0xf]
      %v844 = vld [vmem:[%s2 + $0x164] sm:$0xf]
      %v845 = vld [vmem:[%s2 + $0x168] sm:$0xf]
      %v846 = vld [vmem:[%s2 + $0x16c] sm:$0xf]
      %v847 = vld [vmem:[%s2 + $0x170] sm:$0xf]
      %v848 = vld [vmem:[%s2 + $0x174] sm:$0xf]
      %v849 = vld [vmem:[%s2 + $0x178] sm:$0xf]
      %v850 = vld [vmem:[%s2 + $0x17c] sm:$0xf]
      %v851 = vld [vmem:[%s2 + $0x180] sm:$0xf]
      %v852 = vld [vmem:[%s2 + $0x184] sm:$0xf]
      %v853 = vld [vmem:[%s2 + $0x188] sm:$0xf]
      %v854 = vld [vmem:[%s2 + $0x18c] sm:$0xf]
      %v855 = vld [vmem:[%s2 + $0x190] sm:$0xf]
      %v856 = vld [vmem:[%s2 + $0x194] sm:$0xf]
      %v857 = vld [vmem:[%s2 + $0x198] sm:$0xf]
      %v858 = vld [vmem:[%s2 + $0x19c] sm:$0xf]
      %v859 = vld [vmem:[%s2 + $0x1a0] sm:$0xf]
      %v860 = vld [vmem:[%s2 + $0x1a4] sm:$0xf]
      %v861 = vld [vmem:[%s2 + $0x1a8] sm:$0xf]
      %v862 = vld [vmem:[%s2 + $0x1ac] sm:$0xf]
      %v863 = vld [vmem:[%s2 + $0x1b0] sm:$0xf]
      %v864 = vld [vmem:[%s2 + $0x1b4] sm:$0xf]
      %v865 = vld [vmem:[%s2 + $0x1b8] sm:$0xf]
      %v866 = vld [vmem:[%s2 + $0x1bc] sm:$0xf]
      %v867 = vld [vmem:[%s2 + $0x1c0] sm:$0xf]
      %v868 = vld [vmem:[%s2 + $0x1c4] sm:$0xf]
      %v869 = vld [vmem:[%s2 + $0x1c8] sm:$0xf]
      %v870 = vld [vmem:[%s2 + $0x1cc] sm:$0xf]
      %v871 = vld [vmem:[%s2 + $0x1d0] sm:$0xf]
      %v872 = vld [vmem:[%s2 + $0x1d4] sm:$0xf]
      %v873 = vld [vmem:[%s2 + $0x1d8] sm:$0xf]
      %v874 = vld [vmem:[%s2 + $0x1dc] sm:$0xf]
      %v875 = vld [vmem:[%s2 + $0x1e0] sm:$0xf]
      %v876 = vld [vmem:[%s2 + $0x1e4] sm:$0xf]
      %v877 = vld [vmem:[%s2 + $0x1e8] sm:$0xf]
      %v878 = vld [vmem:[%s2 + $0x1ec] sm:$0xf]
      %v879 = vld [vmem:[%s2 + $0x1f0] sm:$0xf]
      %v880 = vld [vmem:[%s2 + $0x1f4] sm:$0xf]
      %v881 = vld [vmem:[%s2 + $0x1f8] sm:$0xf]
      %v882 = vld [vmem:[%s2 + $0x1fc] sm:$0xf]
      %v883 = vld [vmem:[%s2 + $0x200] sm:$0xf]
      %v884 = vld [vmem:[%s2 + $0x204] sm:$0xf]
      %v885 = vld [vmem:[%s2 + $0x208] sm:$0xf]
      %v886 = vld [vmem:[%s2 + $0x20c] sm:$0xf]
      %v887 = vld [vmem:[%s2 + $0x210] sm:$0xf]
      %v888 = vld [vmem:[%s2 + $0x214] sm:$0xf]
      %v889 = vld [vmem:[%s2 + $0x218] sm:$0xf]
      %v890 = vld [vmem:[%s2 + $0x21c] sm:$0xf]
      %v891 = vld [vmem:[%s2 + $0x220] sm:$0xf]
      %v892 = vld [vmem:[%s2 + $0x224] sm:$0xf]
      %v893 = vld [vmem:[%s2 + $0x228] sm:$0xf]
      %v894 = vld [vmem:[%s2 + $0x22c] sm:$0xf]
      %v895 = vld [vmem:[%s2 + $0x230] sm:$0xf]
      %v896 = vld [vmem:[%s2 + $0x234] sm:$0xf]
      %v897 = vld [vmem:[%s2 + $0x238] sm:$0xf]
      %v898 = vld [vmem:[%s2 + $0x23c] sm:$0xf]
      %v1043 = vunpack.c.l.b16 %v755
      %v1044 = vunpack.c.l.b16 %v756
      %v1045 = vunpack.c.l.b16 %v757
      %v1046 = vunpack.c.l.b16 %v758
      %v1047 = vunpack.c.l.b16 %v759
      %v1048 = vunpack.c.l.b16 %v760
      %v1049 = vunpack.c.l.b16 %v761
      %v1050 = vunpack.c.l.b16 %v762
      %v1051 = vunpack.c.l.b16 %v763
      %v1052 = vunpack.c.l.b16 %v764
      %v1053 = vunpack.c.l.b16 %v765
      %v1054 = vunpack.c.l.b16 %v766
      %v1055 = vunpack.c.l.b16 %v767
      %v1056 = vunpack.c.l.b16 %v768
      %v1057 = vunpack.c.l.b16 %v769
      %v1058 = vunpack.c.l.b16 %v770
      %v1059 = vunpack.c.l.b16 %v771
      %v1060 = vunpack.c.l.b16 %v772
      %v1061 = vunpack.c.l.b16 %v773
      %v1062 = vunpack.c.l.b16 %v774
      %v1063 = vunpack.c.l.b16 %v775
      %v1064 = vunpack.c.l.b16 %v776
      %v1065 = vunpack.c.l.b16 %v777
      %v1066 = vunpack.c.l.b16 %v778
      %v1067 = vunpack.c.l.b16 %v779
      %v1068 = vunpack.c.l.b16 %v780
      %v1069 = vunpack.c.l.b16 %v781
      %v1070 = vunpack.c.l.b16 %v782
      %v1071 = vunpack.c.l.b16 %v783
      %v1072 = vunpack.c.l.b16 %v784
      %v1073 = vunpack.c.l.b16 %v785
      %v1074 = vunpack.c.l.b16 %v786
      %v1075 = vunpack.c.l.b16 %v787
      %v1076 = vunpack.c.l.b16 %v788
      %v1077 = vunpack.c.l.b16 %v789
      %v1078 = vunpack.c.l.b16 %v790
      %v1079 = vunpack.c.l.b16 %v791
      %v1080 = vunpack.c.l.b16 %v792
      %v1081 = vunpack.c.l.b16 %v793
      %v1082 = vunpack.c.l.b16 %v794
      %v1083 = vunpack.c.l.b16 %v795
      %v1084 = vunpack.c.l.b16 %v796
      %v1085 = vunpack.c.l.b16 %v797
      %v1086 = vunpack.c.l.b16 %v798
      %v1087 = vunpack.c.l.b16 %v799
      %v1088 = vunpack.c.l.b16 %v800
      %v1089 = vunpack.c.l.b16 %v801
      %v1090 = vunpack.c.l.b16 %v802
      %v1091 = vunpack.c.l.b16 %v803
      %v1092 = vunpack.c.l.b16 %v804
      %v1093 = vunpack.c.l.b16 %v805
      %v1094 = vunpack.c.l.b16 %v806
      %v1095 = vunpack.c.l.b16 %v807
      %v1096 = vunpack.c.l.b16 %v808
      %v1097 = vunpack.c.l.b16 %v809
      %v1098 = vunpack.c.l.b16 %v810
      %v1099 = vunpack.c.l.b16 %v811
      %v1100 = vunpack.c.l.b16 %v812
      %v1101 = vunpack.c.l.b16 %v813
      %v1102 = vunpack.c.l.b16 %v814
      %v1103 = vunpack.c.l.b16 %v815
      %v1104 = vunpack.c.l.b16 %v816
      %v1105 = vunpack.c.l.b16 %v817
      %v1106 = vunpack.c.l.b16 %v818
      %v1107 = vunpack.c.l.b16 %v819
      %v1108 = vunpack.c.l.b16 %v820
      %v1109 = vunpack.c.l.b16 %v821
      %v1110 = vunpack.c.l.b16 %v822
      %v1111 = vunpack.c.l.b16 %v823
      %v1112 = vunpack.c.l.b16 %v824
      %v1113 = vunpack.c.l.b16 %v825
      %v1114 = vunpack.c.l.b16 %v826
      %v1115 = vunpack.c.l.b16 %v827
      %v1116 = vunpack.c.l.b16 %v828
      %v1117 = vunpack.c.l.b16 %v829
      %v1118 = vunpack.c.l.b16 %v830
      %v1119 = vunpack.c.l.b16 %v831
      %v1120 = vunpack.c.l.b16 %v832
      %v1121 = vunpack.c.l.b16 %v833
      %v1122 = vunpack.c.l.b16 %v834
      %v1123 = vunpack.c.l.b16 %v835
      %v1124 = vunpack.c.l.b16 %v836
      %v1125 = vunpack.c.l.b16 %v837
      %v1126 = vunpack.c.l.b16 %v838
      %v1127 = vunpack.c.l.b16 %v839
      %v1128 = vunpack.c.l.b16 %v840
      %v1129 = vunpack.c.l.b16 %v841
      %v1130 = vunpack.c.l.b16 %v842
      %v1131 = vunpack.c.l.b16 %v843
      %v1132 = vunpack.c.l.b16 %v844
      %v1133 = vunpack.c.l.b16 %v845
      %v1134 = vunpack.c.l.b16 %v846
      %v1135 = vunpack.c.l.b16 %v847
      %v1136 = vunpack.c.l.b16 %v848
      %v1137 = vunpack.c.l.b16 %v849
      %v1138 = vunpack.c.l.b16 %v850
      %v1139 = vunpack.c.l.b16 %v851
      %v1140 = vunpack.c.l.b16 %v852
      %v1141 = vunpack.c.l.b16 %v853
      %v1142 = vunpack.c.l.b16 %v854
      %v1143 = vunpack.c.l.b16 %v855
      %v1144 = vunpack.c.l.b16 %v856
      %v1145 = vunpack.c.l.b16 %v857
      %v1146 = vunpack.c.l.b16 %v858
      %v1147 = vunpack.c.l.b16 %v859
      %v1148 = vunpack.c.l.b16 %v860
      %v1149 = vunpack.c.l.b16 %v861
      %v1150 = vunpack.c.l.b16 %v862
      %v1151 = vunpack.c.l.b16 %v863
      %v1152 = vunpack.c.l.b16 %v864
      %v1153 = vunpack.c.l.b16 %v865
      %v1154 = vunpack.c.l.b16 %v866
      %v1155 = vunpack.c.l.b16 %v867
      %v1156 = vunpack.c.l.b16 %v868
      %v1157 = vunpack.c.l.b16 %v869
      %v1158 = vunpack.c.l.b16 %v870
      %v1159 = vunpack.c.l.b16 %v871
      %v1160 = vunpack.c.l.b16 %v872
      %v1161 = vunpack.c.l.b16 %v873
      %v1162 = vunpack.c.l.b16 %v874
      %v1163 = vunpack.c.l.b16 %v875
      %v1164 = vunpack.c.l.b16 %v876
      %v1165 = vunpack.c.l.b16 %v877
      %v1166 = vunpack.c.l.b16 %v878
      %v1167 = vunpack.c.l.b16 %v879
      %v1168 = vunpack.c.l.b16 %v880
      %v1169 = vunpack.c.l.b16 %v881
      %v1170 = vunpack.c.l.b16 %v882
      %v1171 = vunpack.c.l.b16 %v883
      %v1172 = vunpack.c.l.b16 %v884
      %v1173 = vunpack.c.l.b16 %v885
      %v1174 = vunpack.c.l.b16 %v886
      %v1175 = vunpack.c.l.b16 %v887
      %v1176 = vunpack.c.l.b16 %v888
      %v1177 = vunpack.c.l.b16 %v889
      %v1178 = vunpack.c.l.b16 %v890
      %v1179 = vunpack.c.l.b16 %v891
      %v1180 = vunpack.c.l.b16 %v892
      %v1181 = vunpack.c.l.b16 %v893
      %v1182 = vunpack.c.l.b16 %v894
      %v1183 = vunpack.c.l.b16 %v895
      %v1184 = vunpack.c.l.b16 %v896
      %v1185 = vunpack.c.l.b16 %v897
      %v1186 = vunpack.c.l.b16 %v898
      %v1187 = vpack.c.b16 %v1044, %v1043
      %v1188 = vpack.c.b16 %v1046, %v1045
      %v1189 = vpack.c.b16 %v1048, %v1047
      %v1190 = vpack.c.b16 %v1050, %v1049
      %v1191 = vpack.c.b16 %v1052, %v1051
      %v1192 = vpack.c.b16 %v1054, %v1053
      %v1193 = vpack.c.b16 %v1056, %v1055
      %v1194 = vpack.c.b16 %v1058, %v1057
      %v1195 = vpack.c.b16 %v1060, %v1059
      %v1196 = vpack.c.b16 %v1062, %v1061
      %v1197 = vpack.c.b16 %v1064, %v1063
      %v1198 = vpack.c.b16 %v1066, %v1065
      %v1199 = vpack.c.b16 %v1068, %v1067
      %v1200 = vpack.c.b16 %v1070, %v1069
      %v1201 = vpack.c.b16 %v1072, %v1071
      %v1202 = vpack.c.b16 %v1074, %v1073
      %v1203 = vpack.c.b16 %v1076, %v1075
      %v1204 = vpack.c.b16 %v1078, %v1077
      %v1205 = vpack.c.b16 %v1080, %v1079
      %v1206 = vpack.c.b16 %v1082, %v1081
      %v1207 = vpack.c.b16 %v1084, %v1083
      %v1208 = vpack.c.b16 %v1086, %v1085
      %v1209 = vpack.c.b16 %v1088, %v1087
      %v1210 = vpack.c.b16 %v1090, %v1089
      %v1211 = vpack.c.b16 %v1092, %v1091
      %v1212 = vpack.c.b16 %v1094, %v1093
      %v1213 = vpack.c.b16 %v1096, %v1095
      %v1214 = vpack.c.b16 %v1098, %v1097
      %v1215 = vpack.c.b16 %v1100, %v1099
      %v1216 = vpack.c.b16 %v1102, %v1101
      %v1217 = vpack.c.b16 %v1104, %v1103
      %v1218 = vpack.c.b16 %v1106, %v1105
      %v1219 = vpack.c.b16 %v1108, %v1107
      %v1220 = vpack.c.b16 %v1110, %v1109
      %v1221 = vpack.c.b16 %v1112, %v1111
      %v1222 = vpack.c.b16 %v1114, %v1113
      %v1223 = vpack.c.b16 %v1116, %v1115
      %v1224 = vpack.c.b16 %v1118, %v1117
      %v1225 = vpack.c.b16 %v1120, %v1119
      %v1226 = vpack.c.b16 %v1122, %v1121
      %v1227 = vpack.c.b16 %v1124, %v1123
      %v1228 = vpack.c.b16 %v1126, %v1125
      %v1229 = vpack.c.b16 %v1128, %v1127
      %v1230 = vpack.c.b16 %v1130, %v1129
      %v1231 = vpack.c.b16 %v1132, %v1131
      %v1232 = vpack.c.b16 %v1134, %v1133
      %v1233 = vpack.c.b16 %v1136, %v1135
      %v1234 = vpack.c.b16 %v1138, %v1137
      %v1235 = vpack.c.b16 %v1140, %v1139
      %v1236 = vpack.c.b16 %v1142, %v1141
      %v1237 = vpack.c.b16 %v1144, %v1143
      %v1238 = vpack.c.b16 %v1146, %v1145
      %v1239 = vpack.c.b16 %v1148, %v1147
      %v1240 = vpack.c.b16 %v1150, %v1149
      %v1241 = vpack.c.b16 %v1152, %v1151
      %v1242 = vpack.c.b16 %v1154, %v1153
      %v1243 = vpack.c.b16 %v1156, %v1155
      %v1244 = vpack.c.b16 %v1158, %v1157
      %v1245 = vpack.c.b16 %v1160, %v1159
      %v1246 = vpack.c.b16 %v1162, %v1161
      %v1247 = vpack.c.b16 %v1164, %v1163
      %v1248 = vpack.c.b16 %v1166, %v1165
      %v1249 = vpack.c.b16 %v1168, %v1167
      %v1250 = vpack.c.b16 %v1170, %v1169
      %v1251 = vpack.c.b16 %v1172, %v1171
      %v1252 = vpack.c.b16 %v1174, %v1173
      %v1253 = vpack.c.b16 %v1176, %v1175
      %v1254 = vpack.c.b16 %v1178, %v1177
      %v1255 = vpack.c.b16 %v1180, %v1179
      %v1256 = vpack.c.b16 %v1182, %v1181
      %v1257 = vpack.c.b16 %v1184, %v1183
      %v1258 = vpack.c.b16 %v1186, %v1185
      %1331 = vmatprep.subr.bf16.mxu0 0
      %1332 = vmatpush1.bf16.msra.mxu0 %v1194
      %1333 = vmatprep.subr.bf16.mxu0 0
      %1334 = vmatpush1.bf16.msra.mxu0 %v1193
      %1335 = vmatprep.subr.bf16.mxu0 0
      %1336 = vmatpush1.bf16.msra.mxu0 %v1192
      %1337 = vmatprep.subr.bf16.mxu0 0
      %1338 = vmatpush1.bf16.msra.mxu0 %v1191
      %1339 = vmatprep.subr.bf16.mxu0 0
      %1340 = vmatpush1.bf16.msra.mxu0 %v1190
      %1341 = vmatprep.subr.bf16.mxu0 0
      %1342 = vmatpush1.bf16.msra.mxu0 %v1189
      %1343 = vmatprep.subr.bf16.mxu0 0
      %1344 = vmatpush1.bf16.msra.mxu0 %v1188
      %1345 = vmatprep.subr.bf16.mxu0 0
      %1346 = vmatpush1.bf16.msra.mxu0 %v1187
      %1347 = vmatprep.subr.bf16.mxu0 0
      %1348 = vmatpush2.bf16.msra.mxu0 %v1202
      %1349 = vmatprep.subr.bf16.mxu0 0
      %1350 = vmatpush2.bf16.msra.mxu0 %v1201
      %1351 = vmatprep.subr.bf16.mxu0 0
      %1352 = vmatpush2.bf16.msra.mxu0 %v1200
      %1353 = vmatprep.subr.bf16.mxu0 0
      %1354 = vmatpush2.bf16.msra.mxu0 %v1199
      %1355 = vmatprep.subr.bf16.mxu0 0
      %1356 = vmatpush2.bf16.msra.mxu0 %v1198
      %1357 = vmatprep.subr.bf16.mxu0 0
      %1358 = vmatpush2.bf16.msra.mxu0 %v1197
      %1359 = vmatprep.subr.bf16.mxu0 0
      %1360 = vmatpush2.bf16.msra.mxu0 %v1196
      %1361 = vmatprep.subr.bf16.mxu0 0
      %1362 = vmatpush2.bf16.msra.mxu0 %v1195
      %1363 = vmatprep.mubr.bf16.mxu0 %v612
      %1364 = vmatmul.mubr.bf16.gmra.mxu0 %v611
      %v1365 = vpop.f32.mrf.mxu0
      %v1366 = vadd.f32 0.0, %v1365
      %v1367 = vpop.f32.mrf.mxu0
      %v1368 = vpop.f32.mrf.mxu0
      %v1369 = vadd.f32 0.0, %v1368
      %v1370 = vpop.f32.mrf.mxu0
      %1371 = vmatprep.mubr.bf16.mxu0 %v621
      %1372 = vmatmul.mubr.bf16.gmra.mxu0 %v620
      %v1373 = vpop.f32.mrf.mxu0
      %v1374 = vadd.f32 0.0, %v1373
      %v1375 = vpop.f32.mrf.mxu0
      %v1376 = vpop.f32.mrf.mxu0
      %v1377 = vadd.f32 0.0, %v1376
      %v1378 = vpop.f32.mrf.mxu0
      %1379 = vmatprep.mubr.bf16.mxu0 %v630
      %1380 = vmatmul.mubr.bf16.gmra.mxu0 %v629
      %v1381 = vpop.f32.mrf.mxu0
      %v1382 = vadd.f32 0.0, %v1381
      %v1383 = vpop.f32.mrf.mxu0
      %v1384 = vpop.f32.mrf.mxu0
      %v1385 = vadd.f32 0.0, %v1384
      %v1386 = vpop.f32.mrf.mxu0
      %1387 = vmatprep.mubr.bf16.mxu0 %v639
      %1388 = vmatmul.mubr.bf16.gmra.mxu0 %v638
      %v1389 = vpop.f32.mrf.mxu0
      %v1390 = vadd.f32 0.0, %v1389
      %v1391 = vpop.f32.mrf.mxu0
      %v1392 = vpop.f32.mrf.mxu0
      %v1393 = vadd.f32 0.0, %v1392
      %v1394 = vpop.f32.mrf.mxu0
      %1395 = vmatprep.mubr.bf16.mxu0 %v648
      %1396 = vmatmul.mubr.bf16.gmra.mxu0 %v647
      %v1397 = vpop.f32.mrf.mxu0
      %v1398 = vadd.f32 0.0, %v1397
      %v1399 = vpop.f32.mrf.mxu0
      %v1400 = vpop.f32.mrf.mxu0
      %v1401 = vadd.f32 0.0, %v1400
      %v1402 = vpop.f32.mrf.mxu0
      %1403 = vmatprep.mubr.bf16.mxu0 %v657
      %1404 = vmatmul.mubr.bf16.gmra.mxu0 %v656
      %v1405 = vpop.f32.mrf.mxu0
      %v1406 = vadd.f32 0.0, %v1405
      %v1407 = vpop.f32.mrf.mxu0
      %v1408 = vpop.f32.mrf.mxu0
      %v1409 = vadd.f32 0.0, %v1408
      %v1410 = vpop.f32.mrf.mxu0
      %1411 = vmatprep.mubr.bf16.mxu0 %v666
      %1412 = vmatmul.mubr.bf16.gmra.mxu0 %v665
      %v1413 = vpop.f32.mrf.mxu0
      %v1414 = vadd.f32 0.0, %v1413
      %v1415 = vpop.f32.mrf.mxu0
      %v1416 = vpop.f32.mrf.mxu0
      %v1417 = vadd.f32 0.0, %v1416
      %v1418 = vpop.f32.mrf.mxu0
      %1419 = vmatprep.mubr.bf16.mxu0 %v675
      %1420 = vmatmul.mubr.bf16.gmra.mxu0 %v674
      %v1421 = vpop.f32.mrf.mxu0
      %v1422 = vadd.f32 0.0, %v1421
      %v1423 = vpop.f32.mrf.mxu0
      %v1424 = vpop.f32.mrf.mxu0
      %v1425 = vadd.f32 0.0, %v1424
      %v1426 = vpop.f32.mrf.mxu0
      %1427 = vmatprep.mubr.bf16.mxu0 %v684
      %1428 = vmatmul.mubr.bf16.gmra.mxu0 %v683
      %v1429 = vpop.f32.mrf.mxu0
      %v1430 = vadd.f32 0.0, %v1429
      %v1431 = vpop.f32.mrf.mxu0
      %v1432 = vpop.f32.mrf.mxu0
      %v1433 = vadd.f32 0.0, %v1432
      %v1434 = vpop.f32.mrf.mxu0
      %1435 = vmatprep.mubr.bf16.mxu0 %v693
      %1436 = vmatmul.mubr.bf16.gmra.mxu0 %v692
      %v1437 = vpop.f32.mrf.mxu0
      %v1438 = vadd.f32 0.0, %v1437
      %v1439 = vpop.f32.mrf.mxu0
      %v1440 = vpop.f32.mrf.mxu0
      %v1441 = vadd.f32 0.0, %v1440
      %v1442 = vpop.f32.mrf.mxu0
      %1443 = vmatprep.mubr.bf16.mxu0 %v702
      %1444 = vmatmul.mubr.bf16.gmra.mxu0 %v701
      %v1445 = vpop.f32.mrf.mxu0
      %v1446 = vadd.f32 0.0, %v1445
      %v1447 = vpop.f32.mrf.mxu0
      %v1448 = vpop.f32.mrf.mxu0
      %v1449 = vadd.f32 0.0, %v1448
      %v1450 = vpop.f32.mrf.mxu0
      %1451 = vmatprep.mubr.bf16.mxu0 %v711
      %1452 = vmatmul.mubr.bf16.gmra.mxu0 %v710
      %v1453 = vpop.f32.mrf.mxu0
      %v1454 = vadd.f32 0.0, %v1453
      %v1455 = vpop.f32.mrf.mxu0
      %v1456 = vpop.f32.mrf.mxu0
      %v1457 = vadd.f32 0.0, %v1456
      %v1458 = vpop.f32.mrf.mxu0
      %1459 = vmatprep.mubr.bf16.mxu0 %v720
      %1460 = vmatmul.mubr.bf16.gmra.mxu0 %v719
      %v1461 = vpop.f32.mrf.mxu0
      %v1462 = vadd.f32 0.0, %v1461
      %v1463 = vpop.f32.mrf.mxu0
      %v1464 = vpop.f32.mrf.mxu0
      %v1465 = vadd.f32 0.0, %v1464
      %v1466 = vpop.f32.mrf.mxu0
      %1467 = vmatprep.mubr.bf16.mxu0 %v729
      %1468 = vmatmul.mubr.bf16.gmra.mxu0 %v728
      %v1469 = vpop.f32.mrf.mxu0
      %v1470 = vadd.f32 0.0, %v1469
      %v1471 = vpop.f32.mrf.mxu0
      %v1472 = vpop.f32.mrf.mxu0
      %v1473 = vadd.f32 0.0, %v1472
      %v1474 = vpop.f32.mrf.mxu0
      %1475 = vmatprep.mubr.bf16.mxu0 %v738
      %1476 = vmatmul.mubr.bf16.gmra.mxu0 %v737
      %v1477 = vpop.f32.mrf.mxu0
      %v1478 = vadd.f32 0.0, %v1477
      %v1479 = vpop.f32.mrf.mxu0
      %v1480 = vpop.f32.mrf.mxu0
      %v1481 = vadd.f32 0.0, %v1480
      %v1482 = vpop.f32.mrf.mxu0
      %1483 = vmatprep.mubr.bf16.mxu0 %v747
      %1484 = vmatmul.mubr.bf16.gmra.mxu0 %v746
      %v1485 = vpop.f32.mrf.mxu0
      %v1486 = vadd.f32 0.0, %v1485
      %v1487 = vpop.f32.mrf.mxu0
      %v1488 = vpop.f32.mrf.mxu0
      %v1489 = vadd.f32 0.0, %v1488
      %v1490 = vpop.f32.mrf.mxu0
      %1491 = vdwg.mxu0
      %1492 = vmatprep.subr.bf16.mxu0 0
      %1493 = vmatpush1.bf16.msra.mxu0 %v1210
      %1494 = vmatprep.subr.bf16.mxu0 0
      %1495 = vmatpush1.bf16.msra.mxu0 %v1209
      %1496 = vmatprep.subr.bf16.mxu0 0
      %1497 = vmatpush1.bf16.msra.mxu0 %v1208
      %1498 = vmatprep.subr.bf16.mxu0 0
      %1499 = vmatpush1.bf16.msra.mxu0 %v1207
      %1500 = vmatprep.subr.bf16.mxu0 0
      %1501 = vmatpush1.bf16.msra.mxu0 %v1206
      %1502 = vmatprep.subr.bf16.mxu0 0
      %1503 = vmatpush1.bf16.msra.mxu0 %v1205
      %1504 = vmatprep.subr.bf16.mxu0 0
      %1505 = vmatpush1.bf16.msra.mxu0 %v1204
      %1506 = vmatprep.subr.bf16.mxu0 0
      %1507 = vmatpush1.bf16.msra.mxu0 %v1203
      %1508 = vmatprep.subr.bf16.mxu0 0
      %1509 = vmatpush2.bf16.msra.mxu0 %v1218
      %1510 = vmatprep.subr.bf16.mxu0 0
      %1511 = vmatpush2.bf16.msra.mxu0 %v1217
      %1512 = vmatprep.subr.bf16.mxu0 0
      %1513 = vmatpush2.bf16.msra.mxu0 %v1216
      %1514 = vmatprep.subr.bf16.mxu0 0
      %1515 = vmatpush2.bf16.msra.mxu0 %v1215
      %1516 = vmatprep.subr.bf16.mxu0 0
      %1517 = vmatpush2.bf16.msra.mxu0 %v1214
      %1518 = vmatprep.subr.bf16.mxu0 0
      %1519 = vmatpush2.bf16.msra.mxu0 %v1213
      %1520 = vmatprep.subr.bf16.mxu0 0
      %1521 = vmatpush2.bf16.msra.mxu0 %v1212
      %1522 = vmatprep.subr.bf16.mxu0 0
      %1523 = vmatpush2.bf16.msra.mxu0 %v1211
      %1524 = vmatprep.mubr.bf16.mxu0 %v614
      %1525 = vmatmul.mubr.bf16.gmra.mxu0 %v613
      %v1526 = vpop.f32.mrf.mxu0
      %v1527 = vadd.f32 %v1366, %v1526
      %v1528 = vpop.f32.mrf.mxu0
      %v1529 = vpop.f32.mrf.mxu0
      %v1530 = vadd.f32 %v1369, %v1529
      %v1531 = vpop.f32.mrf.mxu0
      %1532 = vmatprep.mubr.bf16.mxu0 %v623
      %1533 = vmatmul.mubr.bf16.gmra.mxu0 %v622
      %v1534 = vpop.f32.mrf.mxu0
      %v1535 = vadd.f32 %v1374, %v1534
      %v1536 = vpop.f32.mrf.mxu0
      %v1537 = vpop.f32.mrf.mxu0
      %v1538 = vadd.f32 %v1377, %v1537
      %v1539 = vpop.f32.mrf.mxu0
      %1540 = vmatprep.mubr.bf16.mxu0 %v632
      %1541 = vmatmul.mubr.bf16.gmra.mxu0 %v631
      %v1542 = vpop.f32.mrf.mxu0
      %v1543 = vadd.f32 %v1382, %v1542
      %v1544 = vpop.f32.mrf.mxu0
      %v1545 = vpop.f32.mrf.mxu0
      %v1546 = vadd.f32 %v1385, %v1545
      %v1547 = vpop.f32.mrf.mxu0
      %1548 = vmatprep.mubr.bf16.mxu0 %v641
      %1549 = vmatmul.mubr.bf16.gmra.mxu0 %v640
      %v1550 = vpop.f32.mrf.mxu0
      %v1551 = vadd.f32 %v1390, %v1550
      %v1552 = vpop.f32.mrf.mxu0
      %v1553 = vpop.f32.mrf.mxu0
      %v1554 = vadd.f32 %v1393, %v1553
      %v1555 = vpop.f32.mrf.mxu0
      %1556 = vmatprep.mubr.bf16.mxu0 %v650
      %1557 = vmatmul.mubr.bf16.gmra.mxu0 %v649
      %v1558 = vpop.f32.mrf.mxu0
      %v1559 = vadd.f32 %v1398, %v1558
      %v1560 = vpop.f32.mrf.mxu0
      %v1561 = vpop.f32.mrf.mxu0
      %v1562 = vadd.f32 %v1401, %v1561
      %v1563 = vpop.f32.mrf.mxu0
      %1564 = vmatprep.mubr.bf16.mxu0 %v659
      %1565 = vmatmul.mubr.bf16.gmra.mxu0 %v658
      %v1566 = vpop.f32.mrf.mxu0
      %v1567 = vadd.f32 %v1406, %v1566
      %v1568 = vpop.f32.mrf.mxu0
      %v1569 = vpop.f32.mrf.mxu0
      %v1570 = vadd.f32 %v1409, %v1569
      %v1571 = vpop.f32.mrf.mxu0
      %1572 = vmatprep.mubr.bf16.mxu0 %v668
      %1573 = vmatmul.mubr.bf16.gmra.mxu0 %v667
      %v1574 = vpop.f32.mrf.mxu0
      %v1575 = vadd.f32 %v1414, %v1574
      %v1576 = vpop.f32.mrf.mxu0
      %v1577 = vpop.f32.mrf.mxu0
      %v1578 = vadd.f32 %v1417, %v1577
      %v1579 = vpop.f32.mrf.mxu0
      %1580 = vmatprep.mubr.bf16.mxu0 %v677
      %1581 = vmatmul.mubr.bf16.gmra.mxu0 %v676
      %v1582 = vpop.f32.mrf.mxu0
      %v1583 = vadd.f32 %v1422, %v1582
      %v1584 = vpop.f32.mrf.mxu0
      %v1585 = vpop.f32.mrf.mxu0
      %v1586 = vadd.f32 %v1425, %v1585
      %v1587 = vpop.f32.mrf.mxu0
      %1588 = vmatprep.mubr.bf16.mxu0 %v686
      %1589 = vmatmul.mubr.bf16.gmra.mxu0 %v685
      %v1590 = vpop.f32.mrf.mxu0
      %v1591 = vadd.f32 %v1430, %v1590
      %v1592 = vpop.f32.mrf.mxu0
      %v1593 = vpop.f32.mrf.mxu0
      %v1594 = vadd.f32 %v1433, %v1593
      %v1595 = vpop.f32.mrf.mxu0
      %1596 = vmatprep.mubr.bf16.mxu0 %v695
      %1597 = vmatmul.mubr.bf16.gmra.mxu0 %v694
      %v1598 = vpop.f32.mrf.mxu0
      %v1599 = vadd.f32 %v1438, %v1598
      %v1600 = vpop.f32.mrf.mxu0
      %v1601 = vpop.f32.mrf.mxu0
      %v1602 = vadd.f32 %v1441, %v1601
      %v1603 = vpop.f32.mrf.mxu0
      %1604 = vmatprep.mubr.bf16.mxu0 %v704
      %1605 = vmatmul.mubr.bf16.gmra.mxu0 %v703
      %v1606 = vpop.f32.mrf.mxu0
      %v1607 = vadd.f32 %v1446, %v1606
      %v1608 = vpop.f32.mrf.mxu0
      %v1609 = vpop.f32.mrf.mxu0
      %v1610 = vadd.f32 %v1449, %v1609
      %v1611 = vpop.f32.mrf.mxu0
      %1612 = vmatprep.mubr.bf16.mxu0 %v713
      %1613 = vmatmul.mubr.bf16.gmra.mxu0 %v712
      %v1614 = vpop.f32.mrf.mxu0
      %v1615 = vadd.f32 %v1454, %v1614
      %v1616 = vpop.f32.mrf.mxu0
      %v1617 = vpop.f32.mrf.mxu0
      %v1618 = vadd.f32 %v1457, %v1617
      %v1619 = vpop.f32.mrf.mxu0
      %1620 = vmatprep.mubr.bf16.mxu0 %v722
      %1621 = vmatmul.mubr.bf16.gmra.mxu0 %v721
      %v1622 = vpop.f32.mrf.mxu0
      %v1623 = vadd.f32 %v1462, %v1622
      %v1624 = vpop.f32.mrf.mxu0
      %v1625 = vpop.f32.mrf.mxu0
      %v1626 = vadd.f32 %v1465, %v1625
      %v1627 = vpop.f32.mrf.mxu0
      %1628 = vmatprep.mubr.bf16.mxu0 %v731
      %1629 = vmatmul.mubr.bf16.gmra.mxu0 %v730
      %v1630 = vpop.f32.mrf.mxu0
      %v1631 = vadd.f32 %v1470, %v1630
      %v1632 = vpop.f32.mrf.mxu0
      %v1633 = vpop.f32.mrf.mxu0
      %v1634 = vadd.f32 %v1473, %v1633
      %v1635 = vpop.f32.mrf.mxu0
      %1636 = vmatprep.mubr.bf16.mxu0 %v740
      %1637 = vmatmul.mubr.bf16.gmra.mxu0 %v739
      %v1638 = vpop.f32.mrf.mxu0
      %v1639 = vadd.f32 %v1478, %v1638
      %v1640 = vpop.f32.mrf.mxu0
      %v1641 = vpop.f32.mrf.mxu0
      %v1642 = vadd.f32 %v1481, %v1641
      %v1643 = vpop.f32.mrf.mxu0
      %1644 = vmatprep.mubr.bf16.mxu0 %v749
      %1645 = vmatmul.mubr.bf16.gmra.mxu0 %v748
      %v1646 = vpop.f32.mrf.mxu0
      %v1647 = vadd.f32 %v1486, %v1646
      %v1648 = vpop.f32.mrf.mxu0
      %v1649 = vpop.f32.mrf.mxu0
      %v1650 = vadd.f32 %v1489, %v1649
      %v1651 = vpop.f32.mrf.mxu0
      %1652 = vdwg.mxu0
      %1653 = vmatprep.subr.bf16.mxu0 0
      %1654 = vmatpush1.bf16.msra.mxu0 %v1226
      %1655 = vmatprep.subr.bf16.mxu0 0
      %1656 = vmatpush1.bf16.msra.mxu0 %v1225
      %1657 = vmatprep.subr.bf16.mxu0 0
      %1658 = vmatpush1.bf16.msra.mxu0 %v1224
      %1659 = vmatprep.subr.bf16.mxu0 0
      %1660 = vmatpush1.bf16.msra.mxu0 %v1223
      %1661 = vmatprep.subr.bf16.mxu0 0
      %1662 = vmatpush1.bf16.msra.mxu0 %v1222
      %1663 = vmatprep.subr.bf16.mxu0 0
      %1664 = vmatpush1.bf16.msra.mxu0 %v1221
      %1665 = vmatprep.subr.bf16.mxu0 0
      %1666 = vmatpush1.bf16.msra.mxu0 %v1220
      %1667 = vmatprep.subr.bf16.mxu0 0
      %1668 = vmatpush1.bf16.msra.mxu0 %v1219
      %1669 = vmatprep.subr.bf16.mxu0 0
      %1670 = vmatpush2.bf16.msra.mxu0 %v1234
      %1671 = vmatprep.subr.bf16.mxu0 0
      %1672 = vmatpush2.bf16.msra.mxu0 %v1233
      %1673 = vmatprep.subr.bf16.mxu0 0
      %1674 = vmatpush2.bf16.msra.mxu0 %v1232
      %1675 = vmatprep.subr.bf16.mxu0 0
      %1676 = vmatpush2.bf16.msra.mxu0 %v1231
      %1677 = vmatprep.subr.bf16.mxu0 0
      %1678 = vmatpush2.bf16.msra.mxu0 %v1230
      %1679 = vmatprep.subr.bf16.mxu0 0
      %1680 = vmatpush2.bf16.msra.mxu0 %v1229
      %1681 = vmatprep.subr.bf16.mxu0 0
      %1682 = vmatpush2.bf16.msra.mxu0 %v1228
      %1683 = vmatprep.subr.bf16.mxu0 0
      %1684 = vmatpush2.bf16.msra.mxu0 %v1227
      %1685 = vmatprep.mubr.bf16.mxu0 %v616
      %1686 = vmatmul.mubr.bf16.gmra.mxu0 %v615
      %v1687 = vpop.f32.mrf.mxu0
      %v1688 = vadd.f32 %v1527, %v1687
      %v1689 = vpop.f32.mrf.mxu0
      %v1690 = vpop.f32.mrf.mxu0
      %v1691 = vadd.f32 %v1530, %v1690
      %v1692 = vpop.f32.mrf.mxu0
      %1693 = vmatprep.mubr.bf16.mxu0 %v625
      %1694 = vmatmul.mubr.bf16.gmra.mxu0 %v624
      %v1695 = vpop.f32.mrf.mxu0
      %v1696 = vadd.f32 %v1535, %v1695
      %v1697 = vpop.f32.mrf.mxu0
      %v1698 = vpop.f32.mrf.mxu0
      %v1699 = vadd.f32 %v1538, %v1698
      %v1700 = vpop.f32.mrf.mxu0
      %1701 = vmatprep.mubr.bf16.mxu0 %v634
      %1702 = vmatmul.mubr.bf16.gmra.mxu0 %v633
      %v1703 = vpop.f32.mrf.mxu0
      %v1704 = vadd.f32 %v1543, %v1703
      %v1705 = vpop.f32.mrf.mxu0
      %v1706 = vpop.f32.mrf.mxu0
      %v1707 = vadd.f32 %v1546, %v1706
      %v1708 = vpop.f32.mrf.mxu0
      %1709 = vmatprep.mubr.bf16.mxu0 %v643
      %1710 = vmatmul.mubr.bf16.gmra.mxu0 %v642
      %v1711 = vpop.f32.mrf.mxu0
      %v1712 = vadd.f32 %v1551, %v1711
      %v1713 = vpop.f32.mrf.mxu0
      %v1714 = vpop.f32.mrf.mxu0
      %v1715 = vadd.f32 %v1554, %v1714
      %v1716 = vpop.f32.mrf.mxu0
      %1717 = vmatprep.mubr.bf16.mxu0 %v652
      %1718 = vmatmul.mubr.bf16.gmra.mxu0 %v651
      %v1719 = vpop.f32.mrf.mxu0
      %v1720 = vadd.f32 %v1559, %v1719
      %v1721 = vpop.f32.mrf.mxu0
      %v1722 = vpop.f32.mrf.mxu0
      %v1723 = vadd.f32 %v1562, %v1722
      %v1724 = vpop.f32.mrf.mxu0
      %1725 = vmatprep.mubr.bf16.mxu0 %v661
      %1726 = vmatmul.mubr.bf16.gmra.mxu0 %v660
      %v1727 = vpop.f32.mrf.mxu0
      %v1728 = vadd.f32 %v1567, %v1727
      %v1729 = vpop.f32.mrf.mxu0
      %v1730 = vpop.f32.mrf.mxu0
      %v1731 = vadd.f32 %v1570, %v1730
      %v1732 = vpop.f32.mrf.mxu0
      %1733 = vmatprep.mubr.bf16.mxu0 %v670
      %1734 = vmatmul.mubr.bf16.gmra.mxu0 %v669
      %v1735 = vpop.f32.mrf.mxu0
      %v1736 = vadd.f32 %v1575, %v1735
      %v1737 = vpop.f32.mrf.mxu0
      %v1738 = vpop.f32.mrf.mxu0
      %v1739 = vadd.f32 %v1578, %v1738
      %v1740 = vpop.f32.mrf.mxu0
      %1741 = vmatprep.mubr.bf16.mxu0 %v679
      %1742 = vmatmul.mubr.bf16.gmra.mxu0 %v678
      %v1743 = vpop.f32.mrf.mxu0
      %v1744 = vadd.f32 %v1583, %v1743
      %v1745 = vpop.f32.mrf.mxu0
      %v1746 = vpop.f32.mrf.mxu0
      %v1747 = vadd.f32 %v1586, %v1746
      %v1748 = vpop.f32.mrf.mxu0
      %1749 = vmatprep.mubr.bf16.mxu0 %v688
      %1750 = vmatmul.mubr.bf16.gmra.mxu0 %v687
      %v1751 = vpop.f32.mrf.mxu0
      %v1752 = vadd.f32 %v1591, %v1751
      %v1753 = vpop.f32.mrf.mxu0
      %v1754 = vpop.f32.mrf.mxu0
      %v1755 = vadd.f32 %v1594, %v1754
      %v1756 = vpop.f32.mrf.mxu0
      %1757 = vmatprep.mubr.bf16.mxu0 %v697
      %1758 = vmatmul.mubr.bf16.gmra.mxu0 %v696
      %v1759 = vpop.f32.mrf.mxu0
      %v1760 = vadd.f32 %v1599, %v1759
      %v1761 = vpop.f32.mrf.mxu0
      %v1762 = vpop.f32.mrf.mxu0
      %v1763 = vadd.f32 %v1602, %v1762
      %v1764 = vpop.f32.mrf.mxu0
      %1765 = vmatprep.mubr.bf16.mxu0 %v706
      %1766 = vmatmul.mubr.bf16.gmra.mxu0 %v705
      %v1767 = vpop.f32.mrf.mxu0
      %v1768 = vadd.f32 %v1607, %v1767
      %v1769 = vpop.f32.mrf.mxu0
      %v1770 = vpop.f32.mrf.mxu0
      %v1771 = vadd.f32 %v1610, %v1770
      %v1772 = vpop.f32.mrf.mxu0
      %1773 = vmatprep.mubr.bf16.mxu0 %v715
      %1774 = vmatmul.mubr.bf16.gmra.mxu0 %v714
      %v1775 = vpop.f32.mrf.mxu0
      %v1776 = vadd.f32 %v1615, %v1775
      %v1777 = vpop.f32.mrf.mxu0
      %v1778 = vpop.f32.mrf.mxu0
      %v1779 = vadd.f32 %v1618, %v1778
      %v1780 = vpop.f32.mrf.mxu0
      %1781 = vmatprep.mubr.bf16.mxu0 %v724
      %1782 = vmatmul.mubr.bf16.gmra.mxu0 %v723
      %v1783 = vpop.f32.mrf.mxu0
      %v1784 = vadd.f32 %v1623, %v1783
      %v1785 = vpop.f32.mrf.mxu0
      %v1786 = vpop.f32.mrf.mxu0
      %v1787 = vadd.f32 %v1626, %v1786
      %v1788 = vpop.f32.mrf.mxu0
      %1789 = vmatprep.mubr.bf16.mxu0 %v733
      %1790 = vmatmul.mubr.bf16.gmra.mxu0 %v732
      %v1791 = vpop.f32.mrf.mxu0
      %v1792 = vadd.f32 %v1631, %v1791
      %v1793 = vpop.f32.mrf.mxu0
      %v1794 = vpop.f32.mrf.mxu0
      %v1795 = vadd.f32 %v1634, %v1794
      %v1796 = vpop.f32.mrf.mxu0
      %1797 = vmatprep.mubr.bf16.mxu0 %v742
      %1798 = vmatmul.mubr.bf16.gmra.mxu0 %v741
      %v1799 = vpop.f32.mrf.mxu0
      %v1800 = vadd.f32 %v1639, %v1799
      %v1801 = vpop.f32.mrf.mxu0
      %v1802 = vpop.f32.mrf.mxu0
      %v1803 = vadd.f32 %v1642, %v1802
      %v1804 = vpop.f32.mrf.mxu0
      %1805 = vmatprep.mubr.bf16.mxu0 %v751
      %1806 = vmatmul.mubr.bf16.gmra.mxu0 %v750
      %v1807 = vpop.f32.mrf.mxu0
      %v1808 = vadd.f32 %v1647, %v1807
      %v1809 = vpop.f32.mrf.mxu0
      %v1810 = vpop.f32.mrf.mxu0
      %v1811 = vadd.f32 %v1650, %v1810
      %v1812 = vpop.f32.mrf.mxu0
      %1813 = vdwg.mxu0
      %1814 = vmatprep.subr.bf16.mxu0 0
      %1815 = vmatpush1.bf16.msra.mxu0 %v1242
      %1816 = vmatprep.subr.bf16.mxu0 0
      %1817 = vmatpush1.bf16.msra.mxu0 %v1241
      %1818 = vmatprep.subr.bf16.mxu0 0
      %1819 = vmatpush1.bf16.msra.mxu0 %v1240
      %1820 = vmatprep.subr.bf16.mxu0 0
      %1821 = vmatpush1.bf16.msra.mxu0 %v1239
      %1822 = vmatprep.subr.bf16.mxu0 0
      %1823 = vmatpush1.bf16.msra.mxu0 %v1238
      %1824 = vmatprep.subr.bf16.mxu0 0
      %1825 = vmatpush1.bf16.msra.mxu0 %v1237
      %1826 = vmatprep.subr.bf16.mxu0 0
      %1827 = vmatpush1.bf16.msra.mxu0 %v1236
      %1828 = vmatprep.subr.bf16.mxu0 0
      %1829 = vmatpush1.bf16.msra.mxu0 %v1235
      %1830 = vmatprep.subr.bf16.mxu0 0
      %1831 = vmatpush2.bf16.msra.mxu0 %v1250
      %1832 = vmatprep.subr.bf16.mxu0 0
      %1833 = vmatpush2.bf16.msra.mxu0 %v1249
      %1834 = vmatprep.subr.bf16.mxu0 0
      %1835 = vmatpush2.bf16.msra.mxu0 %v1248
      %1836 = vmatprep.subr.bf16.mxu0 0
      %1837 = vmatpush2.bf16.msra.mxu0 %v1247
      %1838 = vmatprep.subr.bf16.mxu0 0
      %1839 = vmatpush2.bf16.msra.mxu0 %v1246
      %1840 = vmatprep.subr.bf16.mxu0 0
      %1841 = vmatpush2.bf16.msra.mxu0 %v1245
      %1842 = vmatprep.subr.bf16.mxu0 0
      %1843 = vmatpush2.bf16.msra.mxu0 %v1244
      %1844 = vmatprep.subr.bf16.mxu0 0
      %1845 = vmatpush2.bf16.msra.mxu0 %v1243
      %1846 = vmatprep.mubr.bf16.mxu0 %v618
      %1847 = vmatmul.mubr.bf16.gmra.mxu0 %v617
      %v1848 = vpop.f32.mrf.mxu0
      %v1849 = vadd.f32 %v1688, %v1848
      %v1850 = vpop.f32.mrf.mxu0
      %v1851 = vpop.f32.mrf.mxu0
      %v1852 = vadd.f32 %v1691, %v1851
      %v1853 = vpop.f32.mrf.mxu0
      %1854 = vmatprep.mubr.bf16.mxu0 %v627
      %1855 = vmatmul.mubr.bf16.gmra.mxu0 %v626
      %v1856 = vpop.f32.mrf.mxu0
      %v1857 = vadd.f32 %v1696, %v1856
      %v1858 = vpop.f32.mrf.mxu0
      %v1859 = vpop.f32.mrf.mxu0
      %v1860 = vadd.f32 %v1699, %v1859
      %v1861 = vpop.f32.mrf.mxu0
      %1862 = vmatprep.mubr.bf16.mxu0 %v636
      %1863 = vmatmul.mubr.bf16.gmra.mxu0 %v635
      %v1864 = vpop.f32.mrf.mxu0
      %v1865 = vadd.f32 %v1704, %v1864
      %v1866 = vpop.f32.mrf.mxu0
      %v1867 = vpop.f32.mrf.mxu0
      %v1868 = vadd.f32 %v1707, %v1867
      %v1869 = vpop.f32.mrf.mxu0
      %1870 = vmatprep.mubr.bf16.mxu0 %v645
      %1871 = vmatmul.mubr.bf16.gmra.mxu0 %v644
      %v1872 = vpop.f32.mrf.mxu0
      %v1873 = vadd.f32 %v1712, %v1872
      %v1874 = vpop.f32.mrf.mxu0
      %v1875 = vpop.f32.mrf.mxu0
      %v1876 = vadd.f32 %v1715, %v1875
      %v1877 = vpop.f32.mrf.mxu0
      %1878 = vmatprep.mubr.bf16.mxu0 %v654
      %1879 = vmatmul.mubr.bf16.gmra.mxu0 %v653
      %v1880 = vpop.f32.mrf.mxu0
      %v1881 = vadd.f32 %v1720, %v1880
      %v1882 = vpop.f32.mrf.mxu0
      %v1883 = vpop.f32.mrf.mxu0
      %v1884 = vadd.f32 %v1723, %v1883
      %v1885 = vpop.f32.mrf.mxu0
      %1886 = vmatprep.mubr.bf16.mxu0 %v663
      %1887 = vmatmul.mubr.bf16.gmra.mxu0 %v662
      %v1888 = vpop.f32.mrf.mxu0
      %v1889 = vadd.f32 %v1728, %v1888
      %v1890 = vpop.f32.mrf.mxu0
      %v1891 = vpop.f32.mrf.mxu0
      %v1892 = vadd.f32 %v1731, %v1891
      %v1893 = vpop.f32.mrf.mxu0
      %1894 = vmatprep.mubr.bf16.mxu0 %v672
      %1895 = vmatmul.mubr.bf16.gmra.mxu0 %v671
      %v1896 = vpop.f32.mrf.mxu0
      %v1897 = vadd.f32 %v1736, %v1896
      %v1898 = vpop.f32.mrf.mxu0
      %v1899 = vpop.f32.mrf.mxu0
      %v1900 = vadd.f32 %v1739, %v1899
      %v1901 = vpop.f32.mrf.mxu0
      %1902 = vmatprep.mubr.bf16.mxu0 %v681
      %1903 = vmatmul.mubr.bf16.gmra.mxu0 %v680
      %v1904 = vpop.f32.mrf.mxu0
      %v1905 = vadd.f32 %v1744, %v1904
      %v1906 = vpop.f32.mrf.mxu0
      %v1907 = vpop.f32.mrf.mxu0
      %v1908 = vadd.f32 %v1747, %v1907
      %v1909 = vpop.f32.mrf.mxu0
      %1910 = vmatprep.mubr.bf16.mxu0 %v690
      %1911 = vmatmul.mubr.bf16.gmra.mxu0 %v689
      %v1912 = vpop.f32.mrf.mxu0
      %v1913 = vadd.f32 %v1752, %v1912
      %v1914 = vpop.f32.mrf.mxu0
      %v1915 = vpop.f32.mrf.mxu0
      %v1916 = vadd.f32 %v1755, %v1915
      %v1917 = vpop.f32.mrf.mxu0
      %1918 = vmatprep.mubr.bf16.mxu0 %v699
      %1919 = vmatmul.mubr.bf16.gmra.mxu0 %v698
      %v1920 = vpop.f32.mrf.mxu0
      %v1921 = vadd.f32 %v1760, %v1920
      %v1922 = vpop.f32.mrf.mxu0
      %v1923 = vpop.f32.mrf.mxu0
      %v1924 = vadd.f32 %v1763, %v1923
      %v1925 = vpop.f32.mrf.mxu0
      %1926 = vmatprep.mubr.bf16.mxu0 %v708
      %1927 = vmatmul.mubr.bf16.gmra.mxu0 %v707
      %v1928 = vpop.f32.mrf.mxu0
      %v1929 = vadd.f32 %v1768, %v1928
      %v1930 = vpop.f32.mrf.mxu0
      %v1931 = vpop.f32.mrf.mxu0
      %v1932 = vadd.f32 %v1771, %v1931
      %v1933 = vpop.f32.mrf.mxu0
      %1934 = vmatprep.mubr.bf16.mxu0 %v717
      %1935 = vmatmul.mubr.bf16.gmra.mxu0 %v716
      %v1936 = vpop.f32.mrf.mxu0
      %v1937 = vadd.f32 %v1776, %v1936
      %v1938 = vpop.f32.mrf.mxu0
      %v1939 = vpop.f32.mrf.mxu0
      %v1940 = vadd.f32 %v1779, %v1939
      %v1941 = vpop.f32.mrf.mxu0
      %1942 = vmatprep.mubr.bf16.mxu0 %v726
      %1943 = vmatmul.mubr.bf16.gmra.mxu0 %v725
      %v1944 = vpop.f32.mrf.mxu0
      %v1945 = vadd.f32 %v1784, %v1944
      %v1946 = vpop.f32.mrf.mxu0
      %v1947 = vpop.f32.mrf.mxu0
      %v1948 = vadd.f32 %v1787, %v1947
      %v1949 = vpop.f32.mrf.mxu0
      %1950 = vmatprep.mubr.bf16.mxu0 %v735
      %1951 = vmatmul.mubr.bf16.gmra.mxu0 %v734
      %v1952 = vpop.f32.mrf.mxu0
      %v1953 = vadd.f32 %v1792, %v1952
      %v1954 = vpop.f32.mrf.mxu0
      %v1955 = vpop.f32.mrf.mxu0
      %v1956 = vadd.f32 %v1795, %v1955
      %v1957 = vpop.f32.mrf.mxu0
      %1958 = vmatprep.mubr.bf16.mxu0 %v744
      %1959 = vmatmul.mubr.bf16.gmra.mxu0 %v743
      %v1960 = vpop.f32.mrf.mxu0
      %v1961 = vadd.f32 %v1800, %v1960
      %v1962 = vpop.f32.mrf.mxu0
      %v1963 = vpop.f32.mrf.mxu0
      %v1964 = vadd.f32 %v1803, %v1963
      %v1965 = vpop.f32.mrf.mxu0
      %1966 = vmatprep.mubr.bf16.mxu0 %v753
      %1967 = vmatmul.mubr.bf16.gmra.mxu0 %v752
      %v1968 = vpop.f32.mrf.mxu0
      %v1969 = vadd.f32 %v1808, %v1968
      %v1970 = vpop.f32.mrf.mxu0
      %v1971 = vpop.f32.mrf.mxu0
      %v1972 = vadd.f32 %v1811, %v1971
      %v1973 = vpop.f32.mrf.mxu0
      %1974 = vdwg.mxu0
      %1975 = vmatprep.subr.bf16.mxu0 0
      %1976 = vmatpush1.bf16.msra.mxu0 %v1258
      %1977 = vmatprep.subr.bf16.mxu0 0
      %1978 = vmatpush1.bf16.msra.mxu0 %v1257
      %1979 = vmatprep.subr.bf16.mxu0 0
      %1980 = vmatpush1.bf16.msra.mxu0 %v1256
      %1981 = vmatprep.subr.bf16.mxu0 0
      %1982 = vmatpush1.bf16.msra.mxu0 %v1255
      %1983 = vmatprep.subr.bf16.mxu0 0
      %1984 = vmatpush1.bf16.msra.mxu0 %v1254
      %1985 = vmatprep.subr.bf16.mxu0 0
      %1986 = vmatpush1.bf16.msra.mxu0 %v1253
      %1987 = vmatprep.subr.bf16.mxu0 0
      %1988 = vmatpush1.bf16.msra.mxu0 %v1252
      %1989 = vmatprep.subr.bf16.mxu0 0
      %1990 = vmatpush1.bf16.msra.mxu0 %v1251
      %1991 = vmatprep.subr.bf16.mxu0 0
      %1992 = vmatpush2.bf16.msra.mxu0 0
      %1993 = vmatprep.subr.bf16.mxu0 0
      %1994 = vmatpush2.bf16.msra.mxu0 0
      %1995 = vmatprep.subr.bf16.mxu0 0
      %1996 = vmatpush2.bf16.msra.mxu0 0
      %1997 = vmatprep.subr.bf16.mxu0 0
      %1998 = vmatpush2.bf16.msra.mxu0 0
      %1999 = vmatprep.subr.bf16.mxu0 0
      %2000 = vmatpush2.bf16.msra.mxu0 0
      %2001 = vmatprep.subr.bf16.mxu0 0
      %2002 = vmatpush2.bf16.msra.mxu0 0
      %2003 = vmatprep.subr.bf16.mxu0 0
      %2004 = vmatpush2.bf16.msra.mxu0 0
      %2005 = vmatprep.subr.bf16.mxu0 0
      %2006 = vmatpush2.bf16.msra.mxu0 0
      %2007 = vmatprep.mubr.bf16.mxu0 0
      %2008 = vmatmul.mubr.bf16.gmra.mxu0 %v619
      %v2009 = vpop.f32.mrf.mxu0
      %v2010 = vadd.f32 %v1849, %v2009
      %v2011 = vpop.f32.mrf.mxu0
      %v2012 = vpop.f32.mrf.mxu0
      %v2013 = vadd.f32 %v1852, %v2012
      %v2014 = vpop.f32.mrf.mxu0
      %2015 = vmatprep.mubr.bf16.mxu0 0
      %2016 = vmatmul.mubr.bf16.gmra.mxu0 %v628
      %v2017 = vpop.f32.mrf.mxu0
      %v2018 = vadd.f32 %v1857, %v2017
      %v2019 = vpop.f32.mrf.mxu0
      %v2020 = vpop.f32.mrf.mxu0
      %v2021 = vadd.f32 %v1860, %v2020
      %v2022 = vpop.f32.mrf.mxu0
      %2023 = vmatprep.mubr.bf16.mxu0 0
      %2024 = vmatmul.mubr.bf16.gmra.mxu0 %v637
      %v2025 = vpop.f32.mrf.mxu0
      %v2026 = vadd.f32 %v1865, %v2025
      %v2027 = vpop.f32.mrf.mxu0
      %v2028 = vpop.f32.mrf.mxu0
      %v2029 = vadd.f32 %v1868, %v2028
      %v2030 = vpop.f32.mrf.mxu0
      %2031 = vmatprep.mubr.bf16.mxu0 0
      %2032 = vmatmul.mubr.bf16.gmra.mxu0 %v646
      %v2033 = vpop.f32.mrf.mxu0
      %v2034 = vadd.f32 %v1873, %v2033
      %v2035 = vpop.f32.mrf.mxu0
      %v2036 = vpop.f32.mrf.mxu0
      %v2037 = vadd.f32 %v1876, %v2036
      %v2038 = vpop.f32.mrf.mxu0
      %2039 = vmatprep.mubr.bf16.mxu0 0
      %2040 = vmatmul.mubr.bf16.gmra.mxu0 %v655
      %v2041 = vpop.f32.mrf.mxu0
      %v2042 = vadd.f32 %v1881, %v2041
      %v2043 = vpop.f32.mrf.mxu0
      %v2044 = vpop.f32.mrf.mxu0
      %v2045 = vadd.f32 %v1884, %v2044
      %v2046 = vpop.f32.mrf.mxu0
      %2047 = vmatprep.mubr.bf16.mxu0 0
      %2048 = vmatmul.mubr.bf16.gmra.mxu0 %v664
      %v2049 = vpop.f32.mrf.mxu0
      %v2050 = vadd.f32 %v1889, %v2049
      %v2051 = vpop.f32.mrf.mxu0
      %v2052 = vpop.f32.mrf.mxu0
      %v2053 = vadd.f32 %v1892, %v2052
      %v2054 = vpop.f32.mrf.mxu0
      %2055 = vmatprep.mubr.bf16.mxu0 0
      %2056 = vmatmul.mubr.bf16.gmra.mxu0 %v673
      %v2057 = vpop.f32.mrf.mxu0
      %v2058 = vadd.f32 %v1897, %v2057
      %v2059 = vpop.f32.mrf.mxu0
      %v2060 = vpop.f32.mrf.mxu0
      %v2061 = vadd.f32 %v1900, %v2060
      %v2062 = vpop.f32.mrf.mxu0
      %2063 = vmatprep.mubr.bf16.mxu0 0
      %2064 = vmatmul.mubr.bf16.gmra.mxu0 %v682
      %v2065 = vpop.f32.mrf.mxu0
      %v2066 = vadd.f32 %v1905, %v2065
      %v2067 = vpop.f32.mrf.mxu0
      %v2068 = vpop.f32.mrf.mxu0
      %v2069 = vadd.f32 %v1908, %v2068
      %v2070 = vpop.f32.mrf.mxu0
      %2071 = vmatprep.mubr.bf16.mxu0 0
      %2072 = vmatmul.mubr.bf16.gmra.mxu0 %v691
      %v2073 = vpop.f32.mrf.mxu0
      %v2074 = vadd.f32 %v1913, %v2073
      %v2075 = vpop.f32.mrf.mxu0
      %v2076 = vpop.f32.mrf.mxu0
      %v2077 = vadd.f32 %v1916, %v2076
      %v2078 = vpop.f32.mrf.mxu0
      %2079 = vmatprep.mubr.bf16.mxu0 0
      %2080 = vmatmul.mubr.bf16.gmra.mxu0 %v700
      %v2081 = vpop.f32.mrf.mxu0
      %v2082 = vadd.f32 %v1921, %v2081
      %v2083 = vpop.f32.mrf.mxu0
      %v2084 = vpop.f32.mrf.mxu0
      %v2085 = vadd.f32 %v1924, %v2084
      %v2086 = vpop.f32.mrf.mxu0
      %2087 = vmatprep.mubr.bf16.mxu0 0
      %2088 = vmatmul.mubr.bf16.gmra.mxu0 %v709
      %v2089 = vpop.f32.mrf.mxu0
      %v2090 = vadd.f32 %v1929, %v2089
      %v2091 = vpop.f32.mrf.mxu0
      %v2092 = vpop.f32.mrf.mxu0
      %v2093 = vadd.f32 %v1932, %v2092
      %v2094 = vpop.f32.mrf.mxu0
      %2095 = vmatprep.mubr.bf16.mxu0 0
      %2096 = vmatmul.mubr.bf16.gmra.mxu0 %v718
      %v2097 = vpop.f32.mrf.mxu0
      %v2098 = vadd.f32 %v1937, %v2097
      %v2099 = vpop.f32.mrf.mxu0
      %v2100 = vpop.f32.mrf.mxu0
      %v2101 = vadd.f32 %v1940, %v2100
      %v2102 = vpop.f32.mrf.mxu0
      %2103 = vmatprep.mubr.bf16.mxu0 0
      %2104 = vmatmul.mubr.bf16.gmra.mxu0 %v727
      %v2105 = vpop.f32.mrf.mxu0
      %v2106 = vadd.f32 %v1945, %v2105
      %v2107 = vpop.f32.mrf.mxu0
      %v2108 = vpop.f32.mrf.mxu0
      %v2109 = vadd.f32 %v1948, %v2108
      %v2110 = vpop.f32.mrf.mxu0
      %2111 = vmatprep.mubr.bf16.mxu0 0
      %2112 = vmatmul.mubr.bf16.gmra.mxu0 %v736
      %v2113 = vpop.f32.mrf.mxu0
      %v2114 = vadd.f32 %v1953, %v2113
      %v2115 = vpop.f32.mrf.mxu0
      %v2116 = vpop.f32.mrf.mxu0
      %v2117 = vadd.f32 %v1956, %v2116
      %v2118 = vpop.f32.mrf.mxu0
      %2119 = vmatprep.mubr.bf16.mxu0 0
      %2120 = vmatmul.mubr.bf16.gmra.mxu0 %v745
      %v2121 = vpop.f32.mrf.mxu0
      %v2122 = vadd.f32 %v1961, %v2121
      %v2123 = vpop.f32.mrf.mxu0
      %v2124 = vpop.f32.mrf.mxu0
      %v2125 = vadd.f32 %v1964, %v2124
      %v2126 = vpop.f32.mrf.mxu0
      %2127 = vmatprep.mubr.bf16.mxu0 0
      %2128 = vmatmul.mubr.bf16.gmra.mxu0 %v754
      %v2129 = vpop.f32.mrf.mxu0
      %v2130 = vadd.f32 %v1969, %v2129
      %v2131 = vpop.f32.mrf.mxu0
      %v2132 = vpop.f32.mrf.mxu0
      %v2133 = vadd.f32 %v1972, %v2132
      %v2134 = vpop.f32.mrf.mxu0
      %2135 = vdwg.mxu0
      %2136 = vst [vmem:[%s195] sm:$0xff] %v2010
      %2137 = vst [vmem:[%s195 + $0x8] sm:$0xff] %v2013
      %2138 = vst [vmem:[%s195 + $0x10] sm:$0xff] %v2018
      %2139 = vst [vmem:[%s195 + $0x18] sm:$0xff] %v2021
      %2140 = vst [vmem:[%s195 + $0x20] sm:$0xff] %v2026
      %2141 = vst [vmem:[%s195 + $0x28] sm:$0xff] %v2029
      %2142 = vst [vmem:[%s195 + $0x30] sm:$0xff] %v2034
      %2143 = vst [vmem:[%s195 + $0x38] sm:$0xff] %v2037
      %2144 = vst [vmem:[%s195 + $0x40] sm:$0xff] %v2042
      %2145 = vst [vmem:[%s195 + $0x48] sm:$0xff] %v2045
      %2146 = vst [vmem:[%s195 + $0x50] sm:$0xff] %v2050
      %2147 = vst [vmem:[%s195 + $0x58] sm:$0xff] %v2053
      %2148 = vst [vmem:[%s195 + $0x60] sm:$0xff] %v2058
      %2149 = vst [vmem:[%s195 + $0x68] sm:$0xff] %v2061
      %2150 = vst [vmem:[%s195 + $0x70] sm:$0xff] %v2066
      %2151 = vst [vmem:[%s195 + $0x78] sm:$0xff] %v2069
      %2152 = vst [vmem:[%s195 + $0x80] sm:$0xff] %v2074
      %2153 = vst [vmem:[%s195 + $0x88] sm:$0xff] %v2077
      %2154 = vst [vmem:[%s195 + $0x90] sm:$0xff] %v2082
      %2155 = vst [vmem:[%s195 + $0x98] sm:$0xff] %v2085
      %2156 = vst [vmem:[%s195 + $0xa0] sm:$0xff] %v2090
      %2157 = vst [vmem:[%s195 + $0xa8] sm:$0xff] %v2093
      %2158 = vst [vmem:[%s195 + $0xb0] sm:$0xff] %v2098
      %2159 = vst [vmem:[%s195 + $0xb8] sm:$0xff] %v2101
      %2160 = vst [vmem:[%s195 + $0xc0] sm:$0xff] %v2106
      %2161 = vst [vmem:[%s195 + $0xc8] sm:$0xff] %v2109
      %2162 = vst [vmem:[%s195 + $0xd0] sm:$0xff] %v2114
      %2163 = vst [vmem:[%s195 + $0xd8] sm:$0xff] %v2117
      %2164 = vst [vmem:[%s195 + $0xe0] sm:$0xff] %v2122
      %2165 = vst [vmem:[%s195 + $0xe8] sm:$0xff] %v2125
      %2166 = vst [vmem:[%s195 + $0xf0] sm:$0xff] %v2130
      %2167 = vst [vmem:[%s195 + $0xf8] sm:$0xff] %v2133
      %v2168 = vadd.f32 %v2010, %v2013
      %v2169 = vadd.f32 %v2168, %v2018
      %v2170 = vadd.f32 %v2169, %v2021
      %v2171 = vadd.f32 %v2170, %v2026
      %v2172 = vadd.f32 %v2171, %v2029
      %v2173 = vadd.f32 %v2172, %v2034
      %v2174 = vadd.f32 %v2173, %v2037
      %v2175 = vadd.f32 %v2174, %v2042
      %v2176 = vadd.f32 %v2175, %v2045
      %v2177 = vadd.f32 %v2176, %v2050
      %v2178 = vadd.f32 %v2177, %v2053
      %v2179 = vadd.f32 %v2178, %v2058
      %v2180 = vadd.f32 %v2179, %v2061
      %v2181 = vadd.f32 %v2180, %v2066
      %v2182 = vadd.f32 %v2181, %v2069
      %v2183 = vadd.f32 %v2182, %v2074
      %v2184 = vadd.f32 %v2183, %v2077
      %v2185 = vadd.f32 %v2184, %v2082
      %v2186 = vadd.f32 %v2185, %v2085
      %v2187 = vadd.f32 %v2186, %v2090
      %v2188 = vadd.f32 %v2187, %v2093
      %v2189 = vadd.f32 %v2188, %v2098
      %v2190 = vadd.f32 %v2189, %v2101
      %v2191 = vadd.f32 %v2190, %v2106
      %v2192 = vadd.f32 %v2191, %v2109
      %v2193 = vadd.f32 %v2192, %v2114
      %v2194 = vadd.f32 %v2193, %v2117
      %v2195 = vadd.f32 %v2194, %v2122
      %v2196 = vadd.f32 %v2195, %v2125
      %v2197 = vadd.f32 %v2196, %v2130
      %v2198 = vadd.f32 %v2197, %v2133
      %v2199 = vrot.slane %v2198, 4
      %v2200 = vadd.f32 %v2198, %v2199
      %v2201 = vrot.slane %v2200, 2
      %v2202 = vadd.f32 %v2200, %v2201
      %v2203 = vrot.slane %v2202, 1
      %v2204 = vadd.f32 %v2202, %v2203
      %v2205 = vmul.f32 %v2010, %v2010
      %v2206 = vmul.f32 %v2013, %v2013
      %v2207 = vmul.f32 %v2018, %v2018
      %v2208 = vmul.f32 %v2021, %v2021
      %v2209 = vmul.f32 %v2026, %v2026
      %v2210 = vmul.f32 %v2029, %v2029
      %v2211 = vmul.f32 %v2034, %v2034
      %v2212 = vmul.f32 %v2037, %v2037
      %v2213 = vmul.f32 %v2042, %v2042
      %v2214 = vmul.f32 %v2045, %v2045
      %v2215 = vmul.f32 %v2050, %v2050
      %v2216 = vmul.f32 %v2053, %v2053
      %v2217 = vmul.f32 %v2058, %v2058
      %v2218 = vmul.f32 %v2061, %v2061
      %v2219 = vmul.f32 %v2066, %v2066
      %v2220 = vmul.f32 %v2069, %v2069
      %v2221 = vmul.f32 %v2074, %v2074
      %v2222 = vmul.f32 %v2077, %v2077
      %v2223 = vmul.f32 %v2082, %v2082
      %v2224 = vmul.f32 %v2085, %v2085
      %v2225 = vmul.f32 %v2090, %v2090
      %v2226 = vmul.f32 %v2093, %v2093
      %v2227 = vmul.f32 %v2098, %v2098
      %v2228 = vmul.f32 %v2101, %v2101
      %v2229 = vmul.f32 %v2106, %v2106
      %v2230 = vmul.f32 %v2109, %v2109
      %v2231 = vmul.f32 %v2114, %v2114
      %v2232 = vmul.f32 %v2117, %v2117
      %v2233 = vmul.f32 %v2122, %v2122
      %v2234 = vmul.f32 %v2125, %v2125
      %v2235 = vmul.f32 %v2130, %v2130
      %v2236 = vmul.f32 %v2133, %v2133
      %v2237 = vadd.f32 %v2205, %v2206
      %v2238 = vadd.f32 %v2237, %v2207
      %v2239 = vadd.f32 %v2238, %v2208
      %v2240 = vadd.f32 %v2239, %v2209
      %v2241 = vadd.f32 %v2240, %v2210
      %v2242 = vadd.f32 %v2241, %v2211
      %v2243 = vadd.f32 %v2242, %v2212
      %v2244 = vadd.f32 %v2243, %v2213
      %v2245 = vadd.f32 %v2244, %v2214
      %v2246 = vadd.f32 %v2245, %v2215
      %v2247 = vadd.f32 %v2246, %v2216
      %v2248 = vadd.f32 %v2247, %v2217
      %v2249 = vadd.f32 %v2248, %v2218
      %v2250 = vadd.f32 %v2249, %v2219
      %v2251 = vadd.f32 %v2250, %v2220
      %v2252 = vadd.f32 %v2251, %v2221
      %v2253 = vadd.f32 %v2252, %v2222
      %v2254 = vadd.f32 %v2253, %v2223
      %v2255 = vadd.f32 %v2254, %v2224
      %v2256 = vadd.f32 %v2255, %v2225
      %v2257 = vadd.f32 %v2256, %v2226
      %v2258 = vadd.f32 %v2257, %v2227
      %v2259 = vadd.f32 %v2258, %v2228
      %v2260 = vadd.f32 %v2259, %v2229
      %v2261 = vadd.f32 %v2260, %v2230
      %v2262 = vadd.f32 %v2261, %v2231
      %v2263 = vadd.f32 %v2262, %v2232
      %v2264 = vadd.f32 %v2263, %v2233
      %v2265 = vadd.f32 %v2264, %v2234
      %v2266 = vadd.f32 %v2265, %v2235
      %v2267 = vadd.f32 %v2266, %v2236
      %v2268 = vrot.slane %v2267, 4
      %v2269 = vadd.f32 %v2267, %v2268
      %v2270 = vrot.slane %v2269, 2
      %v2271 = vadd.f32 %v2269, %v2270
      %v2272 = vrot.slane %v2271, 1
      %v2273 = vadd.f32 %v2271, %v2272
      %v2274 = vld [vmem:[%s4] sm:$0x3]
      %vm2275 = vcmask 1040384
      %v2276 = vsel %vm2275, %v2204, %v2273
      %v2277 = vadd.f32 %v2274, %v2276
      %2278 = vst [vmem:[%s4] sm:$0x3] %v2277
      %p2279 = scmp.lt.s32.totalorder %s16, 1
      %s2280 = scalar_select %p2279, %s16, 1
      %s2281 = smul.addr %s2280, 32
      %s2282 = smul.addr %s2281, 8
      %s2283 = scalar_lea.vmem %s3, %s2282
      // Predicated region
      $region37: #{multiconvblock_forward.3} parent=31 // pred_check
        %p2284 = pneg %p102
      $region38: #{multiconvblock_forward.3} parent=31 // pred_check_branch
        %2286 = sbr.rel (%p2284) target = $region40
      $region39: #{multiconvblock_forward.3} parent=31 // pred_region
        _
      $region40: #{multiconvblock_forward.3} parent=31 // pred_fallthru
        _
      // Predicated region
      $region41: #{multiconvblock_forward.3} parent=31 // pred_check
        %p2287 = pneg %p123
      $region42: #{multiconvblock_forward.3} parent=31 // pred_check_branch
        %2289 = sbr.rel (%p2287) target = $region44
      $region43: #{multiconvblock_forward.3} parent=31 // pred_region
        _
      $region44: #{multiconvblock_forward.3} parent=31 // pred_fallthru
        _
      // Predicated region
      $region45: #{multiconvblock_forward.3} parent=31 // pred_check
        %p2290 = pneg %p123
      $region46: #{multiconvblock_forward.3} parent=31 // pred_check_branch
        %2292 = sbr.rel (%p2290) target = $region48
      $region47: #{multiconvblock_forward.3} parent=31 // pred_region
        _
      $region48: #{multiconvblock_forward.3} parent=31 // pred_fallthru
        _
    $region32: #{multiconvblock_forward.3} parent=5 // pred_fallthru
      _
    %p2293 = scmp.le.s32.totalorder 2, %s11
    // Predicated region
    $region49: #{multiconvblock_forward.3} parent=5 // pred_check
      %p2294 = pneg %p2293
    $region50: #{multiconvblock_forward.3} parent=5 // pred_check_branch
      %2296 = sbr.rel (%p2294) target = $region52
    $region51: #{multiconvblock_forward.3} parent=5 // pred_region
      %s2297 = ssub.s32 %s11, 2
      // Predicated region
      $region53: #{multiconvblock_forward.3} parent=51 // pred_check
        %p2298 = pneg %p108
      $region54: #{multiconvblock_forward.3} parent=51 // pred_check_branch
        %2300 = sbr.rel (%p2298) target = $region56
      $region55: #{multiconvblock_forward.3} parent=51 // pred_region
        %p2301 = scmp.lt.s32.totalorder %s17, 1
        %s2302 = scalar_select %p2301, %s17, 1
        %s2303 = smul.addr %s2302, 32
        %s2304 = smul.addr %s2303, 8
        %s2305 = scalar_lea.vmem %s3, %s2304
      $region56: #{multiconvblock_forward.3} parent=51 // pred_fallthru
        _
    $region52: #{multiconvblock_forward.3} parent=5 // pred_fallthru
      _
  $region6: #{multiconvblock_forward.3} parent=0 // loop_footer
    %s15 = sadd.s32 1, %s11
  $region7: #{multiconvblock_forward.3} parent=0 // loop_footer_branch
    %10 = sbr.rel target = $region3
  $region8: #{multiconvblock_forward.3} parent=0 // loop_exit
    _

// kernel: multiconvblock_forward.4
$region0: #{multiconvblock_forward.4}
  #allocation0 [shape = 'u32[]', space=smem, size = 0x4, offset = 0x4, fixed_abs, tag = 'smem constant byte address 0x4 - core index']
  #allocation1 [shape = 'u32[144,128]{1,0:T(1,128)}', space=vmem, size = 0x12000, scoped, tag = 'internal scratch']
  #allocation2 [shape = 'f32[18,18,128]{2,1,0:T(8,128)}', space=vmem, size = 0x36000, scoped, tag = 'scratch operand']
  %s0 = inlined_call_operand.vmem [shape: f32[2,16,16,128], index: 0, kind: input, shape index: {}]
  %s1 = inlined_call_operand.vmem [shape: f32[2,128], index: 1, kind: input, shape index: {}]
  %s2 = inlined_call_operand.vmem [shape: bf16[1152,128], index: 2, kind: input, shape index: {}]
  %s3 = inlined_call_operand.vmem [shape: f32[2,16,16,128], index: 3, kind: output, shape index: {0}]
  %s4 = inlined_call_operand.vmem [shape: f32[2,128], index: 4, kind: output, shape index: {1}]
  %5 = xla_tuple %s3, %s4
  %s6 = sld [smem:[#allocation0]]
  $region57: #{multiconvblock_forward.4} parent=0
    _
  %s8 = ssub.s32 1, %s6
  %s9 = scalar_select 0, %s8, %s6
  loop: start=0, step=1, limit=4
  $region2: #{multiconvblock_forward.4} parent=0 // loop_pre_header
    _
  $region3: #{multiconvblock_forward.4} parent=0 // loop_header
    %s11 = sphi 0, %s15
    %p12 = scmp.ge.s32.totalorder %s11, 4
    %s21 = sphi 0, %s23
    %s24 = sphi 0, %s21
    %s25 = sphi 0, %s24
    %s41 = sphi 0, %s25
    %s45 = sphi 0, %s45
    %s47 = sphi 0, %s45
    %s48 = sphi 0, %s47
    %s62 = sphi 0, %s48
    %s66 = sphi 0, %s66
    %s68 = sphi 0, %s66
    %s69 = sphi 0, %s68
    %s83 = sphi 0, %s69
    %s89 = sphi 0, %s91
    %s92 = sphi 0, %s89
    %s93 = sphi 0, %s92
    %s109 = sphi 0, %s93
    %s113 = sphi 0, %s113
    %s115 = sphi 0, %s113
    %s116 = sphi 0, %s115
    %s130 = sphi 0, %s116
  $region4: #{multiconvblock_forward.4} parent=0 // loop_header_branch
    %14 = sbr.rel (%p12) target = $region8
  $region5: #{multiconvblock_forward.4} parent=0 // loop_body
    %s16 = ssub.s32 %s11, 1
    %s17 = ssub.s32 %s11, 2
    %s18 = sadd.s32 %s11, 1
    %s19 = ssub.s32 %s11, %s18
    %p20 = scmp.eq.s32.totalorder %s19, 0
    %s22 = sadd.s32 %s21, 1
    %s23 = scalar_select %p20, %s21, %s22
    %p26 = pneg %p20
    %p27 = scmp.eq.s32.totalorder %s11, 1
    %p28 = por %p26, %p27
    %p29 = scmp.ne.s32.totalorder %s21, %s24
    %p30 = scmp.eq.s32.totalorder %s11, 0
    %p31 = por %p29, %p30
    %p32 = scmp.ne.s32.totalorder %s21, %s24
    %p33 = scmp.eq.s32.totalorder %s16, 1
    %p34 = por %p32, %p33
    %p35 = scmp.ne.s32.totalorder %s24, %s25
    %p36 = scmp.eq.s32.totalorder %s16, 0
    %p37 = por %p35, %p36
    %p38 = scmp.ne.s32.totalorder %s24, %s25
    %p39 = scmp.eq.s32.totalorder %s17, 1
    %p40 = por %p38, %p39
    %p42 = scmp.ne.s32.totalorder %s25, %s41
    %p43 = scmp.eq.s32.totalorder %s17, 0
    %p44 = por %p42, %p43
    %s46 = sadd.s32 %s45, 1
    %p49 = scmp.eq.s32.totalorder %s11, 1
    %p50 = scmp.ne.s32.totalorder %s45, %s47
    %p51 = scmp.eq.s32.totalorder %s11, 0
    %p52 = por %p50, %p51
    %p53 = scmp.ne.s32.totalorder %s45, %s47
    %p54 = scmp.eq.s32.totalorder %s16, 1
    %p55 = por %p53, %p54
    %p56 = scmp.ne.s32.totalorder %s47, %s48
    %p57 = scmp.eq.s32.totalorder %s16, 0
    %p58 = por %p56, %p57
    %p59 = scmp.ne.s32.totalorder %s47, %s48
    %p60 = scmp.eq.s32.totalorder %s17, 1
    %p61 = por %p59, %p60
    %p63 = scmp.ne.s32.totalorder %s48, %s62
    %p64 = scmp.eq.s32.totalorder %s17, 0
    %p65 = por %p63, %p64
    %s67 = sadd.s32 %s66, 1
    %p70 = scmp.eq.s32.totalorder %s11, 1
    %p71 = scmp.ne.s32.totalorder %s66, %s68
    %p72 = scmp.eq.s32.totalorder %s11, 0
    %p73 = por %p71, %p72
    %p74 = scmp.ne.s32.totalorder %s66, %s68
    %p75 = scmp.eq.s32.totalorder %s16, 1
    %p76 = por %p74, %p75
    %p77 = scmp.ne.s32.totalorder %s68, %s69
    %p78 = scmp.eq.s32.totalorder %s16, 0
    %p79 = por %p77, %p78
    %p80 = scmp.ne.s32.totalorder %s68, %s69
    %p81 = scmp.eq.s32.totalorder %s17, 1
    %p82 = por %p80, %p81
    %p84 = scmp.ne.s32.totalorder %s69, %s83
    %p85 = scmp.eq.s32.totalorder %s17, 0
    %p86 = por %p84, %p85
    %s87 = ssub.s32 %s11, %s18
    %p88 = scmp.eq.s32.totalorder %s87, 0
    %s90 = sadd.s32 %s89, 1
    %s91 = scalar_select %p88, %s89, %s90
    %p94 = pneg %p88
    %p95 = scmp.eq.s32.totalorder %s11, 1
    %p96 = por %p94, %p95
    %p97 = scmp.ne.s32.totalorder %s89, %s92
    %p98 = scmp.eq.s32.totalorder %s11, 0
    %p99 = por %p97, %p98
    %p100 = scmp.ne.s32.totalorder %s89, %s92
    %p101 = scmp.eq.s32.totalorder %s16, 1
    %p102 = por %p100, %p101
    %p103 = scmp.ne.s32.totalorder %s92, %s93
    %p104 = scmp.eq.s32.totalorder %s16, 0
    %p105 = por %p103, %p104
    %p106 = scmp.ne.s32.totalorder %s92, %s93
    %p107 = scmp.eq.s32.totalorder %s17, 1
    %p108 = por %p106, %p107
    %p110 = scmp.ne.s32.totalorder %s93, %s109
    %p111 = scmp.eq.s32.totalorder %s17, 0
    %p112 = por %p110, %p111
    %s114 = sadd.s32 %s113, 1
    %p117 = scmp.eq.s32.totalorder %s11, 1
    %p118 = scmp.ne.s32.totalorder %s113, %s115
    %p119 = scmp.eq.s32.totalorder %s11, 0
    %p120 = por %p118, %p119
    %p121 = scmp.ne.s32.totalorder %s113, %s115
    %p122 = scmp.eq.s32.totalorder %s16, 1
    %p123 = por %p121, %p122
    %p124 = scmp.ne.s32.totalorder %s115, %s116
    %p125 = scmp.eq.s32.totalorder %s16, 0
    %p126 = por %p124, %p125
    %p127 = scmp.ne.s32.totalorder %s115, %s116
    %p128 = scmp.eq.s32.totalorder %s17, 1
    %p129 = por %p127, %p128
    %p131 = scmp.ne.s32.totalorder %s116, %s130
    %p132 = scmp.eq.s32.totalorder %s17, 0
    %p133 = por %p131, %p132
    %p134 = scmp.le.s32.totalorder 1, %s11
    %p135 = scmp.lt.s32.totalorder %s11, 3
    %p136 = pnand %p134, %p135
    %p137 = pneg %p136
    // Predicated region
    $region9: #{multiconvblock_forward.4} parent=5 // pred_check
      _
    $region10: #{multiconvblock_forward.4} parent=5 // pred_check_branch
      %139 = sbr.rel (%p136) target = $region12
    $region11: #{multiconvblock_forward.4} parent=5 // pred_region
      %s140 = ssub.s32 %s11, 1
      // Predicated region
      $region13: #{multiconvblock_forward.4} parent=11 // pred_check
        %p141 = pneg %p58
      $region14: #{multiconvblock_forward.4} parent=11 // pred_check_branch
        %143 = sbr.rel (%p141) target = $region16
      $region15: #{multiconvblock_forward.4} parent=11 // pred_region
        _
      $region16: #{multiconvblock_forward.4} parent=11 // pred_fallthru
        _
      // Predicated region
      $region17: #{multiconvblock_forward.4} parent=11 // pred_check
        %p144 = pneg %p79
      $region18: #{multiconvblock_forward.4} parent=11 // pred_check_branch
        %146 = sbr.rel (%p144) target = $region20
      $region19: #{multiconvblock_forward.4} parent=11 // pred_region
        _
      $region20: #{multiconvblock_forward.4} parent=11 // pred_fallthru
        _
    $region12: #{multiconvblock_forward.4} parent=5 // pred_fallthru
      _
    %p147 = scmp.lt.s32.totalorder %s11, 2
    // Predicated region
    $region21: #{multiconvblock_forward.4} parent=5 // pred_check
      %p148 = pneg %p147
    $region22: #{multiconvblock_forward.4} parent=5 // pred_check_branch
      %150 = sbr.rel (%p148) target = $region24
    $region23: #{multiconvblock_forward.4} parent=5 // pred_region
      // Predicated region
      $region25: #{multiconvblock_forward.4} parent=23 // pred_check
        %p151 = pneg %p31
      $region26: #{multiconvblock_forward.4} parent=23 // pred_check_branch
        %153 = sbr.rel (%p151) target = $region28
      $region27: #{multiconvblock_forward.4} parent=23 // pred_region
        %p154 = scmp.lt.s32.totalorder %s11, 1
        %s155 = scalar_select %p154, %s11, 1
        %s156 = smul.addr %s155, 32
        %s157 = smul.addr %s156, 8
        %s158 = scalar_lea.vmem %s0, %s157
      $region28: #{multiconvblock_forward.4} parent=23 // pred_fallthru
        _
    $region24: #{multiconvblock_forward.4} parent=5 // pred_fallthru
      _
    %p159 = scmp.le.s32.totalorder 1, %s11
    %p160 = scmp.lt.s32.totalorder %s11, 3
    %p161 = pnand %p159, %p160
    %p162 = pneg %p161
    // Predicated region
    $region29: #{multiconvblock_forward.4} parent=5 // pred_check
      _
    $region30: #{multiconvblock_forward.4} parent=5 // pred_check_branch
      %164 = sbr.rel (%p161) target = $region32
    $region31: #{multiconvblock_forward.4} parent=5 // pred_region
      %s165 = ssub.s32 %s11, 1
      %p166 = scmp.lt.s32.totalorder %s16, 1
      %s167 = scalar_select %p166, %s16, 1
      %s168 = smul.addr %s167, 32
      %s169 = smul.addr %s168, 8
      %s170 = scalar_lea.vmem %s0, %s169
      %p171 = pneg %p37
      %p172 = pneg %p34
      %p173 = pneg %p58
      %p174 = pneg %p55
      %p175 = pneg %p79
      %p176 = pneg %p76
      %p177 = pneg %p105
      %p178 = pneg %p102
      %p179 = scmp.lt.s32.totalorder %s16, 1
      %s180 = scalar_select %p179, %s16, 1
      %s181 = smul.addr %s180, 32
      %s182 = smul.addr %s181, 8
      %s183 = scalar_lea.vmem %s3, %s182
      %p184 = pneg %p126
      %p185 = pneg %p123
      %p186 = scmp.lt.s32.totalorder %s16, 1
      %s187 = scalar_select %p186, %s16, 1
      %s188 = smul.addr %s187, 32
      %s189 = smul.addr %s188, 8
      %s190 = scalar_lea.vmem %s0, %s189
      %p191 = scmp.lt.s32.totalorder %s16, 1
      %s192 = scalar_select %p191, %s16, 1
      %s193 = smul.addr %s192, 32
      %s194 = smul.addr %s193, 8
      %s195 = scalar_lea.vmem %s3, %s194
      %p197 = scmp.eq.s32.totalorder %s16, 0
      // Predicated region
      $region33: #{multiconvblock_forward.4} parent=31 // pred_check
        %p198 = pneg %p197
      $region34: #{multiconvblock_forward.4} parent=31 // pred_check_branch
        %200 = sbr.rel (%p198) target = $region36
      $region35: #{multiconvblock_forward.4} parent=31 // pred_region
        %201 = vst [vmem:[#allocation2] sm:$0xff] 0.0
        %202 = vst [vmem:[#allocation2 + $0x8] sm:$0xff] 0.0
        %203 = vst [vmem:[#allocation2 + $0x10] sm:$0x3] 0.0
        %204 = vst [vmem:[#allocation2 + $0x18] sm:$0xff] 0.0
        %205 = vst [vmem:[#allocation2 + $0x20] sm:$0xff] 0.0
        %206 = vst [vmem:[#allocation2 + $0x28] sm:$0x3] 0.0
        %207 = vst [vmem:[#allocation2 + $0x30] sm:$0xff] 0.0
        %208 = vst [vmem:[#allocation2 + $0x38] sm:$0xff] 0.0
        %209 = vst [vmem:[#allocation2 + $0x40] sm:$0x3] 0.0
        %210 = vst [vmem:[#allocation2 + $0x48] sm:$0xff] 0.0
        %211 = vst [vmem:[#allocation2 + $0x50] sm:$0xff] 0.0
        %212 = vst [vmem:[#allocation2 + $0x58] sm:$0x3] 0.0
        %213 = vst [vmem:[#allocation2 + $0x60] sm:$0xff] 0.0
        %214 = vst [vmem:[#allocation2 + $0x68] sm:$0xff] 0.0
        %215 = vst [vmem:[#allocation2 + $0x70] sm:$0x3] 0.0
        %216 = vst [vmem:[#allocation2 + $0x78] sm:$0xff] 0.0
        %217 = vst [vmem:[#allocation2 + $0x80] sm:$0xff] 0.0
        %218 = vst [vmem:[#allocation2 + $0x88] sm:$0x3] 0.0
        %219 = vst [vmem:[#allocation2 + $0x90] sm:$0xff] 0.0
        %220 = vst [vmem:[#allocation2 + $0x98] sm:$0xff] 0.0
        %221 = vst [vmem:[#allocation2 + $0xa0] sm:$0x3] 0.0
        %222 = vst [vmem:[#allocation2 + $0xa8] sm:$0xff] 0.0
        %223 = vst [vmem:[#allocation2 + $0xb0] sm:$0xff] 0.0
        %224 = vst [vmem:[#allocation2 + $0xb8] sm:$0x3] 0.0
        %225 = vst [vmem:[#allocation2 + $0xc0] sm:$0xff] 0.0
        %226 = vst [vmem:[#allocation2 + $0xc8] sm:$0xff] 0.0
        %227 = vst [vmem:[#allocation2 + $0xd0] sm:$0x3] 0.0
        %228 = vst [vmem:[#allocation2 + $0xd8] sm:$0xff] 0.0
        %229 = vst [vmem:[#allocation2 + $0xe0] sm:$0xff] 0.0
        %230 = vst [vmem:[#allocation2 + $0xe8] sm:$0x3] 0.0
        %231 = vst [vmem:[#allocation2 + $0xf0] sm:$0xff] 0.0
        %232 = vst [vmem:[#allocation2 + $0xf8] sm:$0xff] 0.0
        %233 = vst [vmem:[#allocation2 + $0x100] sm:$0x3] 0.0
        %234 = vst [vmem:[#allocation2 + $0x108] sm:$0xff] 0.0
        %235 = vst [vmem:[#allocation2 + $0x110] sm:$0xff] 0.0
        %236 = vst [vmem:[#allocation2 + $0x118] sm:$0x3] 0.0
        %237 = vst [vmem:[#allocation2 + $0x120] sm:$0xff] 0.0
        %238 = vst [vmem:[#allocation2 + $0x128] sm:$0xff] 0.0
        %239 = vst [vmem:[#allocation2 + $0x130] sm:$0x3] 0.0
        %240 = vst [vmem:[#allocation2 + $0x138] sm:$0xff] 0.0
        %241 = vst [vmem:[#allocation2 + $0x140] sm:$0xff] 0.0
        %242 = vst [vmem:[#allocation2 + $0x148] sm:$0x3] 0.0
        %243 = vst [vmem:[#allocation2 + $0x150] sm:$0xff] 0.0
        %244 = vst [vmem:[#allocation2 + $0x158] sm:$0xff] 0.0
        %245 = vst [vmem:[#allocation2 + $0x160] sm:$0x3] 0.0
        %246 = vst [vmem:[#allocation2 + $0x168] sm:$0xff] 0.0
        %247 = vst [vmem:[#allocation2 + $0x170] sm:$0xff] 0.0
        %248 = vst [vmem:[#allocation2 + $0x178] sm:$0x3] 0.0
        %249 = vst [vmem:[#allocation2 + $0x180] sm:$0xff] 0.0
        %250 = vst [vmem:[#allocation2 + $0x188] sm:$0xff] 0.0
        %251 = vst [vmem:[#allocation2 + $0x190] sm:$0x3] 0.0
        %252 = vst [vmem:[#allocation2 + $0x198] sm:$0xff] 0.0
        %253 = vst [vmem:[#allocation2 + $0x1a0] sm:$0xff] 0.0
        %254 = vst [vmem:[#allocation2 + $0x1a8] sm:$0x3] 0.0
        %255 = vst [vmem:[%s4] sm:$0x3] 0.0
      $region36: #{multiconvblock_forward.4} parent=31 // pred_fallthru
        _
      %v256 = vld [vmem:[%s190] sm:$0xff]
      %v257 = vld [vmem:[%s190 + $0x8] sm:$0xff]
      %v258 = vld [vmem:[%s190 + $0x10] sm:$0xff]
      %v259 = vld [vmem:[%s190 + $0x18] sm:$0xff]
      %v260 = vld [vmem:[%s190 + $0x20] sm:$0xff]
      %v261 = vld [vmem:[%s190 + $0x28] sm:$0xff]
      %v262 = vld [vmem:[%s190 + $0x30] sm:$0xff]
      %v263 = vld [vmem:[%s190 + $0x38] sm:$0xff]
      %v264 = vld [vmem:[%s190 + $0x40] sm:$0xff]
      %v265 = vld [vmem:[%s190 + $0x48] sm:$0xff]
      %v266 = vld [vmem:[%s190 + $0x50] sm:$0xff]
      %v267 = vld [vmem:[%s190 + $0x58] sm:$0xff]
      %v268 = vld [vmem:[%s190 + $0x60] sm:$0xff]
      %v269 = vld [vmem:[%s190 + $0x68] sm:$0xff]
      %v270 = vld [vmem:[%s190 + $0x70] sm:$0xff]
      %v271 = vld [vmem:[%s190 + $0x78] sm:$0xff]
      %v272 = vld [vmem:[%s190 + $0x80] sm:$0xff]
      %v273 = vld [vmem:[%s190 + $0x88] sm:$0xff]
      %v274 = vld [vmem:[%s190 + $0x90] sm:$0xff]
      %v275 = vld [vmem:[%s190 + $0x98] sm:$0xff]
      %v276 = vld [vmem:[%s190 + $0xa0] sm:$0xff]
      %v277 = vld [vmem:[%s190 + $0xa8] sm:$0xff]
      %v278 = vld [vmem:[%s190 + $0xb0] sm:$0xff]
      %v279 = vld [vmem:[%s190 + $0xb8] sm:$0xff]
      %v280 = vld [vmem:[%s190 + $0xc0] sm:$0xff]
      %v281 = vld [vmem:[%s190 + $0xc8] sm:$0xff]
      %v282 = vld [vmem:[%s190 + $0xd0] sm:$0xff]
      %v283 = vld [vmem:[%s190 + $0xd8] sm:$0xff]
      %v284 = vld [vmem:[%s190 + $0xe0] sm:$0xff]
      %v285 = vld [vmem:[%s190 + $0xe8] sm:$0xff]
      %v286 = vld [vmem:[%s190 + $0xf0] sm:$0xff]
      %v287 = vld [vmem:[%s190 + $0xf8] sm:$0xff]
      %v288 = vld [vmem:[%s1] sm:$0x1]
      %v289 = vlaneseq
      %v290 = vshrl.u32 %v289, 7
      %v291 = vsub.s32 0, %v290
      %v292 = vrot.slane %v288, %v291
      %v293 = vmul.f32 %v256, %v292
      %v294 = vmul.f32 %v257, %v292
      %v295 = vmul.f32 %v258, %v292
      %v296 = vmul.f32 %v259, %v292
      %v297 = vmul.f32 %v260, %v292
      %v298 = vmul.f32 %v261, %v292
      %v299 = vmul.f32 %v262, %v292
      %v300 = vmul.f32 %v263, %v292
      %v301 = vmul.f32 %v264, %v292
      %v302 = vmul.f32 %v265, %v292
      %v303 = vmul.f32 %v266, %v292
      %v304 = vmul.f32 %v267, %v292
      %v305 = vmul.f32 %v268, %v292
      %v306 = vmul.f32 %v269, %v292
      %v307 = vmul.f32 %v270, %v292
      %v308 = vmul.f32 %v271, %v292
      %v309 = vmul.f32 %v272, %v292
      %v310 = vmul.f32 %v273, %v292
      %v311 = vmul.f32 %v274, %v292
      %v312 = vmul.f32 %v275, %v292
      %v313 = vmul.f32 %v276, %v292
      %v314 = vmul.f32 %v277, %v292
      %v315 = vmul.f32 %v278, %v292
      %v316 = vmul.f32 %v279, %v292
      %v317 = vmul.f32 %v280, %v292
      %v318 = vmul.f32 %v281, %v292
      %v319 = vmul.f32 %v282, %v292
      %v320 = vmul.f32 %v283, %v292
      %v321 = vmul.f32 %v284, %v292
      %v322 = vmul.f32 %v285, %v292
      %v323 = vmul.f32 %v286, %v292
      %v324 = vmul.f32 %v287, %v292
      %v325 = vld [vmem:[%s1 + $0x1] sm:$0x1]
      %v326 = vlaneseq
      %v327 = vshrl.u32 %v326, 7
      %v328 = vsub.s32 0, %v327
      %v329 = vrot.slane %v325, %v328
      %v330 = vadd.f32 %v293, %v329
      %v331 = vadd.f32 %v294, %v329
      %v332 = vadd.f32 %v295, %v329
      %v333 = vadd.f32 %v296, %v329
      %v334 = vadd.f32 %v297, %v329
      %v335 = vadd.f32 %v298, %v329
      %v336 = vadd.f32 %v299, %v329
      %v337 = vadd.f32 %v300, %v329
      %v338 = vadd.f32 %v301, %v329
      %v339 = vadd.f32 %v302, %v329
      %v340 = vadd.f32 %v303, %v329
      %v341 = vadd.f32 %v304, %v329
      %v342 = vadd.f32 %v305, %v329
      %v343 = vadd.f32 %v306, %v329
      %v344 = vadd.f32 %v307, %v329
      %v345 = vadd.f32 %v308, %v329
      %v346 = vadd.f32 %v309, %v329
      %v347 = vadd.f32 %v310, %v329
      %v348 = vadd.f32 %v311, %v329
      %v349 = vadd.f32 %v312, %v329
      %v350 = vadd.f32 %v313, %v329
      %v351 = vadd.f32 %v314, %v329
      %v352 = vadd.f32 %v315, %v329
      %v353 = vadd.f32 %v316, %v329
      %v354 = vadd.f32 %v317, %v329
      %v355 = vadd.f32 %v318, %v329
      %v356 = vadd.f32 %v319, %v329
      %v357 = vadd.f32 %v320, %v329
      %v358 = vadd.f32 %v321, %v329
      %v359 = vadd.f32 %v322, %v329
      %v360 = vadd.f32 %v323, %v329
      %v361 = vadd.f32 %v324, %v329
      %vm362 = vcmp.ge.f32.partialorder %v330, 0.0
      %vm363 = vcmp.ge.f32.partialorder %v331, 0.0
      %vm364 = vcmp.ge.f32.partialorder %v332, 0.0
      %vm365 = vcmp.ge.f32.partialorder %v333, 0.0
      %vm366 = vcmp.ge.f32.partialorder %v334, 0.0
      %vm367 = vcmp.ge.f32.partialorder %v335, 0.0
      %vm368 = vcmp.ge.f32.partialorder %v336, 0.0
      %vm369 = vcmp.ge.f32.partialorder %v337, 0.0
      %vm370 = vcmp.ge.f32.partialorder %v338, 0.0
      %vm371 = vcmp.ge.f32.partialorder %v339, 0.0
      %vm372 = vcmp.ge.f32.partialorder %v340, 0.0
      %vm373 = vcmp.ge.f32.partialorder %v341, 0.0
      %vm374 = vcmp.ge.f32.partialorder %v342, 0.0
      %vm375 = vcmp.ge.f32.partialorder %v343, 0.0
      %vm376 = vcmp.ge.f32.partialorder %v344, 0.0
      %vm377 = vcmp.ge.f32.partialorder %v345, 0.0
      %vm378 = vcmp.ge.f32.partialorder %v346, 0.0
      %vm379 = vcmp.ge.f32.partialorder %v347, 0.0
      %vm380 = vcmp.ge.f32.partialorder %v348, 0.0
      %vm381 = vcmp.ge.f32.partialorder %v349, 0.0
      %vm382 = vcmp.ge.f32.partialorder %v350, 0.0
      %vm383 = vcmp.ge.f32.partialorder %v351, 0.0
      %vm384 = vcmp.ge.f32.partialorder %v352, 0.0
      %vm385 = vcmp.ge.f32.partialorder %v353, 0.0
      %vm386 = vcmp.ge.f32.partialorder %v354, 0.0
      %vm387 = vcmp.ge.f32.partialorder %v355, 0.0
      %vm388 = vcmp.ge.f32.partialorder %v356, 0.0
      %vm389 = vcmp.ge.f32.partialorder %v357, 0.0
      %vm390 = vcmp.ge.f32.partialorder %v358, 0.0
      %vm391 = vcmp.ge.f32.partialorder %v359, 0.0
      %vm392 = vcmp.ge.f32.partialorder %v360, 0.0
      %vm393 = vcmp.ge.f32.partialorder %v361, 0.0
      %v394 = vmul.f32 %v330, 0.1
      %v395 = vmul.f32 %v331, 0.1
      %v396 = vmul.f32 %v332, 0.1
      %v397 = vmul.f32 %v333, 0.1
      %v398 = vmul.f32 %v334, 0.1
      %v399 = vmul.f32 %v335, 0.1
      %v400 = vmul.f32 %v336, 0.1
      %v401 = vmul.f32 %v337, 0.1
      %v402 = vmul.f32 %v338, 0.1
      %v403 = vmul.f32 %v339, 0.1
      %v404 = vmul.f32 %v340, 0.1
      %v405 = vmul.f32 %v341, 0.1
      %v406 = vmul.f32 %v342, 0.1
      %v407 = vmul.f32 %v343, 0.1
      %v408 = vmul.f32 %v344, 0.1
      %v409 = vmul.f32 %v345, 0.1
      %v410 = vmul.f32 %v346, 0.1
      %v411 = vmul.f32 %v347, 0.1
      %v412 = vmul.f32 %v348, 0.1
      %v413 = vmul.f32 %v349, 0.1
      %v414 = vmul.f32 %v350, 0.1
      %v415 = vmul.f32 %v351, 0.1
      %v416 = vmul.f32 %v352, 0.1
      %v417 = vmul.f32 %v353, 0.1
      %v418 = vmul.f32 %v354, 0.1
      %v419 = vmul.f32 %v355, 0.1
      %v420 = vmul.f32 %v356, 0.1
      %v421 = vmul.f32 %v357, 0.1
      %v422 = vmul.f32 %v358, 0.1
      %v423 = vmul.f32 %v359, 0.1
      %v424 = vmul.f32 %v360, 0.1
      %v425 = vmul.f32 %v361, 0.1
      %v426 = vsel %vm362, %v330, %v394
      %v427 = vsel %vm363, %v331, %v395
      %v428 = vsel %vm364, %v332, %v396
      %v429 = vsel %vm365, %v333, %v397
      %v430 = vsel %vm366, %v334, %v398
      %v431 = vsel %vm367, %v335, %v399
      %v432 = vsel %vm368, %v336, %v400
      %v433 = vsel %vm369, %v337, %v401
      %v434 = vsel %vm370, %v338, %v402
      %v435 = vsel %vm371, %v339, %v403
      %v436 = vsel %vm372, %v340, %v404
      %v437 = vsel %vm373, %v341, %v405
      %v438 = vsel %vm374, %v342, %v406
      %v439 = vsel %vm375, %v343, %v407
      %v440 = vsel %vm376, %v344, %v408
      %v441 = vsel %vm377, %v345, %v409
      %v442 = vsel %vm378, %v346, %v410
      %v443 = vsel %vm379, %v347, %v411
      %v444 = vsel %vm380, %v348, %v412
      %v445 = vsel %vm381, %v349, %v413
      %v446 = vsel %vm382, %v350, %v414
      %v447 = vsel %vm383, %v351, %v415
      %v448 = vsel %vm384, %v352, %v416
      %v449 = vsel %vm385, %v353, %v417
      %v450 = vsel %vm386, %v354, %v418
      %v451 = vsel %vm387, %v355, %v419
      %v452 = vsel %vm388, %v356, %v420
      %v453 = vsel %vm389, %v357, %v421
      %v454 = vsel %vm390, %v358, %v422
      %v455 = vsel %vm391, %v359, %v423
      %v456 = vsel %vm392, %v360, %v424
      %v457 = vsel %vm393, %v361, %v425
      %s458 = scalar_lea.vmem [#allocation2], 24
      %459 = vst [vmem:[%s458 + $0x1] sm:$0xff] %v426
      %460 = vst [vmem:[%s458 + $0x9] sm:$0xff] %v427
      %461 = vst [vmem:[%s458 + $0x19] sm:$0xff] %v428
      %462 = vst [vmem:[%s458 + $0x21] sm:$0xff] %v429
      %463 = vst [vmem:[%s458 + $0x31] sm:$0xff] %v430
      %464 = vst [vmem:[%s458 + $0x39] sm:$0xff] %v431
      %465 = vst [vmem:[%s458 + $0x49] sm:$0xff] %v432
      %466 = vst [vmem:[%s458 + $0x51] sm:$0xff] %v433
      %467 = vst [vmem:[%s458 + $0x61] sm:$0xff] %v434
      %468 = vst [vmem:[%s458 + $0x69] sm:$0xff] %v435
      %469 = vst [vmem:[%s458 + $0x79] sm:$0xff] %v436
      %470 = vst [vmem:[%s458 + $0x81] sm:$0xff] %v437
      %471 = vst [vmem:[%s458 + $0x91] sm:$0xff] %v438
      %472 = vst [vmem:[%s458 + $0x99] sm:$0xff] %v439
      %473 = vst [vmem:[%s458 + $0xa9] sm:$0xff] %v440
      %474 = vst [vmem:[%s458 + $0xb1] sm:$0xff] %v441
      %475 = vst [vmem:[%s458 + $0xc1] sm:$0xff] %v442
      %476 = vst [vmem:[%s458 + $0xc9] sm:$0xff] %v443
      %477 = vst [vmem:[%s458 + $0xd9] sm:$0xff] %v444
      %478 = vst [vmem:[%s458 + $0xe1] sm:$0xff] %v445
      %479 = vst [vmem:[%s458 + $0xf1] sm:$0xff] %v446
      %480 = vst [vmem:[%s458 + $0xf9] sm:$0xff] %v447
      %481 = vst [vmem:[%s458 + $0x109] sm:$0xff] %v448
      %482 = vst [vmem:[%s458 + $0x111] sm:$0xff] %v449
      %483 = vst [vmem:[%s458 + $0x121] sm:$0xff] %v450
      %484 = vst [vmem:[%s458 + $0x129] sm:$0xff] %v451
      %485 = vst [vmem:[%s458 + $0x139] sm:$0xff] %v452
      %486 = vst [vmem:[%s458 + $0x141] sm:$0xff] %v453
      %487 = vst [vmem:[%s458 + $0x151] sm:$0xff] %v454
      %488 = vst [vmem:[%s458 + $0x159] sm:$0xff] %v455
      %489 = vst [vmem:[%s458 + $0x169] sm:$0xff] %v456
      %490 = vst [vmem:[%s458 + $0x171] sm:$0xff] %v457
      %v491 = vld [vmem:[#allocation2] sm:$0xff]
      %v492 = vld [vmem:[#allocation2 + $0x8] sm:$0xff]
      %v493 = vld [vmem:[#allocation2 + $0x18] sm:$0xff]
      %v494 = vld [vmem:[#allocation2 + $0x20] sm:$0xff]
      %v495 = vld [vmem:[#allocation2 + $0x30] sm:$0xff]
      %v496 = vld [vmem:[#allocation2 + $0x38] sm:$0xff]
      %v497 = vld [vmem:[#allocation2 + $0x48] sm:$0xff]
      %v498 = vld [vmem:[#allocation2 + $0x50] sm:$0xff]
      %v499 = vld [vmem:[#allocation2 + $0x60] sm:$0xff]
      %v500 = vld [vmem:[#allocation2 + $0x68] sm:$0xff]
      %v501 = vld [vmem:[#allocation2 + $0x78] sm:$0xff]
      %v502 = vld [vmem:[#allocation2 + $0x80] sm:$0xff]
      %v503 = vld [vmem:[#allocation2 + $0x90] sm:$0xff]
      %v504 = vld [vmem:[#allocation2 + $0x98] sm:$0xff]
      %v505 = vld [vmem:[#allocation2 + $0xa8] sm:$0xff]
      %v506 = vld [vmem:[#allocation2 + $0xb0] sm:$0xff]
      %v507 = vld [vmem:[#allocation2 + $0xc0] sm:$0xff]
      %v508 = vld [vmem:[#allocation2 + $0xc8] sm:$0xff]
      %v509 = vld [vmem:[#allocation2 + $0xd8] sm:$0xff]
      %v510 = vld [vmem:[#allocation2 + $0xe0] sm:$0xff]
      %v511 = vld [vmem:[#allocation2 + $0xf0] sm:$0xff]
      %v512 = vld [vmem:[#allocation2 + $0xf8] sm:$0xff]
      %v513 = vld [vmem:[#allocation2 + $0x108] sm:$0xff]
      %v514 = vld [vmem:[#allocation2 + $0x110] sm:$0xff]
      %v515 = vld [vmem:[#allocation2 + $0x120] sm:$0xff]
      %v516 = vld [vmem:[#allocation2 + $0x128] sm:$0xff]
      %v517 = vld [vmem:[#allocation2 + $0x138] sm:$0xff]
      %v518 = vld [vmem:[#allocation2 + $0x140] sm:$0xff]
      %v519 = vld [vmem:[#allocation2 + $0x150] sm:$0xff]
      %v520 = vld [vmem:[#allocation2 + $0x158] sm:$0xff]
      %v521 = vld [vmem:[#allocation2 + $0x168] sm:$0xff]
      %v522 = vld [vmem:[#allocation2 + $0x170] sm:$0xff]
      %v523 = vld [vmem:[#allocation2 + $0x1] sm:$0xff]
      %v524 = vld [vmem:[#allocation2 + $0x9] sm:$0xff]
      %v525 = vld [vmem:[#allocation2 + $0x19] sm:$0xff]
      %v526 = vld [vmem:[#allocation2 + $0x21] sm:$0xff]
      %v527 = vld [vmem:[#allocation2 + $0x31] sm:$0xff]
      %v528 = vld [vmem:[#allocation2 + $0x39] sm:$0xff]
      %v529 = vld [vmem:[#allocation2 + $0x49] sm:$0xff]
      %v530 = vld [vmem:[#allocation2 + $0x51] sm:$0xff]
      %v531 = vld [vmem:[#allocation2 + $0x61] sm:$0xff]
      %v532 = vld [vmem:[#allocation2 + $0x69] sm:$0xff]
      %v533 = vld [vmem:[#allocation2 + $0x79] sm:$0xff]
      %v534 = vld [vmem:[#allocation2 + $0x81] sm:$0xff]
      %v535 = vld [vmem:[#allocation2 + $0x91] sm:$0xff]
      %v536 = vld [vmem:[#allocation2 + $0x99] sm:$0xff]
      %v537 = vld [vmem:[#allocation2 + $0xa9] sm:$0xff]
      %v538 = vld [vmem:[#allocation2 + $0xb1] sm:$0xff]
      %v539 = vld [vmem:[#allocation2 + $0xc1] sm:$0xff]
      %v540 = vld [vmem:[#allocation2 + $0xc9] sm:$0xff]
      %v541 = vld [vmem:[#allocation2 + $0xd9] sm:$0xff]
      %v542 = vld [vmem:[#allocation2 + $0xe1] sm:$0xff]
      %v543 = vld [vmem:[#allocation2 + $0xf1] sm:$0xff]
      %v544 = vld [vmem:[#allocation2 + $0xf9] sm:$0xff]
      %v545 = vld [vmem:[#allocation2 + $0x109] sm:$0xff]
      %v546 = vld [vmem:[#allocation2 + $0x111] sm:$0xff]
      %v547 = vld [vmem:[#allocation2 + $0x121] sm:$0xff]
      %v548 = vld [vmem:[#allocation2 + $0x129] sm:$0xff]
      %v549 = vld [vmem:[#allocation2 + $0x139] sm:$0xff]
      %v550 = vld [vmem:[#allocation2 + $0x141] sm:$0xff]
      %v551 = vld [vmem:[#allocation2 + $0x151] sm:$0xff]
      %v552 = vld [vmem:[#allocation2 + $0x159] sm:$0xff]
      %v553 = vld [vmem:[#allocation2 + $0x169] sm:$0xff]
      %v554 = vld [vmem:[#allocation2 + $0x171] sm:$0xff]
      %v555 = vld [vmem:[#allocation2 + $0x2] sm:$0xff]
      %v556 = vld [vmem:[#allocation2 + $0xa] sm:$0xff]
      %v557 = vld [vmem:[#allocation2 + $0x1a] sm:$0xff]
      %v558 = vld [vmem:[#allocation2 + $0x22] sm:$0xff]
      %v559 = vld [vmem:[#allocation2 + $0x32] sm:$0xff]
      %v560 = vld [vmem:[#allocation2 + $0x3a] sm:$0xff]
      %v561 = vld [vmem:[#allocation2 + $0x4a] sm:$0xff]
      %v562 = vld [vmem:[#allocation2 + $0x52] sm:$0xff]
      %v563 = vld [vmem:[#allocation2 + $0x62] sm:$0xff]
      %v564 = vld [vmem:[#allocation2 + $0x6a] sm:$0xff]
      %v565 = vld [vmem:[#allocation2 + $0x7a] sm:$0xff]
      %v566 = vld [vmem:[#allocation2 + $0x82] sm:$0xff]
      %v567 = vld [vmem:[#allocation2 + $0x92] sm:$0xff]
      %v568 = vld [vmem:[#allocation2 + $0x9a] sm:$0xff]
      %v569 = vld [vmem:[#allocation2 + $0xaa] sm:$0xff]
      %v570 = vld [vmem:[#allocation2 + $0xb2] sm:$0xff]
      %v571 = vld [vmem:[#allocation2 + $0xc2] sm:$0xff]
      %v572 = vld [vmem:[#allocation2 + $0xca] sm:$0xff]
      %v573 = vld [vmem:[#allocation2 + $0xda] sm:$0xff]
      %v574 = vld [vmem:[#allocation2 + $0xe2] sm:$0xff]
      %v575 = vld [vmem:[#allocation2 + $0xf2] sm:$0xff]
      %v576 = vld [vmem:[#allocation2 + $0xfa] sm:$0xff]
      %v577 = vld [vmem:[#allocation2 + $0x10a] sm:$0xff]
      %v578 = vld [vmem:[#allocation2 + $0x112] sm:$0xff]
      %v579 = vld [vmem:[#allocation2 + $0x122] sm:$0xff]
      %v580 = vld [vmem:[#allocation2 + $0x12a] sm:$0xff]
      %v581 = vld [vmem:[#allocation2 + $0x13a] sm:$0xff]
      %v582 = vld [vmem:[#allocation2 + $0x142] sm:$0xff]
      %v583 = vld [vmem:[#allocation2 + $0x152] sm:$0xff]
      %v584 = vld [vmem:[#allocation2 + $0x15a] sm:$0xff]
      %v585 = vld [vmem:[#allocation2 + $0x16a] sm:$0xff]
      %v586 = vld [vmem:[#allocation2 + $0x172] sm:$0xff]
      %v587 = vld [vmem:[%s458] sm:$0xff]
      %v588 = vld [vmem:[%s458 + $0x8] sm:$0xff]
      %v589 = vld [vmem:[%s458 + $0x18] sm:$0xff]
      %v590 = vld [vmem:[%s458 + $0x20] sm:$0xff]
      %v591 = vld [vmem:[%s458 + $0x30] sm:$0xff]
      %v592 = vld [vmem:[%s458 + $0x38] sm:$0xff]
      %v593 = vld [vmem:[%s458 + $0x48] sm:$0xff]
      %v594 = vld [vmem:[%s458 + $0x50] sm:$0xff]
      %v595 = vld [vmem:[%s458 + $0x60] sm:$0xff]
      %v596 = vld [vmem:[%s458 + $0x68] sm:$0xff]
      %v597 = vld [vmem:[%s458 + $0x78] sm:$0xff]
      %v598 = vld [vmem:[%s458 + $0x80] sm:$0xff]
      %v599 = vld [vmem:[%s458 + $0x90] sm:$0xff]
      %v600 = vld [vmem:[%s458 + $0x98] sm:$0xff]
      %v601 = vld [vmem:[%s458 + $0xa8] sm:$0xff]
      %v602 = vld [vmem:[%s458 + $0xb0] sm:$0xff]
      %v603 = vld [vmem:[%s458 + $0xc0] sm:$0xff]
      %v604 = vld [vmem:[%s458 + $0xc8] sm:$0xff]
      %v605 = vld [vmem:[%s458 + $0xd8] sm:$0xff]
      %v606 = vld [vmem:[%s458 + $0xe0] sm:$0xff]
      %v607 = vld [vmem:[%s458 + $0xf0] sm:$0xff]
      %v608 = vld [vmem:[%s458 + $0xf8] sm:$0xff]
      %v609 = vld [vmem:[%s458 + $0x108] sm:$0xff]
      %v610 = vld [vmem:[%s458 + $0x110] sm:$0xff]
      %v611 = vld [vmem:[%s458 + $0x120] sm:$0xff]
      %v612 = vld [vmem:[%s458 + $0x128] sm:$0xff]
      %v613 = vld [vmem:[%s458 + $0x138] sm:$0xff]
      %v614 = vld [vmem:[%s458 + $0x140] sm:$0xff]
      %v615 = vld [vmem:[%s458 + $0x150] sm:$0xff]
      %v616 = vld [vmem:[%s458 + $0x158] sm:$0xff]
      %v617 = vld [vmem:[%s458 + $0x168] sm:$0xff]
      %v618 = vld [vmem:[%s458 + $0x170] sm:$0xff]
      %v619 = vld [vmem:[%s458 + $0x1] sm:$0xff]
      %v620 = vld [vmem:[%s458 + $0x9] sm:$0xff]
      %v621 = vld [vmem:[%s458 + $0x19] sm:$0xff]
      %v622 = vld [vmem:[%s458 + $0x21] sm:$0xff]
      %v623 = vld [vmem:[%s458 + $0x31] sm:$0xff]
      %v624 = vld [vmem:[%s458 + $0x39] sm:$0xff]
      %v625 = vld [vmem:[%s458 + $0x49] sm:$0xff]
      %v626 = vld [vmem:[%s458 + $0x51] sm:$0xff]
      %v627 = vld [vmem:[%s458 + $0x61] sm:$0xff]
      %v628 = vld [vmem:[%s458 + $0x69] sm:$0xff]
      %v629 = vld [vmem:[%s458 + $0x79] sm:$0xff]
      %v630 = vld [vmem:[%s458 + $0x81] sm:$0xff]
      %v631 = vld [vmem:[%s458 + $0x91] sm:$0xff]
      %v632 = vld [vmem:[%s458 + $0x99] sm:$0xff]
      %v633 = vld [vmem:[%s458 + $0xa9] sm:$0xff]
      %v634 = vld [vmem:[%s458 + $0xb1] sm:$0xff]
      %v635 = vld [vmem:[%s458 + $0xc1] sm:$0xff]
      %v636 = vld [vmem:[%s458 + $0xc9] sm:$0xff]
      %v637 = vld [vmem:[%s458 + $0xd9] sm:$0xff]
      %v638 = vld [vmem:[%s458 + $0xe1] sm:$0xff]
      %v639 = vld [vmem:[%s458 + $0xf1] sm:$0xff]
      %v640 = vld [vmem:[%s458 + $0xf9] sm:$0xff]
      %v641 = vld [vmem:[%s458 + $0x109] sm:$0xff]
      %v642 = vld [vmem:[%s458 + $0x111] sm:$0xff]
      %v643 = vld [vmem:[%s458 + $0x121] sm:$0xff]
      %v644 = vld [vmem:[%s458 + $0x129] sm:$0xff]
      %v645 = vld [vmem:[%s458 + $0x139] sm:$0xff]
      %v646 = vld [vmem:[%s458 + $0x141] sm:$0xff]
      %v647 = vld [vmem:[%s458 + $0x151] sm:$0xff]
      %v648 = vld [vmem:[%s458 + $0x159] sm:$0xff]
      %v649 = vld [vmem:[%s458 + $0x169] sm:$0xff]
      %v650 = vld [vmem:[%s458 + $0x171] sm:$0xff]
      %v651 = vld [vmem:[%s458 + $0x2] sm:$0xff]
      %v652 = vld [vmem:[%s458 + $0xa] sm:$0xff]
      %v653 = vld [vmem:[%s458 + $0x1a] sm:$0xff]
      %v654 = vld [vmem:[%s458 + $0x22] sm:$0xff]
      %v655 = vld [vmem:[%s458 + $0x32] sm:$0xff]
      %v656 = vld [vmem:[%s458 + $0x3a] sm:$0xff]
      %v657 = vld [vmem:[%s458 + $0x4a] sm:$0xff]
      %v658 = vld [vmem:[%s458 + $0x52] sm:$0xff]
      %v659 = vld [vmem:[%s458 + $0x62] sm:$0xff]
      %v660 = vld [vmem:[%s458 + $0x6a] sm:$0xff]
      %v661 = vld [vmem:[%s458 + $0x7a] sm:$0xff]
      %v662 = vld [vmem:[%s458 + $0x82] sm:$0xff]
      %v663 = vld [vmem:[%s458 + $0x92] sm:$0xff]
      %v664 = vld [vmem:[%s458 + $0x9a] sm:$0xff]
      %v665 = vld [vmem:[%s458 + $0xaa] sm:$0xff]
      %v666 = vld [vmem:[%s458 + $0xb2] sm:$0xff]
      %v667 = vld [vmem:[%s458 + $0xc2] sm:$0xff]
      %v668 = vld [vmem:[%s458 + $0xca] sm:$0xff]
      %v669 = vld [vmem:[%s458 + $0xda] sm:$0xff]
      %v670 = vld [vmem:[%s458 + $0xe2] sm:$0xff]
      %v671 = vld [vmem:[%s458 + $0xf2] sm:$0xff]
      %v672 = vld [vmem:[%s458 + $0xfa] sm:$0xff]
      %v673 = vld [vmem:[%s458 + $0x10a] sm:$0xff]
      %v674 = vld [vmem:[%s458 + $0x112] sm:$0xff]
      %v675 = vld [vmem:[%s458 + $0x122] sm:$0xff]
      %v676 = vld [vmem:[%s458 + $0x12a] sm:$0xff]
      %v677 = vld [vmem:[%s458 + $0x13a] sm:$0xff]
      %v678 = vld [vmem:[%s458 + $0x142] sm:$0xff]
      %v679 = vld [vmem:[%s458 + $0x152] sm:$0xff]
      %v680 = vld [vmem:[%s458 + $0x15a] sm:$0xff]
      %v681 = vld [vmem:[%s458 + $0x16a] sm:$0xff]
      %v682 = vld [vmem:[%s458 + $0x172] sm:$0xff]
      %s683 = scalar_lea.vmem [#allocation2], 48
      %v684 = vld [vmem:[%s683] sm:$0xff]
      %v685 = vld [vmem:[%s683 + $0x8] sm:$0xff]
      %v686 = vld [vmem:[%s683 + $0x18] sm:$0xff]
      %v687 = vld [vmem:[%s683 + $0x20] sm:$0xff]
      %v688 = vld [vmem:[%s683 + $0x30] sm:$0xff]
      %v689 = vld [vmem:[%s683 + $0x38] sm:$0xff]
      %v690 = vld [vmem:[%s683 + $0x48] sm:$0xff]
      %v691 = vld [vmem:[%s683 + $0x50] sm:$0xff]
      %v692 = vld [vmem:[%s683 + $0x60] sm:$0xff]
      %v693 = vld [vmem:[%s683 + $0x68] sm:$0xff]
      %v694 = vld [vmem:[%s683 + $0x78] sm:$0xff]
      %v695 = vld [vmem:[%s683 + $0x80] sm:$0xff]
      %v696 = vld [vmem:[%s683 + $0x90] sm:$0xff]
      %v697 = vld [vmem:[%s683 + $0x98] sm:$0xff]
      %v698 = vld [vmem:[%s683 + $0xa8] sm:$0xff]
      %v699 = vld [vmem:[%s683 + $0xb0] sm:$0xff]
      %v700 = vld [vmem:[%s683 + $0xc0] sm:$0xff]
      %v701 = vld [vmem:[%s683 + $0xc8] sm:$0xff]
      %v702 = vld [vmem:[%s683 + $0xd8] sm:$0xff]
      %v703 = vld [vmem:[%s683 + $0xe0] sm:$0xff]
      %v704 = vld [vmem:[%s683 + $0xf0] sm:$0xff]
      %v705 = vld [vmem:[%s683 + $0xf8] sm:$0xff]
      %v706 = vld [vmem:[%s683 + $0x108] sm:$0xff]
      %v707 = vld [vmem:[%s683 + $0x110] sm:$0xff]
      %v708 = vld [vmem:[%s683 + $0x120] sm:$0xff]
      %v709 = vld [vmem:[%s683 + $0x128] sm:$0xff]
      %v710 = vld [vmem:[%s683 + $0x138] sm:$0xff]
      %v711 = vld [vmem:[%s683 + $0x140] sm:$0xff]
      %v712 = vld [vmem:[%s683 + $0x150] sm:$0xff]
      %v713 = vld [vmem:[%s683 + $0x158] sm:$0xff]
      %v714 = vld [vmem:[%s683 + $0x168] sm:$0xff]
      %v715 = vld [vmem:[%s683 + $0x170] sm:$0xff]
      %v716 = vld [vmem:[%s683 + $0x1] sm:$0xff]
      %v717 = vld [vmem:[%s683 + $0x9] sm:$0xff]
      %v718 = vld [vmem:[%s683 + $0x19] sm:$0xff]
      %v719 = vld [vmem:[%s683 + $0x21] sm:$0xff]
      %v720 = vld [vmem:[%s683 + $0x31] sm:$0xff]
      %v721 = vld [vmem:[%s683 + $0x39] sm:$0xff]
      %v722 = vld [vmem:[%s683 + $0x49] sm:$0xff]
      %v723 = vld [vmem:[%s683 + $0x51] sm:$0xff]
      %v724 = vld [vmem:[%s683 + $0x61] sm:$0xff]
      %v725 = vld [vmem:[%s683 + $0x69] sm:$0xff]
      %v726 = vld [vmem:[%s683 + $0x79] sm:$0xff]
      %v727 = vld [vmem:[%s683 + $0x81] sm:$0xff]
      %v728 = vld [vmem:[%s683 + $0x91] sm:$0xff]
      %v729 = vld [vmem:[%s683 + $0x99] sm:$0xff]
      %v730 = vld [vmem:[%s683 + $0xa9] sm:$0xff]
      %v731 = vld [vmem:[%s683 + $0xb1] sm:$0xff]
      %v732 = vld [vmem:[%s683 + $0xc1] sm:$0xff]
      %v733 = vld [vmem:[%s683 + $0xc9] sm:$0xff]
      %v734 = vld [vmem:[%s683 + $0xd9] sm:$0xff]
      %v735 = vld [vmem:[%s683 + $0xe1] sm:$0xff]
      %v736 = vld [vmem:[%s683 + $0xf1] sm:$0xff]
      %v737 = vld [vmem:[%s683 + $0xf9] sm:$0xff]
      %v738 = vld [vmem:[%s683 + $0x109] sm:$0xff]
      %v739 = vld [vmem:[%s683 + $0x111] sm:$0xff]
      %v740 = vld [vmem:[%s683 + $0x121] sm:$0xff]
      %v741 = vld [vmem:[%s683 + $0x129] sm:$0xff]
      %v742 = vld [vmem:[%s683 + $0x139] sm:$0xff]
      %v743 = vld [vmem:[%s683 + $0x141] sm:$0xff]
      %v744 = vld [vmem:[%s683 + $0x151] sm:$0xff]
      %v745 = vld [vmem:[%s683 + $0x159] sm:$0xff]
      %v746 = vld [vmem:[%s683 + $0x169] sm:$0xff]
      %v747 = vld [vmem:[%s683 + $0x171] sm:$0xff]
      %v748 = vld [vmem:[%s683 + $0x2] sm:$0xff]
      %v749 = vld [vmem:[%s683 + $0xa] sm:$0xff]
      %v750 = vld [vmem:[%s683 + $0x1a] sm:$0xff]
      %v751 = vld [vmem:[%s683 + $0x22] sm:$0xff]
      %v752 = vld [vmem:[%s683 + $0x32] sm:$0xff]
      %v753 = vld [vmem:[%s683 + $0x3a] sm:$0xff]
      %v754 = vld [vmem:[%s683 + $0x4a] sm:$0xff]
      %v755 = vld [vmem:[%s683 + $0x52] sm:$0xff]
      %v756 = vld [vmem:[%s683 + $0x62] sm:$0xff]
      %v757 = vld [vmem:[%s683 + $0x6a] sm:$0xff]
      %v758 = vld [vmem:[%s683 + $0x7a] sm:$0xff]
      %v759 = vld [vmem:[%s683 + $0x82] sm:$0xff]
      %v760 = vld [vmem:[%s683 + $0x92] sm:$0xff]
      %v761 = vld [vmem:[%s683 + $0x9a] sm:$0xff]
      %v762 = vld [vmem:[%s683 + $0xaa] sm:$0xff]
      %v763 = vld [vmem:[%s683 + $0xb2] sm:$0xff]
      %v764 = vld [vmem:[%s683 + $0xc2] sm:$0xff]
      %v765 = vld [vmem:[%s683 + $0xca] sm:$0xff]
      %v766 = vld [vmem:[%s683 + $0xda] sm:$0xff]
      %v767 = vld [vmem:[%s683 + $0xe2] sm:$0xff]
      %v768 = vld [vmem:[%s683 + $0xf2] sm:$0xff]
      %v769 = vld [vmem:[%s683 + $0xfa] sm:$0xff]
      %v770 = vld [vmem:[%s683 + $0x10a] sm:$0xff]
      %v771 = vld [vmem:[%s683 + $0x112] sm:$0xff]
      %v772 = vld [vmem:[%s683 + $0x122] sm:$0xff]
      %v773 = vld [vmem:[%s683 + $0x12a] sm:$0xff]
      %v774 = vld [vmem:[%s683 + $0x13a] sm:$0xff]
      %v775 = vld [vmem:[%s683 + $0x142] sm:$0xff]
      %v776 = vld [vmem:[%s683 + $0x152] sm:$0xff]
      %v777 = vld [vmem:[%s683 + $0x15a] sm:$0xff]
      %v778 = vld [vmem:[%s683 + $0x16a] sm:$0xff]
      %v779 = vld [vmem:[%s683 + $0x172] sm:$0xff]
      %v780 = vpack.c.bf16 %v492, %v491
      %v781 = vpack.c.bf16 %v524, %v523
      %v782 = vpack.c.bf16 %v556, %v555
      %v783 = vpack.c.bf16 %v588, %v587
      %v784 = vpack.c.bf16 %v620, %v619
      %v785 = vpack.c.bf16 %v652, %v651
      %v786 = vpack.c.bf16 %v685, %v684
      %v787 = vpack.c.bf16 %v717, %v716
      %v788 = vpack.c.bf16 %v749, %v748
      %v789 = vpack.c.bf16 %v494, %v493
      %v790 = vpack.c.bf16 %v526, %v525
      %v791 = vpack.c.bf16 %v558, %v557
      %v792 = vpack.c.bf16 %v590, %v589
      %v793 = vpack.c.bf16 %v622, %v621
      %v794 = vpack.c.bf16 %v654, %v653
      %v795 = vpack.c.bf16 %v687, %v686
      %v796 = vpack.c.bf16 %v719, %v718
      %v797 = vpack.c.bf16 %v751, %v750
      %v798 = vpack.c.bf16 %v496, %v495
      %v799 = vpack.c.bf16 %v528, %v527
      %v800 = vpack.c.bf16 %v560, %v559
      %v801 = vpack.c.bf16 %v592, %v591
      %v802 = vpack.c.bf16 %v624, %v623
      %v803 = vpack.c.bf16 %v656, %v655
      %v804 = vpack.c.bf16 %v689, %v688
      %v805 = vpack.c.bf16 %v721, %v720
      %v806 = vpack.c.bf16 %v753, %v752
      %v807 = vpack.c.bf16 %v498, %v497
      %v808 = vpack.c.bf16 %v530, %v529
      %v809 = vpack.c.bf16 %v562, %v561
      %v810 = vpack.c.bf16 %v594, %v593
      %v811 = vpack.c.bf16 %v626, %v625
      %v812 = vpack.c.bf16 %v658, %v657
      %v813 = vpack.c.bf16 %v691, %v690
      %v814 = vpack.c.bf16 %v723, %v722
      %v815 = vpack.c.bf16 %v755, %v754
      %v816 = vpack.c.bf16 %v500, %v499
      %v817 = vpack.c.bf16 %v532, %v531
      %v818 = vpack.c.bf16 %v564, %v563
      %v819 = vpack.c.bf16 %v596, %v595
      %v820 = vpack.c.bf16 %v628, %v627
      %v821 = vpack.c.bf16 %v660, %v659
      %v822 = vpack.c.bf16 %v693, %v692
      %v823 = vpack.c.bf16 %v725, %v724
      %v824 = vpack.c.bf16 %v757, %v756
      %v825 = vpack.c.bf16 %v502, %v501
      %v826 = vpack.c.bf16 %v534, %v533
      %v827 = vpack.c.bf16 %v566, %v565
      %v828 = vpack.c.bf16 %v598, %v597
      %v829 = vpack.c.bf16 %v630, %v629
      %v830 = vpack.c.bf16 %v662, %v661
      %v831 = vpack.c.bf16 %v695, %v694
      %v832 = vpack.c.bf16 %v727, %v726
      %v833 = vpack.c.bf16 %v759, %v758
      %v834 = vpack.c.bf16 %v504, %v503
      %v835 = vpack.c.bf16 %v536, %v535
      %v836 = vpack.c.bf16 %v568, %v567
      %v837 = vpack.c.bf16 %v600, %v599
      %v838 = vpack.c.bf16 %v632, %v631
      %v839 = vpack.c.bf16 %v664, %v663
      %v840 = vpack.c.bf16 %v697, %v696
      %v841 = vpack.c.bf16 %v729, %v728
      %v842 = vpack.c.bf16 %v761, %v760
      %v843 = vpack.c.bf16 %v506, %v505
      %v844 = vpack.c.bf16 %v538, %v537
      %v845 = vpack.c.bf16 %v570, %v569
      %v846 = vpack.c.bf16 %v602, %v601
      %v847 = vpack.c.bf16 %v634, %v633
      %v848 = vpack.c.bf16 %v666, %v665
      %v849 = vpack.c.bf16 %v699, %v698
      %v850 = vpack.c.bf16 %v731, %v730
      %v851 = vpack.c.bf16 %v763, %v762
      %v852 = vpack.c.bf16 %v508, %v507
      %v853 = vpack.c.bf16 %v540, %v539
      %v854 = vpack.c.bf16 %v572, %v571
      %v855 = vpack.c.bf16 %v604, %v603
      %v856 = vpack.c.bf16 %v636, %v635
      %v857 = vpack.c.bf16 %v668, %v667
      %v858 = vpack.c.bf16 %v701, %v700
      %v859 = vpack.c.bf16 %v733, %v732
      %v860 = vpack.c.bf16 %v765, %v764
      %v861 = vpack.c.bf16 %v510, %v509
      %v862 = vpack.c.bf16 %v542, %v541
      %v863 = vpack.c.bf16 %v574, %v573
      %v864 = vpack.c.bf16 %v606, %v605
      %v865 = vpack.c.bf16 %v638, %v637
      %v866 = vpack.c.bf16 %v670, %v669
      %v867 = vpack.c.bf16 %v703, %v702
      %v868 = vpack.c.bf16 %v735, %v734
      %v869 = vpack.c.bf16 %v767, %v766
      %v870 = vpack.c.bf16 %v512, %v511
      %v871 = vpack.c.bf16 %v544, %v543
      %v872 = vpack.c.bf16 %v576, %v575
      %v873 = vpack.c.bf16 %v608, %v607
      %v874 = vpack.c.bf16 %v640, %v639
      %v875 = vpack.c.bf16 %v672, %v671
      %v876 = vpack.c.bf16 %v705, %v704
      %v877 = vpack.c.bf16 %v737, %v736
      %v878 = vpack.c.bf16 %v769, %v768
      %v879 = vpack.c.bf16 %v514, %v513
      %v880 = vpack.c.bf16 %v546, %v545
      %v881 = vpack.c.bf16 %v578, %v577
      %v882 = vpack.c.bf16 %v610, %v609
      %v883 = vpack.c.bf16 %v642, %v641
      %v884 = vpack.c.bf16 %v674, %v673
      %v885 = vpack.c.bf16 %v707, %v706
      %v886 = vpack.c.bf16 %v739, %v738
      %v887 = vpack.c.bf16 %v771, %v770
      %v888 = vpack.c.bf16 %v516, %v515
      %v889 = vpack.c.bf16 %v548, %v547
      %v890 = vpack.c.bf16 %v580, %v579
      %v891 = vpack.c.bf16 %v612, %v611
      %v892 = vpack.c.bf16 %v644, %v643
      %v893 = vpack.c.bf16 %v676, %v675
      %v894 = vpack.c.bf16 %v709, %v708
      %v895 = vpack.c.bf16 %v741, %v740
      %v896 = vpack.c.bf16 %v773, %v772
      %v897 = vpack.c.bf16 %v518, %v517
      %v898 = vpack.c.bf16 %v550, %v549
      %v899 = vpack.c.bf16 %v582, %v581
      %v900 = vpack.c.bf16 %v614, %v613
      %v901 = vpack.c.bf16 %v646, %v645
      %v902 = vpack.c.bf16 %v678, %v677
      %v903 = vpack.c.bf16 %v711, %v710
      %v904 = vpack.c.bf16 %v743, %v742
      %v905 = vpack.c.bf16 %v775, %v774
      %v906 = vpack.c.bf16 %v520, %v519
      %v907 = vpack.c.bf16 %v552, %v551
      %v908 = vpack.c.bf16 %v584, %v583
      %v909 = vpack.c.bf16 %v616, %v615
      %v910 = vpack.c.bf16 %v648, %v647
      %v911 = vpack.c.bf16 %v680, %v679
      %v912 = vpack.c.bf16 %v713, %v712
      %v913 = vpack.c.bf16 %v745, %v744
      %v914 = vpack.c.bf16 %v777, %v776
      %v915 = vpack.c.bf16 %v522, %v521
      %v916 = vpack.c.bf16 %v554, %v553
      %v917 = vpack.c.bf16 %v586, %v585
      %v918 = vpack.c.bf16 %v618, %v617
      %v919 = vpack.c.bf16 %v650, %v649
      %v920 = vpack.c.bf16 %v682, %v681
      %v921 = vpack.c.bf16 %v715, %v714
      %v922 = vpack.c.bf16 %v747, %v746
      %v923 = vpack.c.bf16 %v779, %v778
      %v924 = vld [vmem:[%s2] sm:$0xf]
      %v925 = vld [vmem:[%s2 + $0x4] sm:$0xf]
      %v926 = vld [vmem:[%s2 + $0x8] sm:$0xf]
      %v927 = vld [vmem:[%s2 + $0xc] sm:$0xf]
      %v928 = vld [vmem:[%s2 + $0x10] sm:$0xf]
      %v929 = vld [vmem:[%s2 + $0x14] sm:$0xf]
      %v930 = vld [vmem:[%s2 + $0x18] sm:$0xf]
      %v931 = vld [vmem:[%s2 + $0x1c] sm:$0xf]
      %v932 = vld [vmem:[%s2 + $0x20] sm:$0xf]
      %v933 = vld [vmem:[%s2 + $0x24] sm:$0xf]
      %v934 = vld [vmem:[%s2 + $0x28] sm:$0xf]
      %v935 = vld [vmem:[%s2 + $0x2c] sm:$0xf]
      %v936 = vld [vmem:[%s2 + $0x30] sm:$0xf]
      %v937 = vld [vmem:[%s2 + $0x34] sm:$0xf]
      %v938 = vld [vmem:[%s2 + $0x38] sm:$0xf]
      %v939 = vld [vmem:[%s2 + $0x3c] sm:$0xf]
      %v940 = vld [vmem:[%s2 + $0x40] sm:$0xf]
      %v941 = vld [vmem:[%s2 + $0x44] sm:$0xf]
      %v942 = vld [vmem:[%s2 + $0x48] sm:$0xf]
      %v943 = vld [vmem:[%s2 + $0x4c] sm:$0xf]
      %v944 = vld [vmem:[%s2 + $0x50] sm:$0xf]
      %v945 = vld [vmem:[%s2 + $0x54] sm:$0xf]
      %v946 = vld [vmem:[%s2 + $0x58] sm:$0xf]
      %v947 = vld [vmem:[%s2 + $0x5c] sm:$0xf]
      %v948 = vld [vmem:[%s2 + $0x60] sm:$0xf]
      %v949 = vld [vmem:[%s2 + $0x64] sm:$0xf]
      %v950 = vld [vmem:[%s2 + $0x68] sm:$0xf]
      %v951 = vld [vmem:[%s2 + $0x6c] sm:$0xf]
      %v952 = vld [vmem:[%s2 + $0x70] sm:$0xf]
      %v953 = vld [vmem:[%s2 + $0x74] sm:$0xf]
      %v954 = vld [vmem:[%s2 + $0x78] sm:$0xf]
      %v955 = vld [vmem:[%s2 + $0x7c] sm:$0xf]
      %v956 = vld [vmem:[%s2 + $0x80] sm:$0xf]
      %v957 = vld [vmem:[%s2 + $0x84] sm:$0xf]
      %v958 = vld [vmem:[%s2 + $0x88] sm:$0xf]
      %v959 = vld [vmem:[%s2 + $0x8c] sm:$0xf]
      %v960 = vld [vmem:[%s2 + $0x90] sm:$0xf]
      %v961 = vld [vmem:[%s2 + $0x94] sm:$0xf]
      %v962 = vld [vmem:[%s2 + $0x98] sm:$0xf]
      %v963 = vld [vmem:[%s2 + $0x9c] sm:$0xf]
      %v964 = vld [vmem:[%s2 + $0xa0] sm:$0xf]
      %v965 = vld [vmem:[%s2 + $0xa4] sm:$0xf]
      %v966 = vld [vmem:[%s2 + $0xa8] sm:$0xf]
      %v967 = vld [vmem:[%s2 + $0xac] sm:$0xf]
      %v968 = vld [vmem:[%s2 + $0xb0] sm:$0xf]
      %v969 = vld [vmem:[%s2 + $0xb4] sm:$0xf]
      %v970 = vld [vmem:[%s2 + $0xb8] sm:$0xf]
      %v971 = vld [vmem:[%s2 + $0xbc] sm:$0xf]
      %v972 = vld [vmem:[%s2 + $0xc0] sm:$0xf]
      %v973 = vld [vmem:[%s2 + $0xc4] sm:$0xf]
      %v974 = vld [vmem:[%s2 + $0xc8] sm:$0xf]
      %v975 = vld [vmem:[%s2 + $0xcc] sm:$0xf]
      %v976 = vld [vmem:[%s2 + $0xd0] sm:$0xf]
      %v977 = vld [vmem:[%s2 + $0xd4] sm:$0xf]
      %v978 = vld [vmem:[%s2 + $0xd8] sm:$0xf]
      %v979 = vld [vmem:[%s2 + $0xdc] sm:$0xf]
      %v980 = vld [vmem:[%s2 + $0xe0] sm:$0xf]
      %v981 = vld [vmem:[%s2 + $0xe4] sm:$0xf]
      %v982 = vld [vmem:[%s2 + $0xe8] sm:$0xf]
      %v983 = vld [vmem:[%s2 + $0xec] sm:$0xf]
      %v984 = vld [vmem:[%s2 + $0xf0] sm:$0xf]
      %v985 = vld [vmem:[%s2 + $0xf4] sm:$0xf]
      %v986 = vld [vmem:[%s2 + $0xf8] sm:$0xf]
      %v987 = vld [vmem:[%s2 + $0xfc] sm:$0xf]
      %v988 = vld [vmem:[%s2 + $0x100] sm:$0xf]
      %v989 = vld [vmem:[%s2 + $0x104] sm:$0xf]
      %v990 = vld [vmem:[%s2 + $0x108] sm:$0xf]
      %v991 = vld [vmem:[%s2 + $0x10c] sm:$0xf]
      %v992 = vld [vmem:[%s2 + $0x110] sm:$0xf]
      %v993 = vld [vmem:[%s2 + $0x114] sm:$0xf]
      %v994 = vld [vmem:[%s2 + $0x118] sm:$0xf]
      %v995 = vld [vmem:[%s2 + $0x11c] sm:$0xf]
      %v996 = vld [vmem:[%s2 + $0x120] sm:$0xf]
      %v997 = vld [vmem:[%s2 + $0x124] sm:$0xf]
      %v998 = vld [vmem:[%s2 + $0x128] sm:$0xf]
      %v999 = vld [vmem:[%s2 + $0x12c] sm:$0xf]
      %v1000 = vld [vmem:[%s2 + $0x130] sm:$0xf]
      %v1001 = vld [vmem:[%s2 + $0x134] sm:$0xf]
      %v1002 = vld [vmem:[%s2 + $0x138] sm:$0xf]
      %v1003 = vld [vmem:[%s2 + $0x13c] sm:$0xf]
      %v1004 = vld [vmem:[%s2 + $0x140] sm:$0xf]
      %v1005 = vld [vmem:[%s2 + $0x144] sm:$0xf]
      %v1006 = vld [vmem:[%s2 + $0x148] sm:$0xf]
      %v1007 = vld [vmem:[%s2 + $0x14c] sm:$0xf]
      %v1008 = vld [vmem:[%s2 + $0x150] sm:$0xf]
      %v1009 = vld [vmem:[%s2 + $0x154] sm:$0xf]
      %v1010 = vld [vmem:[%s2 + $0x158] sm:$0xf]
      %v1011 = vld [vmem:[%s2 + $0x15c] sm:$0xf]
      %v1012 = vld [vmem:[%s2 + $0x160] sm:$0xf]
      %v1013 = vld [vmem:[%s2 + $0x164] sm:$0xf]
      %v1014 = vld [vmem:[%s2 + $0x168] sm:$0xf]
      %v1015 = vld [vmem:[%s2 + $0x16c] sm:$0xf]
      %v1016 = vld [vmem:[%s2 + $0x170] sm:$0xf]
      %v1017 = vld [vmem:[%s2 + $0x174] sm:$0xf]
      %v1018 = vld [vmem:[%s2 + $0x178] sm:$0xf]
      %v1019 = vld [vmem:[%s2 + $0x17c] sm:$0xf]
      %v1020 = vld [vmem:[%s2 + $0x180] sm:$0xf]
      %v1021 = vld [vmem:[%s2 + $0x184] sm:$0xf]
      %v1022 = vld [vmem:[%s2 + $0x188] sm:$0xf]
      %v1023 = vld [vmem:[%s2 + $0x18c] sm:$0xf]
      %v1024 = vld [vmem:[%s2 + $0x190] sm:$0xf]
      %v1025 = vld [vmem:[%s2 + $0x194] sm:$0xf]
      %v1026 = vld [vmem:[%s2 + $0x198] sm:$0xf]
      %v1027 = vld [vmem:[%s2 + $0x19c] sm:$0xf]
      %v1028 = vld [vmem:[%s2 + $0x1a0] sm:$0xf]
      %v1029 = vld [vmem:[%s2 + $0x1a4] sm:$0xf]
      %v1030 = vld [vmem:[%s2 + $0x1a8] sm:$0xf]
      %v1031 = vld [vmem:[%s2 + $0x1ac] sm:$0xf]
      %v1032 = vld [vmem:[%s2 + $0x1b0] sm:$0xf]
      %v1033 = vld [vmem:[%s2 + $0x1b4] sm:$0xf]
      %v1034 = vld [vmem:[%s2 + $0x1b8] sm:$0xf]
      %v1035 = vld [vmem:[%s2 + $0x1bc] sm:$0xf]
      %v1036 = vld [vmem:[%s2 + $0x1c0] sm:$0xf]
      %v1037 = vld [vmem:[%s2 + $0x1c4] sm:$0xf]
      %v1038 = vld [vmem:[%s2 + $0x1c8] sm:$0xf]
      %v1039 = vld [vmem:[%s2 + $0x1cc] sm:$0xf]
      %v1040 = vld [vmem:[%s2 + $0x1d0] sm:$0xf]
      %v1041 = vld [vmem:[%s2 + $0x1d4] sm:$0xf]
      %v1042 = vld [vmem:[%s2 + $0x1d8] sm:$0xf]
      %v1043 = vld [vmem:[%s2 + $0x1dc] sm:$0xf]
      %v1044 = vld [vmem:[%s2 + $0x1e0] sm:$0xf]
      %v1045 = vld [vmem:[%s2 + $0x1e4] sm:$0xf]
      %v1046 = vld [vmem:[%s2 + $0x1e8] sm:$0xf]
      %v1047 = vld [vmem:[%s2 + $0x1ec] sm:$0xf]
      %v1048 = vld [vmem:[%s2 + $0x1f0] sm:$0xf]
      %v1049 = vld [vmem:[%s2 + $0x1f4] sm:$0xf]
      %v1050 = vld [vmem:[%s2 + $0x1f8] sm:$0xf]
      %v1051 = vld [vmem:[%s2 + $0x1fc] sm:$0xf]
      %v1052 = vld [vmem:[%s2 + $0x200] sm:$0xf]
      %v1053 = vld [vmem:[%s2 + $0x204] sm:$0xf]
      %v1054 = vld [vmem:[%s2 + $0x208] sm:$0xf]
      %v1055 = vld [vmem:[%s2 + $0x20c] sm:$0xf]
      %v1056 = vld [vmem:[%s2 + $0x210] sm:$0xf]
      %v1057 = vld [vmem:[%s2 + $0x214] sm:$0xf]
      %v1058 = vld [vmem:[%s2 + $0x218] sm:$0xf]
      %v1059 = vld [vmem:[%s2 + $0x21c] sm:$0xf]
      %v1060 = vld [vmem:[%s2 + $0x220] sm:$0xf]
      %v1061 = vld [vmem:[%s2 + $0x224] sm:$0xf]
      %v1062 = vld [vmem:[%s2 + $0x228] sm:$0xf]
      %v1063 = vld [vmem:[%s2 + $0x22c] sm:$0xf]
      %v1064 = vld [vmem:[%s2 + $0x230] sm:$0xf]
      %v1065 = vld [vmem:[%s2 + $0x234] sm:$0xf]
      %v1066 = vld [vmem:[%s2 + $0x238] sm:$0xf]
      %v1067 = vld [vmem:[%s2 + $0x23c] sm:$0xf]
      %v1212 = vunpack.c.l.b16 %v924
      %v1213 = vunpack.c.l.b16 %v925
      %v1214 = vunpack.c.l.b16 %v926
      %v1215 = vunpack.c.l.b16 %v927
      %v1216 = vunpack.c.l.b16 %v928
      %v1217 = vunpack.c.l.b16 %v929
      %v1218 = vunpack.c.l.b16 %v930
      %v1219 = vunpack.c.l.b16 %v931
      %v1220 = vunpack.c.l.b16 %v932
      %v1221 = vunpack.c.l.b16 %v933
      %v1222 = vunpack.c.l.b16 %v934
      %v1223 = vunpack.c.l.b16 %v935
      %v1224 = vunpack.c.l.b16 %v936
      %v1225 = vunpack.c.l.b16 %v937
      %v1226 = vunpack.c.l.b16 %v938
      %v1227 = vunpack.c.l.b16 %v939
      %v1228 = vunpack.c.l.b16 %v940
      %v1229 = vunpack.c.l.b16 %v941
      %v1230 = vunpack.c.l.b16 %v942
      %v1231 = vunpack.c.l.b16 %v943
      %v1232 = vunpack.c.l.b16 %v944
      %v1233 = vunpack.c.l.b16 %v945
      %v1234 = vunpack.c.l.b16 %v946
      %v1235 = vunpack.c.l.b16 %v947
      %v1236 = vunpack.c.l.b16 %v948
      %v1237 = vunpack.c.l.b16 %v949
      %v1238 = vunpack.c.l.b16 %v950
      %v1239 = vunpack.c.l.b16 %v951
      %v1240 = vunpack.c.l.b16 %v952
      %v1241 = vunpack.c.l.b16 %v953
      %v1242 = vunpack.c.l.b16 %v954
      %v1243 = vunpack.c.l.b16 %v955
      %v1244 = vunpack.c.l.b16 %v956
      %v1245 = vunpack.c.l.b16 %v957
      %v1246 = vunpack.c.l.b16 %v958
      %v1247 = vunpack.c.l.b16 %v959
      %v1248 = vunpack.c.l.b16 %v960
      %v1249 = vunpack.c.l.b16 %v961
      %v1250 = vunpack.c.l.b16 %v962
      %v1251 = vunpack.c.l.b16 %v963
      %v1252 = vunpack.c.l.b16 %v964
      %v1253 = vunpack.c.l.b16 %v965
      %v1254 = vunpack.c.l.b16 %v966
      %v1255 = vunpack.c.l.b16 %v967
      %v1256 = vunpack.c.l.b16 %v968
      %v1257 = vunpack.c.l.b16 %v969
      %v1258 = vunpack.c.l.b16 %v970
      %v1259 = vunpack.c.l.b16 %v971
      %v1260 = vunpack.c.l.b16 %v972
      %v1261 = vunpack.c.l.b16 %v973
      %v1262 = vunpack.c.l.b16 %v974
      %v1263 = vunpack.c.l.b16 %v975
      %v1264 = vunpack.c.l.b16 %v976
      %v1265 = vunpack.c.l.b16 %v977
      %v1266 = vunpack.c.l.b16 %v978
      %v1267 = vunpack.c.l.b16 %v979
      %v1268 = vunpack.c.l.b16 %v980
      %v1269 = vunpack.c.l.b16 %v981
      %v1270 = vunpack.c.l.b16 %v982
      %v1271 = vunpack.c.l.b16 %v983
      %v1272 = vunpack.c.l.b16 %v984
      %v1273 = vunpack.c.l.b16 %v985
      %v1274 = vunpack.c.l.b16 %v986
      %v1275 = vunpack.c.l.b16 %v987
      %v1276 = vunpack.c.l.b16 %v988
      %v1277 = vunpack.c.l.b16 %v989
      %v1278 = vunpack.c.l.b16 %v990
      %v1279 = vunpack.c.l.b16 %v991
      %v1280 = vunpack.c.l.b16 %v992
      %v1281 = vunpack.c.l.b16 %v993
      %v1282 = vunpack.c.l.b16 %v994
      %v1283 = vunpack.c.l.b16 %v995
      %v1284 = vunpack.c.l.b16 %v996
      %v1285 = vunpack.c.l.b16 %v997
      %v1286 = vunpack.c.l.b16 %v998
      %v1287 = vunpack.c.l.b16 %v999
      %v1288 = vunpack.c.l.b16 %v1000
      %v1289 = vunpack.c.l.b16 %v1001
      %v1290 = vunpack.c.l.b16 %v1002
      %v1291 = vunpack.c.l.b16 %v1003
      %v1292 = vunpack.c.l.b16 %v1004
      %v1293 = vunpack.c.l.b16 %v1005
      %v1294 = vunpack.c.l.b16 %v1006
      %v1295 = vunpack.c.l.b16 %v1007
      %v1296 = vunpack.c.l.b16 %v1008
      %v1297 = vunpack.c.l.b16 %v1009
      %v1298 = vunpack.c.l.b16 %v1010
      %v1299 = vunpack.c.l.b16 %v1011
      %v1300 = vunpack.c.l.b16 %v1012
      %v1301 = vunpack.c.l.b16 %v1013
      %v1302 = vunpack.c.l.b16 %v1014
      %v1303 = vunpack.c.l.b16 %v1015
      %v1304 = vunpack.c.l.b16 %v1016
      %v1305 = vunpack.c.l.b16 %v1017
      %v1306 = vunpack.c.l.b16 %v1018
      %v1307 = vunpack.c.l.b16 %v1019
      %v1308 = vunpack.c.l.b16 %v1020
      %v1309 = vunpack.c.l.b16 %v1021
      %v1310 = vunpack.c.l.b16 %v1022
      %v1311 = vunpack.c.l.b16 %v1023
      %v1312 = vunpack.c.l.b16 %v1024
      %v1313 = vunpack.c.l.b16 %v1025
      %v1314 = vunpack.c.l.b16 %v1026
      %v1315 = vunpack.c.l.b16 %v1027
      %v1316 = vunpack.c.l.b16 %v1028
      %v1317 = vunpack.c.l.b16 %v1029
      %v1318 = vunpack.c.l.b16 %v1030
      %v1319 = vunpack.c.l.b16 %v1031
      %v1320 = vunpack.c.l.b16 %v1032
      %v1321 = vunpack.c.l.b16 %v1033
      %v1322 = vunpack.c.l.b16 %v1034
      %v1323 = vunpack.c.l.b16 %v1035
      %v1324 = vunpack.c.l.b16 %v1036
      %v1325 = vunpack.c.l.b16 %v1037
      %v1326 = vunpack.c.l.b16 %v1038
      %v1327 = vunpack.c.l.b16 %v1039
      %v1328 = vunpack.c.l.b16 %v1040
      %v1329 = vunpack.c.l.b16 %v1041
      %v1330 = vunpack.c.l.b16 %v1042
      %v1331 = vunpack.c.l.b16 %v1043
      %v1332 = vunpack.c.l.b16 %v1044
      %v1333 = vunpack.c.l.b16 %v1045
      %v1334 = vunpack.c.l.b16 %v1046
      %v1335 = vunpack.c.l.b16 %v1047
      %v1336 = vunpack.c.l.b16 %v1048
      %v1337 = vunpack.c.l.b16 %v1049
      %v1338 = vunpack.c.l.b16 %v1050
      %v1339 = vunpack.c.l.b16 %v1051
      %v1340 = vunpack.c.l.b16 %v1052
      %v1341 = vunpack.c.l.b16 %v1053
      %v1342 = vunpack.c.l.b16 %v1054
      %v1343 = vunpack.c.l.b16 %v1055
      %v1344 = vunpack.c.l.b16 %v1056
      %v1345 = vunpack.c.l.b16 %v1057
      %v1346 = vunpack.c.l.b16 %v1058
      %v1347 = vunpack.c.l.b16 %v1059
      %v1348 = vunpack.c.l.b16 %v1060
      %v1349 = vunpack.c.l.b16 %v1061
      %v1350 = vunpack.c.l.b16 %v1062
      %v1351 = vunpack.c.l.b16 %v1063
      %v1352 = vunpack.c.l.b16 %v1064
      %v1353 = vunpack.c.l.b16 %v1065
      %v1354 = vunpack.c.l.b16 %v1066
      %v1355 = vunpack.c.l.b16 %v1067
      %v1356 = vpack.c.b16 %v1213, %v1212
      %v1357 = vpack.c.b16 %v1215, %v1214
      %v1358 = vpack.c.b16 %v1217, %v1216
      %v1359 = vpack.c.b16 %v1219, %v1218
      %v1360 = vpack.c.b16 %v1221, %v1220
      %v1361 = vpack.c.b16 %v1223, %v1222
      %v1362 = vpack.c.b16 %v1225, %v1224
      %v1363 = vpack.c.b16 %v1227, %v1226
      %v1364 = vpack.c.b16 %v1229, %v1228
      %v1365 = vpack.c.b16 %v1231, %v1230
      %v1366 = vpack.c.b16 %v1233, %v1232
      %v1367 = vpack.c.b16 %v1235, %v1234
      %v1368 = vpack.c.b16 %v1237, %v1236
      %v1369 = vpack.c.b16 %v1239, %v1238
      %v1370 = vpack.c.b16 %v1241, %v1240
      %v1371 = vpack.c.b16 %v1243, %v1242
      %v1372 = vpack.c.b16 %v1245, %v1244
      %v1373 = vpack.c.b16 %v1247, %v1246
      %v1374 = vpack.c.b16 %v1249, %v1248
      %v1375 = vpack.c.b16 %v1251, %v1250
      %v1376 = vpack.c.b16 %v1253, %v1252
      %v1377 = vpack.c.b16 %v1255, %v1254
      %v1378 = vpack.c.b16 %v1257, %v1256
      %v1379 = vpack.c.b16 %v1259, %v1258
      %v1380 = vpack.c.b16 %v1261, %v1260
      %v1381 = vpack.c.b16 %v1263, %v1262
      %v1382 = vpack.c.b16 %v1265, %v1264
      %v1383 = vpack.c.b16 %v1267, %v1266
      %v1384 = vpack.c.b16 %v1269, %v1268
      %v1385 = vpack.c.b16 %v1271, %v1270
      %v1386 = vpack.c.b16 %v1273, %v1272
      %v1387 = vpack.c.b16 %v1275, %v1274
      %v1388 = vpack.c.b16 %v1277, %v1276
      %v1389 = vpack.c.b16 %v1279, %v1278
      %v1390 = vpack.c.b16 %v1281, %v1280
      %v1391 = vpack.c.b16 %v1283, %v1282
      %v1392 = vpack.c.b16 %v1285, %v1284
      %v1393 = vpack.c.b16 %v1287, %v1286
      %v1394 = vpack.c.b16 %v1289, %v1288
      %v1395 = vpack.c.b16 %v1291, %v1290
      %v1396 = vpack.c.b16 %v1293, %v1292
      %v1397 = vpack.c.b16 %v1295, %v1294
      %v1398 = vpack.c.b16 %v1297, %v1296
      %v1399 = vpack.c.b16 %v1299, %v1298
      %v1400 = vpack.c.b16 %v1301, %v1300
      %v1401 = vpack.c.b16 %v1303, %v1302
      %v1402 = vpack.c.b16 %v1305, %v1304
      %v1403 = vpack.c.b16 %v1307, %v1306
      %v1404 = vpack.c.b16 %v1309, %v1308
      %v1405 = vpack.c.b16 %v1311, %v1310
      %v1406 = vpack.c.b16 %v1313, %v1312
      %v1407 = vpack.c.b16 %v1315, %v1314
      %v1408 = vpack.c.b16 %v1317, %v1316
      %v1409 = vpack.c.b16 %v1319, %v1318
      %v1410 = vpack.c.b16 %v1321, %v1320
      %v1411 = vpack.c.b16 %v1323, %v1322
      %v1412 = vpack.c.b16 %v1325, %v1324
      %v1413 = vpack.c.b16 %v1327, %v1326
      %v1414 = vpack.c.b16 %v1329, %v1328
      %v1415 = vpack.c.b16 %v1331, %v1330
      %v1416 = vpack.c.b16 %v1333, %v1332
      %v1417 = vpack.c.b16 %v1335, %v1334
      %v1418 = vpack.c.b16 %v1337, %v1336
      %v1419 = vpack.c.b16 %v1339, %v1338
      %v1420 = vpack.c.b16 %v1341, %v1340
      %v1421 = vpack.c.b16 %v1343, %v1342
      %v1422 = vpack.c.b16 %v1345, %v1344
      %v1423 = vpack.c.b16 %v1347, %v1346
      %v1424 = vpack.c.b16 %v1349, %v1348
      %v1425 = vpack.c.b16 %v1351, %v1350
      %v1426 = vpack.c.b16 %v1353, %v1352
      %v1427 = vpack.c.b16 %v1355, %v1354
      %1500 = vmatprep.subr.bf16.mxu0 0
      %1501 = vmatpush1.bf16.msra.mxu0 %v1363
      %1502 = vmatprep.subr.bf16.mxu0 0
      %1503 = vmatpush1.bf16.msra.mxu0 %v1362
      %1504 = vmatprep.subr.bf16.mxu0 0
      %1505 = vmatpush1.bf16.msra.mxu0 %v1361
      %1506 = vmatprep.subr.bf16.mxu0 0
      %1507 = vmatpush1.bf16.msra.mxu0 %v1360
      %1508 = vmatprep.subr.bf16.mxu0 0
      %1509 = vmatpush1.bf16.msra.mxu0 %v1359
      %1510 = vmatprep.subr.bf16.mxu0 0
      %1511 = vmatpush1.bf16.msra.mxu0 %v1358
      %1512 = vmatprep.subr.bf16.mxu0 0
      %1513 = vmatpush1.bf16.msra.mxu0 %v1357
      %1514 = vmatprep.subr.bf16.mxu0 0
      %1515 = vmatpush1.bf16.msra.mxu0 %v1356
      %1516 = vmatprep.subr.bf16.mxu0 0
      %1517 = vmatpush2.bf16.msra.mxu0 %v1371
      %1518 = vmatprep.subr.bf16.mxu0 0
      %1519 = vmatpush2.bf16.msra.mxu0 %v1370
      %1520 = vmatprep.subr.bf16.mxu0 0
      %1521 = vmatpush2.bf16.msra.mxu0 %v1369
      %1522 = vmatprep.subr.bf16.mxu0 0
      %1523 = vmatpush2.bf16.msra.mxu0 %v1368
      %1524 = vmatprep.subr.bf16.mxu0 0
      %1525 = vmatpush2.bf16.msra.mxu0 %v1367
      %1526 = vmatprep.subr.bf16.mxu0 0
      %1527 = vmatpush2.bf16.msra.mxu0 %v1366
      %1528 = vmatprep.subr.bf16.mxu0 0
      %1529 = vmatpush2.bf16.msra.mxu0 %v1365
      %1530 = vmatprep.subr.bf16.mxu0 0
      %1531 = vmatpush2.bf16.msra.mxu0 %v1364
      %1532 = vmatprep.mubr.bf16.mxu0 %v781
      %1533 = vmatmul.mubr.bf16.gmra.mxu0 %v780
      %v1534 = vpop.f32.mrf.mxu0
      %v1535 = vadd.f32 0.0, %v1534
      %v1536 = vpop.f32.mrf.mxu0
      %v1537 = vpop.f32.mrf.mxu0
      %v1538 = vadd.f32 0.0, %v1537
      %v1539 = vpop.f32.mrf.mxu0
      %1540 = vmatprep.mubr.bf16.mxu0 %v790
      %1541 = vmatmul.mubr.bf16.gmra.mxu0 %v789
      %v1542 = vpop.f32.mrf.mxu0
      %v1543 = vadd.f32 0.0, %v1542
      %v1544 = vpop.f32.mrf.mxu0
      %v1545 = vpop.f32.mrf.mxu0
      %v1546 = vadd.f32 0.0, %v1545
      %v1547 = vpop.f32.mrf.mxu0
      %1548 = vmatprep.mubr.bf16.mxu0 %v799
      %1549 = vmatmul.mubr.bf16.gmra.mxu0 %v798
      %v1550 = vpop.f32.mrf.mxu0
      %v1551 = vadd.f32 0.0, %v1550
      %v1552 = vpop.f32.mrf.mxu0
      %v1553 = vpop.f32.mrf.mxu0
      %v1554 = vadd.f32 0.0, %v1553
      %v1555 = vpop.f32.mrf.mxu0
      %1556 = vmatprep.mubr.bf16.mxu0 %v808
      %1557 = vmatmul.mubr.bf16.gmra.mxu0 %v807
      %v1558 = vpop.f32.mrf.mxu0
      %v1559 = vadd.f32 0.0, %v1558
      %v1560 = vpop.f32.mrf.mxu0
      %v1561 = vpop.f32.mrf.mxu0
      %v1562 = vadd.f32 0.0, %v1561
      %v1563 = vpop.f32.mrf.mxu0
      %1564 = vmatprep.mubr.bf16.mxu0 %v817
      %1565 = vmatmul.mubr.bf16.gmra.mxu0 %v816
      %v1566 = vpop.f32.mrf.mxu0
      %v1567 = vadd.f32 0.0, %v1566
      %v1568 = vpop.f32.mrf.mxu0
      %v1569 = vpop.f32.mrf.mxu0
      %v1570 = vadd.f32 0.0, %v1569
      %v1571 = vpop.f32.mrf.mxu0
      %1572 = vmatprep.mubr.bf16.mxu0 %v826
      %1573 = vmatmul.mubr.bf16.gmra.mxu0 %v825
      %v1574 = vpop.f32.mrf.mxu0
      %v1575 = vadd.f32 0.0, %v1574
      %v1576 = vpop.f32.mrf.mxu0
      %v1577 = vpop.f32.mrf.mxu0
      %v1578 = vadd.f32 0.0, %v1577
      %v1579 = vpop.f32.mrf.mxu0
      %1580 = vmatprep.mubr.bf16.mxu0 %v835
      %1581 = vmatmul.mubr.bf16.gmra.mxu0 %v834
      %v1582 = vpop.f32.mrf.mxu0
      %v1583 = vadd.f32 0.0, %v1582
      %v1584 = vpop.f32.mrf.mxu0
      %v1585 = vpop.f32.mrf.mxu0
      %v1586 = vadd.f32 0.0, %v1585
      %v1587 = vpop.f32.mrf.mxu0
      %1588 = vmatprep.mubr.bf16.mxu0 %v844
      %1589 = vmatmul.mubr.bf16.gmra.mxu0 %v843
      %v1590 = vpop.f32.mrf.mxu0
      %v1591 = vadd.f32 0.0, %v1590
      %v1592 = vpop.f32.mrf.mxu0
      %v1593 = vpop.f32.mrf.mxu0
      %v1594 = vadd.f32 0.0, %v1593
      %v1595 = vpop.f32.mrf.mxu0
      %1596 = vmatprep.mubr.bf16.mxu0 %v853
      %1597 = vmatmul.mubr.bf16.gmra.mxu0 %v852
      %v1598 = vpop.f32.mrf.mxu0
      %v1599 = vadd.f32 0.0, %v1598
      %v1600 = vpop.f32.mrf.mxu0
      %v1601 = vpop.f32.mrf.mxu0
      %v1602 = vadd.f32 0.0, %v1601
      %v1603 = vpop.f32.mrf.mxu0
      %1604 = vmatprep.mubr.bf16.mxu0 %v862
      %1605 = vmatmul.mubr.bf16.gmra.mxu0 %v861
      %v1606 = vpop.f32.mrf.mxu0
      %v1607 = vadd.f32 0.0, %v1606
      %v1608 = vpop.f32.mrf.mxu0
      %v1609 = vpop.f32.mrf.mxu0
      %v1610 = vadd.f32 0.0, %v1609
      %v1611 = vpop.f32.mrf.mxu0
      %1612 = vmatprep.mubr.bf16.mxu0 %v871
      %1613 = vmatmul.mubr.bf16.gmra.mxu0 %v870
      %v1614 = vpop.f32.mrf.mxu0
      %v1615 = vadd.f32 0.0, %v1614
      %v1616 = vpop.f32.mrf.mxu0
      %v1617 = vpop.f32.mrf.mxu0
      %v1618 = vadd.f32 0.0, %v1617
      %v1619 = vpop.f32.mrf.mxu0
      %1620 = vmatprep.mubr.bf16.mxu0 %v880
      %1621 = vmatmul.mubr.bf16.gmra.mxu0 %v879
      %v1622 = vpop.f32.mrf.mxu0
      %v1623 = vadd.f32 0.0, %v1622
      %v1624 = vpop.f32.mrf.mxu0
      %v1625 = vpop.f32.mrf.mxu0
      %v1626 = vadd.f32 0.0, %v1625
      %v1627 = vpop.f32.mrf.mxu0
      %1628 = vmatprep.mubr.bf16.mxu0 %v889
      %1629 = vmatmul.mubr.bf16.gmra.mxu0 %v888
      %v1630 = vpop.f32.mrf.mxu0
      %v1631 = vadd.f32 0.0, %v1630
      %v1632 = vpop.f32.mrf.mxu0
      %v1633 = vpop.f32.mrf.mxu0
      %v1634 = vadd.f32 0.0, %v1633
      %v1635 = vpop.f32.mrf.mxu0
      %1636 = vmatprep.mubr.bf16.mxu0 %v898
      %1637 = vmatmul.mubr.bf16.gmra.mxu0 %v897
      %v1638 = vpop.f32.mrf.mxu0
      %v1639 = vadd.f32 0.0, %v1638
      %v1640 = vpop.f32.mrf.mxu0
      %v1641 = vpop.f32.mrf.mxu0
      %v1642 = vadd.f32 0.0, %v1641
      %v1643 = vpop.f32.mrf.mxu0
      %1644 = vmatprep.mubr.bf16.mxu0 %v907
      %1645 = vmatmul.mubr.bf16.gmra.mxu0 %v906
      %v1646 = vpop.f32.mrf.mxu0
      %v1647 = vadd.f32 0.0, %v1646
      %v1648 = vpop.f32.mrf.mxu0
      %v1649 = vpop.f32.mrf.mxu0
      %v1650 = vadd.f32 0.0, %v1649
      %v1651 = vpop.f32.mrf.mxu0
      %1652 = vmatprep.mubr.bf16.mxu0 %v916
      %1653 = vmatmul.mubr.bf16.gmra.mxu0 %v915
      %v1654 = vpop.f32.mrf.mxu0
      %v1655 = vadd.f32 0.0, %v1654
      %v1656 = vpop.f32.mrf.mxu0
      %v1657 = vpop.f32.mrf.mxu0
      %v1658 = vadd.f32 0.0, %v1657
      %v1659 = vpop.f32.mrf.mxu0
      %1660 = vdwg.mxu0
      %1661 = vmatprep.subr.bf16.mxu0 0
      %1662 = vmatpush1.bf16.msra.mxu0 %v1379
      %1663 = vmatprep.subr.bf16.mxu0 0
      %1664 = vmatpush1.bf16.msra.mxu0 %v1378
      %1665 = vmatprep.subr.bf16.mxu0 0
      %1666 = vmatpush1.bf16.msra.mxu0 %v1377
      %1667 = vmatprep.subr.bf16.mxu0 0
      %1668 = vmatpush1.bf16.msra.mxu0 %v1376
      %1669 = vmatprep.subr.bf16.mxu0 0
      %1670 = vmatpush1.bf16.msra.mxu0 %v1375
      %1671 = vmatprep.subr.bf16.mxu0 0
      %1672 = vmatpush1.bf16.msra.mxu0 %v1374
      %1673 = vmatprep.subr.bf16.mxu0 0
      %1674 = vmatpush1.bf16.msra.mxu0 %v1373
      %1675 = vmatprep.subr.bf16.mxu0 0
      %1676 = vmatpush1.bf16.msra.mxu0 %v1372
      %1677 = vmatprep.subr.bf16.mxu0 0
      %1678 = vmatpush2.bf16.msra.mxu0 %v1387
      %1679 = vmatprep.subr.bf16.mxu0 0
      %1680 = vmatpush2.bf16.msra.mxu0 %v1386
      %1681 = vmatprep.subr.bf16.mxu0 0
      %1682 = vmatpush2.bf16.msra.mxu0 %v1385
      %1683 = vmatprep.subr.bf16.mxu0 0
      %1684 = vmatpush2.bf16.msra.mxu0 %v1384
      %1685 = vmatprep.subr.bf16.mxu0 0
      %1686 = vmatpush2.bf16.msra.mxu0 %v1383
      %1687 = vmatprep.subr.bf16.mxu0 0
      %1688 = vmatpush2.bf16.msra.mxu0 %v1382
      %1689 = vmatprep.subr.bf16.mxu0 0
      %1690 = vmatpush2.bf16.msra.mxu0 %v1381
      %1691 = vmatprep.subr.bf16.mxu0 0
      %1692 = vmatpush2.bf16.msra.mxu0 %v1380
      %1693 = vmatprep.mubr.bf16.mxu0 %v783
      %1694 = vmatmul.mubr.bf16.gmra.mxu0 %v782
      %v1695 = vpop.f32.mrf.mxu0
      %v1696 = vadd.f32 %v1535, %v1695
      %v1697 = vpop.f32.mrf.mxu0
      %v1698 = vpop.f32.mrf.mxu0
      %v1699 = vadd.f32 %v1538, %v1698
      %v1700 = vpop.f32.mrf.mxu0
      %1701 = vmatprep.mubr.bf16.mxu0 %v792
      %1702 = vmatmul.mubr.bf16.gmra.mxu0 %v791
      %v1703 = vpop.f32.mrf.mxu0
      %v1704 = vadd.f32 %v1543, %v1703
      %v1705 = vpop.f32.mrf.mxu0
      %v1706 = vpop.f32.mrf.mxu0
      %v1707 = vadd.f32 %v1546, %v1706
      %v1708 = vpop.f32.mrf.mxu0
      %1709 = vmatprep.mubr.bf16.mxu0 %v801
      %1710 = vmatmul.mubr.bf16.gmra.mxu0 %v800
      %v1711 = vpop.f32.mrf.mxu0
      %v1712 = vadd.f32 %v1551, %v1711
      %v1713 = vpop.f32.mrf.mxu0
      %v1714 = vpop.f32.mrf.mxu0
      %v1715 = vadd.f32 %v1554, %v1714
      %v1716 = vpop.f32.mrf.mxu0
      %1717 = vmatprep.mubr.bf16.mxu0 %v810
      %1718 = vmatmul.mubr.bf16.gmra.mxu0 %v809
      %v1719 = vpop.f32.mrf.mxu0
      %v1720 = vadd.f32 %v1559, %v1719
      %v1721 = vpop.f32.mrf.mxu0
      %v1722 = vpop.f32.mrf.mxu0
      %v1723 = vadd.f32 %v1562, %v1722
      %v1724 = vpop.f32.mrf.mxu0
      %1725 = vmatprep.mubr.bf16.mxu0 %v819
      %1726 = vmatmul.mubr.bf16.gmra.mxu0 %v818
      %v1727 = vpop.f32.mrf.mxu0
      %v1728 = vadd.f32 %v1567, %v1727
      %v1729 = vpop.f32.mrf.mxu0
      %v1730 = vpop.f32.mrf.mxu0
      %v1731 = vadd.f32 %v1570, %v1730
      %v1732 = vpop.f32.mrf.mxu0
      %1733 = vmatprep.mubr.bf16.mxu0 %v828
      %1734 = vmatmul.mubr.bf16.gmra.mxu0 %v827
      %v1735 = vpop.f32.mrf.mxu0
      %v1736 = vadd.f32 %v1575, %v1735
      %v1737 = vpop.f32.mrf.mxu0
      %v1738 = vpop.f32.mrf.mxu0
      %v1739 = vadd.f32 %v1578, %v1738
      %v1740 = vpop.f32.mrf.mxu0
      %1741 = vmatprep.mubr.bf16.mxu0 %v837
      %1742 = vmatmul.mubr.bf16.gmra.mxu0 %v836
      %v1743 = vpop.f32.mrf.mxu0
      %v1744 = vadd.f32 %v1583, %v1743
      %v1745 = vpop.f32.mrf.mxu0
      %v1746 = vpop.f32.mrf.mxu0
      %v1747 = vadd.f32 %v1586, %v1746
      %v1748 = vpop.f32.mrf.mxu0
      %1749 = vmatprep.mubr.bf16.mxu0 %v846
      %1750 = vmatmul.mubr.bf16.gmra.mxu0 %v845
      %v1751 = vpop.f32.mrf.mxu0
      %v1752 = vadd.f32 %v1591, %v1751
      %v1753 = vpop.f32.mrf.mxu0
      %v1754 = vpop.f32.mrf.mxu0
      %v1755 = vadd.f32 %v1594, %v1754
      %v1756 = vpop.f32.mrf.mxu0
      %1757 = vmatprep.mubr.bf16.mxu0 %v855
      %1758 = vmatmul.mubr.bf16.gmra.mxu0 %v854
      %v1759 = vpop.f32.mrf.mxu0
      %v1760 = vadd.f32 %v1599, %v1759
      %v1761 = vpop.f32.mrf.mxu0
      %v1762 = vpop.f32.mrf.mxu0
      %v1763 = vadd.f32 %v1602, %v1762
      %v1764 = vpop.f32.mrf.mxu0
      %1765 = vmatprep.mubr.bf16.mxu0 %v864
      %1766 = vmatmul.mubr.bf16.gmra.mxu0 %v863
      %v1767 = vpop.f32.mrf.mxu0
      %v1768 = vadd.f32 %v1607, %v1767
      %v1769 = vpop.f32.mrf.mxu0
      %v1770 = vpop.f32.mrf.mxu0
      %v1771 = vadd.f32 %v1610, %v1770
      %v1772 = vpop.f32.mrf.mxu0
      %1773 = vmatprep.mubr.bf16.mxu0 %v873
      %1774 = vmatmul.mubr.bf16.gmra.mxu0 %v872
      %v1775 = vpop.f32.mrf.mxu0
      %v1776 = vadd.f32 %v1615, %v1775
      %v1777 = vpop.f32.mrf.mxu0
      %v1778 = vpop.f32.mrf.mxu0
      %v1779 = vadd.f32 %v1618, %v1778
      %v1780 = vpop.f32.mrf.mxu0
      %1781 = vmatprep.mubr.bf16.mxu0 %v882
      %1782 = vmatmul.mubr.bf16.gmra.mxu0 %v881
      %v1783 = vpop.f32.mrf.mxu0
      %v1784 = vadd.f32 %v1623, %v1783
      %v1785 = vpop.f32.mrf.mxu0
      %v1786 = vpop.f32.mrf.mxu0
      %v1787 = vadd.f32 %v1626, %v1786
      %v1788 = vpop.f32.mrf.mxu0
      %1789 = vmatprep.mubr.bf16.mxu0 %v891
      %1790 = vmatmul.mubr.bf16.gmra.mxu0 %v890
      %v1791 = vpop.f32.mrf.mxu0
      %v1792 = vadd.f32 %v1631, %v1791
      %v1793 = vpop.f32.mrf.mxu0
      %v1794 = vpop.f32.mrf.mxu0
      %v1795 = vadd.f32 %v1634, %v1794
      %v1796 = vpop.f32.mrf.mxu0
      %1797 = vmatprep.mubr.bf16.mxu0 %v900
      %1798 = vmatmul.mubr.bf16.gmra.mxu0 %v899
      %v1799 = vpop.f32.mrf.mxu0
      %v1800 = vadd.f32 %v1639, %v1799
      %v1801 = vpop.f32.mrf.mxu0
      %v1802 = vpop.f32.mrf.mxu0
      %v1803 = vadd.f32 %v1642, %v1802
      %v1804 = vpop.f32.mrf.mxu0
      %1805 = vmatprep.mubr.bf16.mxu0 %v909
      %1806 = vmatmul.mubr.bf16.gmra.mxu0 %v908
      %v1807 = vpop.f32.mrf.mxu0
      %v1808 = vadd.f32 %v1647, %v1807
      %v1809 = vpop.f32.mrf.mxu0
      %v1810 = vpop.f32.mrf.mxu0
      %v1811 = vadd.f32 %v1650, %v1810
      %v1812 = vpop.f32.mrf.mxu0
      %1813 = vmatprep.mubr.bf16.mxu0 %v918
      %1814 = vmatmul.mubr.bf16.gmra.mxu0 %v917
      %v1815 = vpop.f32.mrf.mxu0
      %v1816 = vadd.f32 %v1655, %v1815
      %v1817 = vpop.f32.mrf.mxu0
      %v1818 = vpop.f32.mrf.mxu0
      %v1819 = vadd.f32 %v1658, %v1818
      %v1820 = vpop.f32.mrf.mxu0
      %1821 = vdwg.mxu0
      %1822 = vmatprep.subr.bf16.mxu0 0
      %1823 = vmatpush1.bf16.msra.mxu0 %v1395
      %1824 = vmatprep.subr.bf16.mxu0 0
      %1825 = vmatpush1.bf16.msra.mxu0 %v1394
      %1826 = vmatprep.subr.bf16.mxu0 0
      %1827 = vmatpush1.bf16.msra.mxu0 %v1393
      %1828 = vmatprep.subr.bf16.mxu0 0
      %1829 = vmatpush1.bf16.msra.mxu0 %v1392
      %1830 = vmatprep.subr.bf16.mxu0 0
      %1831 = vmatpush1.bf16.msra.mxu0 %v1391
      %1832 = vmatprep.subr.bf16.mxu0 0
      %1833 = vmatpush1.bf16.msra.mxu0 %v1390
      %1834 = vmatprep.subr.bf16.mxu0 0
      %1835 = vmatpush1.bf16.msra.mxu0 %v1389
      %1836 = vmatprep.subr.bf16.mxu0 0
      %1837 = vmatpush1.bf16.msra.mxu0 %v1388
      %1838 = vmatprep.subr.bf16.mxu0 0
      %1839 = vmatpush2.bf16.msra.mxu0 %v1403
      %1840 = vmatprep.subr.bf16.mxu0 0
      %1841 = vmatpush2.bf16.msra.mxu0 %v1402
      %1842 = vmatprep.subr.bf16.mxu0 0
      %1843 = vmatpush2.bf16.msra.mxu0 %v1401
      %1844 = vmatprep.subr.bf16.mxu0 0
      %1845 = vmatpush2.bf16.msra.mxu0 %v1400
      %1846 = vmatprep.subr.bf16.mxu0 0
      %1847 = vmatpush2.bf16.msra.mxu0 %v1399
      %1848 = vmatprep.subr.bf16.mxu0 0
      %1849 = vmatpush2.bf16.msra.mxu0 %v1398
      %1850 = vmatprep.subr.bf16.mxu0 0
      %1851 = vmatpush2.bf16.msra.mxu0 %v1397
      %1852 = vmatprep.subr.bf16.mxu0 0
      %1853 = vmatpush2.bf16.msra.mxu0 %v1396
      %1854 = vmatprep.mubr.bf16.mxu0 %v785
      %1855 = vmatmul.mubr.bf16.gmra.mxu0 %v784
      %v1856 = vpop.f32.mrf.mxu0
      %v1857 = vadd.f32 %v1696, %v1856
      %v1858 = vpop.f32.mrf.mxu0
      %v1859 = vpop.f32.mrf.mxu0
      %v1860 = vadd.f32 %v1699, %v1859
      %v1861 = vpop.f32.mrf.mxu0
      %1862 = vmatprep.mubr.bf16.mxu0 %v794
      %1863 = vmatmul.mubr.bf16.gmra.mxu0 %v793
      %v1864 = vpop.f32.mrf.mxu0
      %v1865 = vadd.f32 %v1704, %v1864
      %v1866 = vpop.f32.mrf.mxu0
      %v1867 = vpop.f32.mrf.mxu0
      %v1868 = vadd.f32 %v1707, %v1867
      %v1869 = vpop.f32.mrf.mxu0
      %1870 = vmatprep.mubr.bf16.mxu0 %v803
      %1871 = vmatmul.mubr.bf16.gmra.mxu0 %v802
      %v1872 = vpop.f32.mrf.mxu0
      %v1873 = vadd.f32 %v1712, %v1872
      %v1874 = vpop.f32.mrf.mxu0
      %v1875 = vpop.f32.mrf.mxu0
      %v1876 = vadd.f32 %v1715, %v1875
      %v1877 = vpop.f32.mrf.mxu0
      %1878 = vmatprep.mubr.bf16.mxu0 %v812
      %1879 = vmatmul.mubr.bf16.gmra.mxu0 %v811
      %v1880 = vpop.f32.mrf.mxu0
      %v1881 = vadd.f32 %v1720, %v1880
      %v1882 = vpop.f32.mrf.mxu0
      %v1883 = vpop.f32.mrf.mxu0
      %v1884 = vadd.f32 %v1723, %v1883
      %v1885 = vpop.f32.mrf.mxu0
      %1886 = vmatprep.mubr.bf16.mxu0 %v821
      %1887 = vmatmul.mubr.bf16.gmra.mxu0 %v820
      %v1888 = vpop.f32.mrf.mxu0
      %v1889 = vadd.f32 %v1728, %v1888
      %v1890 = vpop.f32.mrf.mxu0
      %v1891 = vpop.f32.mrf.mxu0
      %v1892 = vadd.f32 %v1731, %v1891
      %v1893 = vpop.f32.mrf.mxu0
      %1894 = vmatprep.mubr.bf16.mxu0 %v830
      %1895 = vmatmul.mubr.bf16.gmra.mxu0 %v829
      %v1896 = vpop.f32.mrf.mxu0
      %v1897 = vadd.f32 %v1736, %v1896
      %v1898 = vpop.f32.mrf.mxu0
      %v1899 = vpop.f32.mrf.mxu0
      %v1900 = vadd.f32 %v1739, %v1899
      %v1901 = vpop.f32.mrf.mxu0
      %1902 = vmatprep.mubr.bf16.mxu0 %v839
      %1903 = vmatmul.mubr.bf16.gmra.mxu0 %v838
      %v1904 = vpop.f32.mrf.mxu0
      %v1905 = vadd.f32 %v1744, %v1904
      %v1906 = vpop.f32.mrf.mxu0
      %v1907 = vpop.f32.mrf.mxu0
      %v1908 = vadd.f32 %v1747, %v1907
      %v1909 = vpop.f32.mrf.mxu0
      %1910 = vmatprep.mubr.bf16.mxu0 %v848
      %1911 = vmatmul.mubr.bf16.gmra.mxu0 %v847
      %v1912 = vpop.f32.mrf.mxu0
      %v1913 = vadd.f32 %v1752, %v1912
      %v1914 = vpop.f32.mrf.mxu0
      %v1915 = vpop.f32.mrf.mxu0
      %v1916 = vadd.f32 %v1755, %v1915
      %v1917 = vpop.f32.mrf.mxu0
      %1918 = vmatprep.mubr.bf16.mxu0 %v857
      %1919 = vmatmul.mubr.bf16.gmra.mxu0 %v856
      %v1920 = vpop.f32.mrf.mxu0
      %v1921 = vadd.f32 %v1760, %v1920
      %v1922 = vpop.f32.mrf.mxu0
      %v1923 = vpop.f32.mrf.mxu0
      %v1924 = vadd.f32 %v1763, %v1923
      %v1925 = vpop.f32.mrf.mxu0
      %1926 = vmatprep.mubr.bf16.mxu0 %v866
      %1927 = vmatmul.mubr.bf16.gmra.mxu0 %v865
      %v1928 = vpop.f32.mrf.mxu0
      %v1929 = vadd.f32 %v1768, %v1928
      %v1930 = vpop.f32.mrf.mxu0
      %v1931 = vpop.f32.mrf.mxu0
      %v1932 = vadd.f32 %v1771, %v1931
      %v1933 = vpop.f32.mrf.mxu0
      %1934 = vmatprep.mubr.bf16.mxu0 %v875
      %1935 = vmatmul.mubr.bf16.gmra.mxu0 %v874
      %v1936 = vpop.f32.mrf.mxu0
      %v1937 = vadd.f32 %v1776, %v1936
      %v1938 = vpop.f32.mrf.mxu0
      %v1939 = vpop.f32.mrf.mxu0
      %v1940 = vadd.f32 %v1779, %v1939
      %v1941 = vpop.f32.mrf.mxu0
      %1942 = vmatprep.mubr.bf16.mxu0 %v884
      %1943 = vmatmul.mubr.bf16.gmra.mxu0 %v883
      %v1944 = vpop.f32.mrf.mxu0
      %v1945 = vadd.f32 %v1784, %v1944
      %v1946 = vpop.f32.mrf.mxu0
      %v1947 = vpop.f32.mrf.mxu0
      %v1948 = vadd.f32 %v1787, %v1947
      %v1949 = vpop.f32.mrf.mxu0
      %1950 = vmatprep.mubr.bf16.mxu0 %v893
      %1951 = vmatmul.mubr.bf16.gmra.mxu0 %v892
      %v1952 = vpop.f32.mrf.mxu0
      %v1953 = vadd.f32 %v1792, %v1952
      %v1954 = vpop.f32.mrf.mxu0
      %v1955 = vpop.f32.mrf.mxu0
      %v1956 = vadd.f32 %v1795, %v1955
      %v1957 = vpop.f32.mrf.mxu0
      %1958 = vmatprep.mubr.bf16.mxu0 %v902
      %1959 = vmatmul.mubr.bf16.gmra.mxu0 %v901
      %v1960 = vpop.f32.mrf.mxu0
      %v1961 = vadd.f32 %v1800, %v1960
      %v1962 = vpop.f32.mrf.mxu0
      %v1963 = vpop.f32.mrf.mxu0
      %v1964 = vadd.f32 %v1803, %v1963
      %v1965 = vpop.f32.mrf.mxu0
      %1966 = vmatprep.mubr.bf16.mxu0 %v911
      %1967 = vmatmul.mubr.bf16.gmra.mxu0 %v910
      %v1968 = vpop.f32.mrf.mxu0
      %v1969 = vadd.f32 %v1808, %v1968
      %v1970 = vpop.f32.mrf.mxu0
      %v1971 = vpop.f32.mrf.mxu0
      %v1972 = vadd.f32 %v1811, %v1971
      %v1973 = vpop.f32.mrf.mxu0
      %1974 = vmatprep.mubr.bf16.mxu0 %v920
      %1975 = vmatmul.mubr.bf16.gmra.mxu0 %v919
      %v1976 = vpop.f32.mrf.mxu0
      %v1977 = vadd.f32 %v1816, %v1976
      %v1978 = vpop.f32.mrf.mxu0
      %v1979 = vpop.f32.mrf.mxu0
      %v1980 = vadd.f32 %v1819, %v1979
      %v1981 = vpop.f32.mrf.mxu0
      %1982 = vdwg.mxu0
      %1983 = vmatprep.subr.bf16.mxu0 0
      %1984 = vmatpush1.bf16.msra.mxu0 %v1411
      %1985 = vmatprep.subr.bf16.mxu0 0
      %1986 = vmatpush1.bf16.msra.mxu0 %v1410
      %1987 = vmatprep.subr.bf16.mxu0 0
      %1988 = vmatpush1.bf16.msra.mxu0 %v1409
      %1989 = vmatprep.subr.bf16.mxu0 0
      %1990 = vmatpush1.bf16.msra.mxu0 %v1408
      %1991 = vmatprep.subr.bf16.mxu0 0
      %1992 = vmatpush1.bf16.msra.mxu0 %v1407
      %1993 = vmatprep.subr.bf16.mxu0 0
      %1994 = vmatpush1.bf16.msra.mxu0 %v1406
      %1995 = vmatprep.subr.bf16.mxu0 0
      %1996 = vmatpush1.bf16.msra.mxu0 %v1405
      %1997 = vmatprep.subr.bf16.mxu0 0
      %1998 = vmatpush1.bf16.msra.mxu0 %v1404
      %1999 = vmatprep.subr.bf16.mxu0 0
      %2000 = vmatpush2.bf16.msra.mxu0 %v1419
      %2001 = vmatprep.subr.bf16.mxu0 0
      %2002 = vmatpush2.bf16.msra.mxu0 %v1418
      %2003 = vmatprep.subr.bf16.mxu0 0
      %2004 = vmatpush2.bf16.msra.mxu0 %v1417
      %2005 = vmatprep.subr.bf16.mxu0 0
      %2006 = vmatpush2.bf16.msra.mxu0 %v1416
      %2007 = vmatprep.subr.bf16.mxu0 0
      %2008 = vmatpush2.bf16.msra.mxu0 %v1415
      %2009 = vmatprep.subr.bf16.mxu0 0
      %2010 = vmatpush2.bf16.msra.mxu0 %v1414
      %2011 = vmatprep.subr.bf16.mxu0 0
      %2012 = vmatpush2.bf16.msra.mxu0 %v1413
      %2013 = vmatprep.subr.bf16.mxu0 0
      %2014 = vmatpush2.bf16.msra.mxu0 %v1412
      %2015 = vmatprep.mubr.bf16.mxu0 %v787
      %2016 = vmatmul.mubr.bf16.gmra.mxu0 %v786
      %v2017 = vpop.f32.mrf.mxu0
      %v2018 = vadd.f32 %v1857, %v2017
      %v2019 = vpop.f32.mrf.mxu0
      %v2020 = vpop.f32.mrf.mxu0
      %v2021 = vadd.f32 %v1860, %v2020
      %v2022 = vpop.f32.mrf.mxu0
      %2023 = vmatprep.mubr.bf16.mxu0 %v796
      %2024 = vmatmul.mubr.bf16.gmra.mxu0 %v795
      %v2025 = vpop.f32.mrf.mxu0
      %v2026 = vadd.f32 %v1865, %v2025
      %v2027 = vpop.f32.mrf.mxu0
      %v2028 = vpop.f32.mrf.mxu0
      %v2029 = vadd.f32 %v1868, %v2028
      %v2030 = vpop.f32.mrf.mxu0
      %2031 = vmatprep.mubr.bf16.mxu0 %v805
      %2032 = vmatmul.mubr.bf16.gmra.mxu0 %v804
      %v2033 = vpop.f32.mrf.mxu0
      %v2034 = vadd.f32 %v1873, %v2033
      %v2035 = vpop.f32.mrf.mxu0
      %v2036 = vpop.f32.mrf.mxu0
      %v2037 = vadd.f32 %v1876, %v2036
      %v2038 = vpop.f32.mrf.mxu0
      %2039 = vmatprep.mubr.bf16.mxu0 %v814
      %2040 = vmatmul.mubr.bf16.gmra.mxu0 %v813
      %v2041 = vpop.f32.mrf.mxu0
      %v2042 = vadd.f32 %v1881, %v2041
      %v2043 = vpop.f32.mrf.mxu0
      %v2044 = vpop.f32.mrf.mxu0
      %v2045 = vadd.f32 %v1884, %v2044
      %v2046 = vpop.f32.mrf.mxu0
      %2047 = vmatprep.mubr.bf16.mxu0 %v823
      %2048 = vmatmul.mubr.bf16.gmra.mxu0 %v822
      %v2049 = vpop.f32.mrf.mxu0
      %v2050 = vadd.f32 %v1889, %v2049
      %v2051 = vpop.f32.mrf.mxu0
      %v2052 = vpop.f32.mrf.mxu0
      %v2053 = vadd.f32 %v1892, %v2052
      %v2054 = vpop.f32.mrf.mxu0
      %2055 = vmatprep.mubr.bf16.mxu0 %v832
      %2056 = vmatmul.mubr.bf16.gmra.mxu0 %v831
      %v2057 = vpop.f32.mrf.mxu0
      %v2058 = vadd.f32 %v1897, %v2057
      %v2059 = vpop.f32.mrf.mxu0
      %v2060 = vpop.f32.mrf.mxu0
      %v2061 = vadd.f32 %v1900, %v2060
      %v2062 = vpop.f32.mrf.mxu0
      %2063 = vmatprep.mubr.bf16.mxu0 %v841
      %2064 = vmatmul.mubr.bf16.gmra.mxu0 %v840
      %v2065 = vpop.f32.mrf.mxu0
      %v2066 = vadd.f32 %v1905, %v2065
      %v2067 = vpop.f32.mrf.mxu0
      %v2068 = vpop.f32.mrf.mxu0
      %v2069 = vadd.f32 %v1908, %v2068
      %v2070 = vpop.f32.mrf.mxu0
      %2071 = vmatprep.mubr.bf16.mxu0 %v850
      %2072 = vmatmul.mubr.bf16.gmra.mxu0 %v849
      %v2073 = vpop.f32.mrf.mxu0
      %v2074 = vadd.f32 %v1913, %v2073
      %v2075 = vpop.f32.mrf.mxu0
      %v2076 = vpop.f32.mrf.mxu0
      %v2077 = vadd.f32 %v1916, %v2076
      %v2078 = vpop.f32.mrf.mxu0
      %2079 = vmatprep.mubr.bf16.mxu0 %v859
      %2080 = vmatmul.mubr.bf16.gmra.mxu0 %v858
      %v2081 = vpop.f32.mrf.mxu0
      %v2082 = vadd.f32 %v1921, %v2081
      %v2083 = vpop.f32.mrf.mxu0
      %v2084 = vpop.f32.mrf.mxu0
      %v2085 = vadd.f32 %v1924, %v2084
      %v2086 = vpop.f32.mrf.mxu0
      %2087 = vmatprep.mubr.bf16.mxu0 %v868
      %2088 = vmatmul.mubr.bf16.gmra.mxu0 %v867
      %v2089 = vpop.f32.mrf.mxu0
      %v2090 = vadd.f32 %v1929, %v2089
      %v2091 = vpop.f32.mrf.mxu0
      %v2092 = vpop.f32.mrf.mxu0
      %v2093 = vadd.f32 %v1932, %v2092
      %v2094 = vpop.f32.mrf.mxu0
      %2095 = vmatprep.mubr.bf16.mxu0 %v877
      %2096 = vmatmul.mubr.bf16.gmra.mxu0 %v876
      %v2097 = vpop.f32.mrf.mxu0
      %v2098 = vadd.f32 %v1937, %v2097
      %v2099 = vpop.f32.mrf.mxu0
      %v2100 = vpop.f32.mrf.mxu0
      %v2101 = vadd.f32 %v1940, %v2100
      %v2102 = vpop.f32.mrf.mxu0
      %2103 = vmatprep.mubr.bf16.mxu0 %v886
      %2104 = vmatmul.mubr.bf16.gmra.mxu0 %v885
      %v2105 = vpop.f32.mrf.mxu0
      %v2106 = vadd.f32 %v1945, %v2105
      %v2107 = vpop.f32.mrf.mxu0
      %v2108 = vpop.f32.mrf.mxu0
      %v2109 = vadd.f32 %v1948, %v2108
      %v2110 = vpop.f32.mrf.mxu0
      %2111 = vmatprep.mubr.bf16.mxu0 %v895
      %2112 = vmatmul.mubr.bf16.gmra.mxu0 %v894
      %v2113 = vpop.f32.mrf.mxu0
      %v2114 = vadd.f32 %v1953, %v2113
      %v2115 = vpop.f32.mrf.mxu0
      %v2116 = vpop.f32.mrf.mxu0
      %v2117 = vadd.f32 %v1956, %v2116
      %v2118 = vpop.f32.mrf.mxu0
      %2119 = vmatprep.mubr.bf16.mxu0 %v904
      %2120 = vmatmul.mubr.bf16.gmra.mxu0 %v903
      %v2121 = vpop.f32.mrf.mxu0
      %v2122 = vadd.f32 %v1961, %v2121
      %v2123 = vpop.f32.mrf.mxu0
      %v2124 = vpop.f32.mrf.mxu0
      %v2125 = vadd.f32 %v1964, %v2124
      %v2126 = vpop.f32.mrf.mxu0
      %2127 = vmatprep.mubr.bf16.mxu0 %v913
      %2128 = vmatmul.mubr.bf16.gmra.mxu0 %v912
      %v2129 = vpop.f32.mrf.mxu0
      %v2130 = vadd.f32 %v1969, %v2129
      %v2131 = vpop.f32.mrf.mxu0
      %v2132 = vpop.f32.mrf.mxu0
      %v2133 = vadd.f32 %v1972, %v2132
      %v2134 = vpop.f32.mrf.mxu0
      %2135 = vmatprep.mubr.bf16.mxu0 %v922
      %2136 = vmatmul.mubr.bf16.gmra.mxu0 %v921
      %v2137 = vpop.f32.mrf.mxu0
      %v2138 = vadd.f32 %v1977, %v2137
      %v2139 = vpop.f32.mrf.mxu0
      %v2140 = vpop.f32.mrf.mxu0
      %v2141 = vadd.f32 %v1980, %v2140
      %v2142 = vpop.f32.mrf.mxu0
      %2143 = vdwg.mxu0
      %2144 = vmatprep.subr.bf16.mxu0 0
      %2145 = vmatpush1.bf16.msra.mxu0 %v1427
      %2146 = vmatprep.subr.bf16.mxu0 0
      %2147 = vmatpush1.bf16.msra.mxu0 %v1426
      %2148 = vmatprep.subr.bf16.mxu0 0
      %2149 = vmatpush1.bf16.msra.mxu0 %v1425
      %2150 = vmatprep.subr.bf16.mxu0 0
      %2151 = vmatpush1.bf16.msra.mxu0 %v1424
      %2152 = vmatprep.subr.bf16.mxu0 0
      %2153 = vmatpush1.bf16.msra.mxu0 %v1423
      %2154 = vmatprep.subr.bf16.mxu0 0
      %2155 = vmatpush1.bf16.msra.mxu0 %v1422
      %2156 = vmatprep.subr.bf16.mxu0 0
      %2157 = vmatpush1.bf16.msra.mxu0 %v1421
      %2158 = vmatprep.subr.bf16.mxu0 0
      %2159 = vmatpush1.bf16.msra.mxu0 %v1420
      %2160 = vmatprep.subr.bf16.mxu0 0
      %2161 = vmatpush2.bf16.msra.mxu0 0
      %2162 = vmatprep.subr.bf16.mxu0 0
      %2163 = vmatpush2.bf16.msra.mxu0 0
      %2164 = vmatprep.subr.bf16.mxu0 0
      %2165 = vmatpush2.bf16.msra.mxu0 0
      %2166 = vmatprep.subr.bf16.mxu0 0
      %2167 = vmatpush2.bf16.msra.mxu0 0
      %2168 = vmatprep.subr.bf16.mxu0 0
      %2169 = vmatpush2.bf16.msra.mxu0 0
      %2170 = vmatprep.subr.bf16.mxu0 0
      %2171 = vmatpush2.bf16.msra.mxu0 0
      %2172 = vmatprep.subr.bf16.mxu0 0
      %2173 = vmatpush2.bf16.msra.mxu0 0
      %2174 = vmatprep.subr.bf16.mxu0 0
      %2175 = vmatpush2.bf16.msra.mxu0 0
      %2176 = vmatprep.mubr.bf16.mxu0 0
      %2177 = vmatmul.mubr.bf16.gmra.mxu0 %v788
      %v2178 = vpop.f32.mrf.mxu0
      %v2179 = vadd.f32 %v2018, %v2178
      %v2180 = vpop.f32.mrf.mxu0
      %v2181 = vpop.f32.mrf.mxu0
      %v2182 = vadd.f32 %v2021, %v2181
      %v2183 = vpop.f32.mrf.mxu0
      %2184 = vmatprep.mubr.bf16.mxu0 0
      %2185 = vmatmul.mubr.bf16.gmra.mxu0 %v797
      %v2186 = vpop.f32.mrf.mxu0
      %v2187 = vadd.f32 %v2026, %v2186
      %v2188 = vpop.f32.mrf.mxu0
      %v2189 = vpop.f32.mrf.mxu0
      %v2190 = vadd.f32 %v2029, %v2189
      %v2191 = vpop.f32.mrf.mxu0
      %2192 = vmatprep.mubr.bf16.mxu0 0
      %2193 = vmatmul.mubr.bf16.gmra.mxu0 %v806
      %v2194 = vpop.f32.mrf.mxu0
      %v2195 = vadd.f32 %v2034, %v2194
      %v2196 = vpop.f32.mrf.mxu0
      %v2197 = vpop.f32.mrf.mxu0
      %v2198 = vadd.f32 %v2037, %v2197
      %v2199 = vpop.f32.mrf.mxu0
      %2200 = vmatprep.mubr.bf16.mxu0 0
      %2201 = vmatmul.mubr.bf16.gmra.mxu0 %v815
      %v2202 = vpop.f32.mrf.mxu0
      %v2203 = vadd.f32 %v2042, %v2202
      %v2204 = vpop.f32.mrf.mxu0
      %v2205 = vpop.f32.mrf.mxu0
      %v2206 = vadd.f32 %v2045, %v2205
      %v2207 = vpop.f32.mrf.mxu0
      %2208 = vmatprep.mubr.bf16.mxu0 0
      %2209 = vmatmul.mubr.bf16.gmra.mxu0 %v824
      %v2210 = vpop.f32.mrf.mxu0
      %v2211 = vadd.f32 %v2050, %v2210
      %v2212 = vpop.f32.mrf.mxu0
      %v2213 = vpop.f32.mrf.mxu0
      %v2214 = vadd.f32 %v2053, %v2213
      %v2215 = vpop.f32.mrf.mxu0
      %2216 = vmatprep.mubr.bf16.mxu0 0
      %2217 = vmatmul.mubr.bf16.gmra.mxu0 %v833
      %v2218 = vpop.f32.mrf.mxu0
      %v2219 = vadd.f32 %v2058, %v2218
      %v2220 = vpop.f32.mrf.mxu0
      %v2221 = vpop.f32.mrf.mxu0
      %v2222 = vadd.f32 %v2061, %v2221
      %v2223 = vpop.f32.mrf.mxu0
      %2224 = vmatprep.mubr.bf16.mxu0 0
      %2225 = vmatmul.mubr.bf16.gmra.mxu0 %v842
      %v2226 = vpop.f32.mrf.mxu0
      %v2227 = vadd.f32 %v2066, %v2226
      %v2228 = vpop.f32.mrf.mxu0
      %v2229 = vpop.f32.mrf.mxu0
      %v2230 = vadd.f32 %v2069, %v2229
      %v2231 = vpop.f32.mrf.mxu0
      %2232 = vmatprep.mubr.bf16.mxu0 0
      %2233 = vmatmul.mubr.bf16.gmra.mxu0 %v851
      %v2234 = vpop.f32.mrf.mxu0
      %v2235 = vadd.f32 %v2074, %v2234
      %v2236 = vpop.f32.mrf.mxu0
      %v2237 = vpop.f32.mrf.mxu0
      %v2238 = vadd.f32 %v2077, %v2237
      %v2239 = vpop.f32.mrf.mxu0
      %2240 = vmatprep.mubr.bf16.mxu0 0
      %2241 = vmatmul.mubr.bf16.gmra.mxu0 %v860
      %v2242 = vpop.f32.mrf.mxu0
      %v2243 = vadd.f32 %v2082, %v2242
      %v2244 = vpop.f32.mrf.mxu0
      %v2245 = vpop.f32.mrf.mxu0
      %v2246 = vadd.f32 %v2085, %v2245
      %v2247 = vpop.f32.mrf.mxu0
      %2248 = vmatprep.mubr.bf16.mxu0 0
      %2249 = vmatmul.mubr.bf16.gmra.mxu0 %v869
      %v2250 = vpop.f32.mrf.mxu0
      %v2251 = vadd.f32 %v2090, %v2250
      %v2252 = vpop.f32.mrf.mxu0
      %v2253 = vpop.f32.mrf.mxu0
      %v2254 = vadd.f32 %v2093, %v2253
      %v2255 = vpop.f32.mrf.mxu0
      %2256 = vmatprep.mubr.bf16.mxu0 0
      %2257 = vmatmul.mubr.bf16.gmra.mxu0 %v878
      %v2258 = vpop.f32.mrf.mxu0
      %v2259 = vadd.f32 %v2098, %v2258
      %v2260 = vpop.f32.mrf.mxu0
      %v2261 = vpop.f32.mrf.mxu0
      %v2262 = vadd.f32 %v2101, %v2261
      %v2263 = vpop.f32.mrf.mxu0
      %2264 = vmatprep.mubr.bf16.mxu0 0
      %2265 = vmatmul.mubr.bf16.gmra.mxu0 %v887
      %v2266 = vpop.f32.mrf.mxu0
      %v2267 = vadd.f32 %v2106, %v2266
      %v2268 = vpop.f32.mrf.mxu0
      %v2269 = vpop.f32.mrf.mxu0
      %v2270 = vadd.f32 %v2109, %v2269
      %v2271 = vpop.f32.mrf.mxu0
      %2272 = vmatprep.mubr.bf16.mxu0 0
      %2273 = vmatmul.mubr.bf16.gmra.mxu0 %v896
      %v2274 = vpop.f32.mrf.mxu0
      %v2275 = vadd.f32 %v2114, %v2274
      %v2276 = vpop.f32.mrf.mxu0
      %v2277 = vpop.f32.mrf.mxu0
      %v2278 = vadd.f32 %v2117, %v2277
      %v2279 = vpop.f32.mrf.mxu0
      %2280 = vmatprep.mubr.bf16.mxu0 0
      %2281 = vmatmul.mubr.bf16.gmra.mxu0 %v905
      %v2282 = vpop.f32.mrf.mxu0
      %v2283 = vadd.f32 %v2122, %v2282
      %v2284 = vpop.f32.mrf.mxu0
      %v2285 = vpop.f32.mrf.mxu0
      %v2286 = vadd.f32 %v2125, %v2285
      %v2287 = vpop.f32.mrf.mxu0
      %2288 = vmatprep.mubr.bf16.mxu0 0
      %2289 = vmatmul.mubr.bf16.gmra.mxu0 %v914
      %v2290 = vpop.f32.mrf.mxu0
      %v2291 = vadd.f32 %v2130, %v2290
      %v2292 = vpop.f32.mrf.mxu0
      %v2293 = vpop.f32.mrf.mxu0
      %v2294 = vadd.f32 %v2133, %v2293
      %v2295 = vpop.f32.mrf.mxu0
      %2296 = vmatprep.mubr.bf16.mxu0 0
      %2297 = vmatmul.mubr.bf16.gmra.mxu0 %v923
      %v2298 = vpop.f32.mrf.mxu0
      %v2299 = vadd.f32 %v2138, %v2298
      %v2300 = vpop.f32.mrf.mxu0
      %v2301 = vpop.f32.mrf.mxu0
      %v2302 = vadd.f32 %v2141, %v2301
      %v2303 = vpop.f32.mrf.mxu0
      %2304 = vdwg.mxu0
      %2305 = vst [vmem:[%s195] sm:$0xff] %v2179
      %2306 = vst [vmem:[%s195 + $0x8] sm:$0xff] %v2182
      %2307 = vst [vmem:[%s195 + $0x10] sm:$0xff] %v2187
      %2308 = vst [vmem:[%s195 + $0x18] sm:$0xff] %v2190
      %2309 = vst [vmem:[%s195 + $0x20] sm:$0xff] %v2195
      %2310 = vst [vmem:[%s195 + $0x28] sm:$0xff] %v2198
      %2311 = vst [vmem:[%s195 + $0x30] sm:$0xff] %v2203
      %2312 = vst [vmem:[%s195 + $0x38] sm:$0xff] %v2206
      %2313 = vst [vmem:[%s195 + $0x40] sm:$0xff] %v2211
      %2314 = vst [vmem:[%s195 + $0x48] sm:$0xff] %v2214
      %2315 = vst [vmem:[%s195 + $0x50] sm:$0xff] %v2219
      %2316 = vst [vmem:[%s195 + $0x58] sm:$0xff] %v2222
      %2317 = vst [vmem:[%s195 + $0x60] sm:$0xff] %v2227
      %2318 = vst [vmem:[%s195 + $0x68] sm:$0xff] %v2230
      %2319 = vst [vmem:[%s195 + $0x70] sm:$0xff] %v2235
      %2320 = vst [vmem:[%s195 + $0x78] sm:$0xff] %v2238
      %2321 = vst [vmem:[%s195 + $0x80] sm:$0xff] %v2243
      %2322 = vst [vmem:[%s195 + $0x88] sm:$0xff] %v2246
      %2323 = vst [vmem:[%s195 + $0x90] sm:$0xff] %v2251
      %2324 = vst [vmem:[%s195 + $0x98] sm:$0xff] %v2254
      %2325 = vst [vmem:[%s195 + $0xa0] sm:$0xff] %v2259
      %2326 = vst [vmem:[%s195 + $0xa8] sm:$0xff] %v2262
      %2327 = vst [vmem:[%s195 + $0xb0] sm:$0xff] %v2267
      %2328 = vst [vmem:[%s195 + $0xb8] sm:$0xff] %v2270
      %2329 = vst [vmem:[%s195 + $0xc0] sm:$0xff] %v2275
      %2330 = vst [vmem:[%s195 + $0xc8] sm:$0xff] %v2278
      %2331 = vst [vmem:[%s195 + $0xd0] sm:$0xff] %v2283
      %2332 = vst [vmem:[%s195 + $0xd8] sm:$0xff] %v2286
      %2333 = vst [vmem:[%s195 + $0xe0] sm:$0xff] %v2291
      %2334 = vst [vmem:[%s195 + $0xe8] sm:$0xff] %v2294
      %2335 = vst [vmem:[%s195 + $0xf0] sm:$0xff] %v2299
      %2336 = vst [vmem:[%s195 + $0xf8] sm:$0xff] %v2302
      %v2337 = vadd.f32 %v2179, %v2182
      %v2338 = vadd.f32 %v2337, %v2187
      %v2339 = vadd.f32 %v2338, %v2190
      %v2340 = vadd.f32 %v2339, %v2195
      %v2341 = vadd.f32 %v2340, %v2198
      %v2342 = vadd.f32 %v2341, %v2203
      %v2343 = vadd.f32 %v2342, %v2206
      %v2344 = vadd.f32 %v2343, %v2211
      %v2345 = vadd.f32 %v2344, %v2214
      %v2346 = vadd.f32 %v2345, %v2219
      %v2347 = vadd.f32 %v2346, %v2222
      %v2348 = vadd.f32 %v2347, %v2227
      %v2349 = vadd.f32 %v2348, %v2230
      %v2350 = vadd.f32 %v2349, %v2235
      %v2351 = vadd.f32 %v2350, %v2238
      %v2352 = vadd.f32 %v2351, %v2243
      %v2353 = vadd.f32 %v2352, %v2246
      %v2354 = vadd.f32 %v2353, %v2251
      %v2355 = vadd.f32 %v2354, %v2254
      %v2356 = vadd.f32 %v2355, %v2259
      %v2357 = vadd.f32 %v2356, %v2262
      %v2358 = vadd.f32 %v2357, %v2267
      %v2359 = vadd.f32 %v2358, %v2270
      %v2360 = vadd.f32 %v2359, %v2275
      %v2361 = vadd.f32 %v2360, %v2278
      %v2362 = vadd.f32 %v2361, %v2283
      %v2363 = vadd.f32 %v2362, %v2286
      %v2364 = vadd.f32 %v2363, %v2291
      %v2365 = vadd.f32 %v2364, %v2294
      %v2366 = vadd.f32 %v2365, %v2299
      %v2367 = vadd.f32 %v2366, %v2302
      %v2368 = vrot.slane %v2367, 4
      %v2369 = vadd.f32 %v2367, %v2368
      %v2370 = vrot.slane %v2369, 2
      %v2371 = vadd.f32 %v2369, %v2370
      %v2372 = vrot.slane %v2371, 1
      %v2373 = vadd.f32 %v2371, %v2372
      %v2374 = vmul.f32 %v2179, %v2179
      %v2375 = vmul.f32 %v2182, %v2182
      %v2376 = vmul.f32 %v2187, %v2187
      %v2377 = vmul.f32 %v2190, %v2190
      %v2378 = vmul.f32 %v2195, %v2195
      %v2379 = vmul.f32 %v2198, %v2198
      %v2380 = vmul.f32 %v2203, %v2203
      %v2381 = vmul.f32 %v2206, %v2206
      %v2382 = vmul.f32 %v2211, %v2211
      %v2383 = vmul.f32 %v2214, %v2214
      %v2384 = vmul.f32 %v2219, %v2219
      %v2385 = vmul.f32 %v2222, %v2222
      %v2386 = vmul.f32 %v2227, %v2227
      %v2387 = vmul.f32 %v2230, %v2230
      %v2388 = vmul.f32 %v2235, %v2235
      %v2389 = vmul.f32 %v2238, %v2238
      %v2390 = vmul.f32 %v2243, %v2243
      %v2391 = vmul.f32 %v2246, %v2246
      %v2392 = vmul.f32 %v2251, %v2251
      %v2393 = vmul.f32 %v2254, %v2254
      %v2394 = vmul.f32 %v2259, %v2259
      %v2395 = vmul.f32 %v2262, %v2262
      %v2396 = vmul.f32 %v2267, %v2267
      %v2397 = vmul.f32 %v2270, %v2270
      %v2398 = vmul.f32 %v2275, %v2275
      %v2399 = vmul.f32 %v2278, %v2278
      %v2400 = vmul.f32 %v2283, %v2283
      %v2401 = vmul.f32 %v2286, %v2286
      %v2402 = vmul.f32 %v2291, %v2291
      %v2403 = vmul.f32 %v2294, %v2294
      %v2404 = vmul.f32 %v2299, %v2299
      %v2405 = vmul.f32 %v2302, %v2302
      %v2406 = vadd.f32 %v2374, %v2375
      %v2407 = vadd.f32 %v2406, %v2376
      %v2408 = vadd.f32 %v2407, %v2377
      %v2409 = vadd.f32 %v2408, %v2378
      %v2410 = vadd.f32 %v2409, %v2379
      %v2411 = vadd.f32 %v2410, %v2380
      %v2412 = vadd.f32 %v2411, %v2381
      %v2413 = vadd.f32 %v2412, %v2382
      %v2414 = vadd.f32 %v2413, %v2383
      %v2415 = vadd.f32 %v2414, %v2384
      %v2416 = vadd.f32 %v2415, %v2385
      %v2417 = vadd.f32 %v2416, %v2386
      %v2418 = vadd.f32 %v2417, %v2387
      %v2419 = vadd.f32 %v2418, %v2388
      %v2420 = vadd.f32 %v2419, %v2389
      %v2421 = vadd.f32 %v2420, %v2390
      %v2422 = vadd.f32 %v2421, %v2391
      %v2423 = vadd.f32 %v2422, %v2392
      %v2424 = vadd.f32 %v2423, %v2393
      %v2425 = vadd.f32 %v2424, %v2394
      %v2426 = vadd.f32 %v2425, %v2395
      %v2427 = vadd.f32 %v2426, %v2396
      %v2428 = vadd.f32 %v2427, %v2397
      %v2429 = vadd.f32 %v2428, %v2398
      %v2430 = vadd.f32 %v2429, %v2399
      %v2431 = vadd.f32 %v2430, %v2400
      %v2432 = vadd.f32 %v2431, %v2401
      %v2433 = vadd.f32 %v2432, %v2402
      %v2434 = vadd.f32 %v2433, %v2403
      %v2435 = vadd.f32 %v2434, %v2404
      %v2436 = vadd.f32 %v2435, %v2405
      %v2437 = vrot.slane %v2436, 4
      %v2438 = vadd.f32 %v2436, %v2437
      %v2439 = vrot.slane %v2438, 2
      %v2440 = vadd.f32 %v2438, %v2439
      %v2441 = vrot.slane %v2440, 1
      %v2442 = vadd.f32 %v2440, %v2441
      %v2443 = vld [vmem:[%s4] sm:$0x3]
      %vm2444 = vcmask 1040384
      %v2445 = vsel %vm2444, %v2373, %v2442
      %v2446 = vadd.f32 %v2443, %v2445
      %2447 = vst [vmem:[%s4] sm:$0x3] %v2446
      %p2448 = scmp.lt.s32.totalorder %s16, 1
      %s2449 = scalar_select %p2448, %s16, 1
      %s2450 = smul.addr %s2449, 32
      %s2451 = smul.addr %s2450, 8
      %s2452 = scalar_lea.vmem %s3, %s2451
      // Predicated region
      $region37: #{multiconvblock_forward.4} parent=31 // pred_check
        %p2453 = pneg %p102
      $region38: #{multiconvblock_forward.4} parent=31 // pred_check_branch
        %2455 = sbr.rel (%p2453) target = $region40
      $region39: #{multiconvblock_forward.4} parent=31 // pred_region
        _
      $region40: #{multiconvblock_forward.4} parent=31 // pred_fallthru
        _
      // Predicated region
      $region41: #{multiconvblock_forward.4} parent=31 // pred_check
        %p2456 = pneg %p123
      $region42: #{multiconvblock_forward.4} parent=31 // pred_check_branch
        %2458 = sbr.rel (%p2456) target = $region44
      $region43: #{multiconvblock_forward.4} parent=31 // pred_region
        _
      $region44: #{multiconvblock_forward.4} parent=31 // pred_fallthru
        _
      // Predicated region
      $region45: #{multiconvblock_forward.4} parent=31 // pred_check
        %p2459 = pneg %p123
      $region46: #{multiconvblock_forward.4} parent=31 // pred_check_branch
        %2461 = sbr.rel (%p2459) target = $region48
      $region47: #{multiconvblock_forward.4} parent=31 // pred_region
        _
      $region48: #{multiconvblock_forward.4} parent=31 // pred_fallthru
        _
    $region32: #{multiconvblock_forward.4} parent=5 // pred_fallthru
      _
    %p2462 = scmp.le.s32.totalorder 2, %s11
    // Predicated region
    $region49: #{multiconvblock_forward.4} parent=5 // pred_check
      %p2463 = pneg %p2462
    $region50: #{multiconvblock_forward.4} parent=5 // pred_check_branch
      %2465 = sbr.rel (%p2463) target = $region52
    $region51: #{multiconvblock_forward.4} parent=5 // pred_region
      %s2466 = ssub.s32 %s11, 2
      // Predicated region
      $region53: #{multiconvblock_forward.4} parent=51 // pred_check
        %p2467 = pneg %p108
      $region54: #{multiconvblock_forward.4} parent=51 // pred_check_branch
        %2469 = sbr.rel (%p2467) target = $region56
      $region55: #{multiconvblock_forward.4} parent=51 // pred_region
        %p2470 = scmp.lt.s32.totalorder %s17, 1
        %s2471 = scalar_select %p2470, %s17, 1
        %s2472 = smul.addr %s2471, 32
        %s2473 = smul.addr %s2472, 8
        %s2474 = scalar_lea.vmem %s3, %s2473
      $region56: #{multiconvblock_forward.4} parent=51 // pred_fallthru
        _
    $region52: #{multiconvblock_forward.4} parent=5 // pred_fallthru
      _
  $region6: #{multiconvblock_forward.4} parent=0 // loop_footer
    %s15 = sadd.s32 1, %s11
  $region7: #{multiconvblock_forward.4} parent=0 // loop_footer_branch
    %10 = sbr.rel target = $region3
  $region8: #{multiconvblock_forward.4} parent=0 // loop_exit
    _

</llo_original>
